<compile_context>
chip_gen: v5e
topology: v5e:2x2
jax: 0.10.0
libtpu: 0.0.40
codegen_flags: <defaults>
</compile_context>

<pallas_src>
import random

import jax
import jax.numpy as jnp
from jax import lax
from jax.experimental import pallas as pl
from jax.experimental.pallas import tpu as pltpu

# small, forward-consistent hyper-parameters
EMB = 16          # emb_size
HID = 32          # hidden_size
VOCAB = 32        # vocab_size
IN_MAX_LEN = 8    # input_max_len (== attention max_length)
TGT_MAX_LEN = 8   # target_max_len
SEN_LEN = 8
SEN_NUM = 1
SOS_TOKEN = 2
BATCH = 2
B_PAD = 8         # batch padded to a full sublane granule

T_DEC = SEN_NUM * SEN_LEN
assert T_DEC == IN_MAX_LEN  # lets enc / dec-in / target id columns share one slab

_VMEM = pl.BlockSpec(memory_space=pltpu.MemorySpace.VMEM)

# ---- packed weight-slab row offsets (all 8-aligned; every item starts at lane 0)
_R_ENC_GIW = 0      # (V, 3H)  enc_emb @ enc_wih  (+ enc_bih folded per row)
_R_ENC_WHH = 32     # (H, 3H)
_R_DEC_WIH = 64     # (H, 3H)
_R_DEC_WHH = 96     # (H, 3H)
_R_BIAS    = 128    # row +0 enc_bhh, +1 dec_bih, +2 dec_bhh, +3 dec_bo
_R_EMB_WAE = 136    # (V, L)   dec_emb @ dec_wa_e
_R_WAH     = 168    # (H, L)   dec_wa_h
_R_EMB_WCE = 200    # (V, H)   dec_emb @ dec_wc_e (+ dec_bc folded per row)
_R_WCA     = 232    # (H, H)   dec_wc_a
_R_WO      = 264    # (H, V)   dec_wo
_R_BA      = 296    # (T*Bp, L) dec_ba + position(j) @ dec_wa_p, per (step, row)
_R_SEL     = 360    # (L, L*Bp) selector for block-diagonal attention matmul
_R_MSK     = 368    # (Bp, L*Bp) block-diagonal mask
_W_ROWS    = 376
_W_LANES   = 128


# ----------------------------------------------------------------------------
# shared GRU math (PyTorch gate order r, z, n; gi/gh already include biases)
# ----------------------------------------------------------------------------
def _gru_from_gates(gi, gh, h):
    H = HID
    r = jax.nn.sigmoid(gi[:, :H] + gh[:, :H])
    z = jax.nn.sigmoid(gi[:, H:2 * H] + gh[:, H:2 * H])
    n = jnp.tanh(gi[:, 2 * H:3 * H] + r * gh[:, 2 * H:3 * H])
    return (1.0 - z) * n + z * h


# ----------------------------------------------------------------------------
# fully fused forward kernel: encoder GRU -> attention decoder -> NLL loss
# ----------------------------------------------------------------------------
def _make_fused_kernel(use_teacher_forcing: bool, batch_real: int):
    L, T, Bp, H, V = IN_MAX_LEN, T_DEC, B_PAD, HID, VOCAB
    inv_b = 1.0 / float(batch_real)
    f32 = jnp.float32

    def kernel(ids_ref, lens_ref, w_ref, loss_ref,
               gi_scr, enc_scr, apre_scr, cpre_scr, hall_scr):
        ids = ids_ref[...]                                       # (T*Bp, 3) int32
        iota_v = lax.broadcasted_iota(jnp.int32, (T * Bp, V), 1)

        # ---- in-kernel embedding lookups, hoisted off both recurrences ------
        enc_oh = (iota_v == ids[:, 0:1]).astype(f32)             # (L*Bp, V)
        gi_scr[...] = jnp.dot(enc_oh, w_ref[_R_ENC_GIW:_R_ENC_GIW + V, :3 * H],
                              preferred_element_type=f32)
        dec_oh = (iota_v == ids[:, 1:2]).astype(f32)             # (T*Bp, V)
        apre_scr[...] = (jnp.dot(dec_oh, w_ref[_R_EMB_WAE:_R_EMB_WAE + V, :L],
                                 preferred_element_type=f32)
                         + w_ref[_R_BA:_R_BA + T * Bp, :L])
        cpre_scr[...] = jnp.dot(dec_oh, w_ref[_R_EMB_WCE:_R_EMB_WCE + V, :H],
                                preferred_element_type=f32)

        lens = lens_ref[...]                                     # (Bp, 1) int32

        # ---- encoder GRU: only h @ W_hh stays on the serial chain -----------
        h = jnp.zeros((Bp, H), f32)
        for t in range(L):
            if t == 0:
                gh = jnp.broadcast_to(w_ref[_R_BIAS:_R_BIAS + 1, :3 * H],
                                      (Bp, 3 * H))
            else:
                gh = (jnp.dot(h, w_ref[_R_ENC_WHH:_R_ENC_WHH + H, :3 * H],
                              preferred_element_type=f32)
                      + w_ref[_R_BIAS:_R_BIAS + 1, :3 * H])
            gi = gi_scr[t * Bp:(t + 1) * Bp, :]
            h_cand = _gru_from_gates(gi, gh, h)
            m = (lens > t).astype(f32)                           # packed-seq mask
            out_t = m * h_cand
            h = out_t if t == 0 else out_t + (1.0 - m) * h
            enc_scr[t * Bp:(t + 1) * Bp, :] = out_t              # zero past length

        # ---- attention decoder (8 unrolled steps) ----------------------------
        prev_logp = None
        for j in range(T):
            if use_teacher_forcing or j == 0:
                a_in = apre_scr[j * Bp:(j + 1) * Bp, :]
                c_in = cpre_scr[j * Bp:(j + 1) * Bp, :]
            else:
                # greedy feedback; padded batch rows also run this path but are
                # masked out of the loss by their all-zero target one-hots.
                am = jnp.argmax(prev_logp, axis=-1)
                oh = (lax.broadcasted_iota(jnp.int32, (Bp, V), 1)
                      == am[:, None]).astype(f32)
                a_in = (jnp.dot(oh, w_ref[_R_EMB_WAE:_R_EMB_WAE + V, :L],
                                preferred_element_type=f32)
                        + w_ref[_R_BA + j * Bp:_R_BA + (j + 1) * Bp, :L])
                c_in = jnp.dot(oh, w_ref[_R_EMB_WCE:_R_EMB_WCE + V, :H],
                               preferred_element_type=f32)

            # attention logits: hoisted embedding part + h part (no lane concat)
            a_logits = a_in + jnp.dot(h, w_ref[_R_WAH:_R_WAH + H, :L],
                                      preferred_element_type=f32)
            a_logits = a_logits - jnp.max(a_logits, axis=-1, keepdims=True)
            a_exp = jnp.exp(a_logits)
            attn_w = a_exp * pl.reciprocal(
                jnp.sum(a_exp, axis=-1, keepdims=True), approx=True)

            # weighted encoder sum as a block-diagonal MXU contraction
            wmat = (jnp.dot(attn_w, w_ref[_R_SEL:_R_SEL + L, :L * Bp],
                            preferred_element_type=f32)
                    * w_ref[_R_MSK:_R_MSK + Bp, :L * Bp])
            attn_applied = jnp.dot(wmat, enc_scr[...],
                                   preferred_element_type=f32)   # (Bp, H)

            # attn_combine + ReLU (hoisted embedding part + attended part)
            combined = jnp.maximum(
                c_in + jnp.dot(attn_applied, w_ref[_R_WCA:_R_WCA + H, :H],
                               preferred_element_type=f32), 0.0)

            # decoder GRU cell
            gi = (jnp.dot(combined, w_ref[_R_DEC_WIH:_R_DEC_WIH + H, :3 * H],
                          preferred_element_type=f32)
                  + w_ref[_R_BIAS + 1:_R_BIAS + 2, :3 * H])
            gh = (jnp.dot(h, w_ref[_R_DEC_WHH:_R_DEC_WHH + H, :3 * H],
                          preferred_element_type=f32)
                  + w_ref[_R_BIAS + 2:_R_BIAS + 3, :3 * H])
            h = _gru_from_gates(gi, gh, h)
            hall_scr[j * Bp:(j + 1) * Bp, :] = h

            if not use_teacher_forcing:
                # only the greedy-feedback variant needs per-step log-probs
                logits = (jnp.dot(h, w_ref[_R_WO:_R_WO + H, :V],
                                  preferred_element_type=f32)
                          + w_ref[_R_BIAS + 3:_R_BIAS + 4, :V])
                mx = jnp.max(logits, axis=-1, keepdims=True)
                lse = jnp.log(jnp.sum(jnp.exp(logits - mx), axis=-1,
                                      keepdims=True)) + mx
                prev_logp = logits - lse

        # ---- deferred output projection + log-softmax + NLL (off the chain) --
        logits = (jnp.dot(hall_scr[...], w_ref[_R_WO:_R_WO + H, :V],
                          preferred_element_type=f32)
                  + w_ref[_R_BIAS + 3:_R_BIAS + 4, :V])           # (T*Bp, V)
        mx = jnp.max(logits, axis=-1, keepdims=True)
        lse = jnp.log(jnp.sum(jnp.exp(logits - mx), axis=-1, keepdims=True)) + mx
        logp = logits - lse
        tgt_oh = (iota_v == ids[:, 2:3]).astype(f32)              # -1 -> zero row
        loss = jnp.sum(logp * tgt_oh, keepdims=True) * jnp.float32(-inv_b)  # (1,1)
        loss_ref[...] = jnp.broadcast_to(loss, loss_ref.shape)    # lane-dense slab

    return kernel


# ----------------------------------------------------------------------------
# deterministic parameter init
# ----------------------------------------------------------------------------
def init_params(key):
    ks = jax.random.split(key, 19)

    def nrm(k, shape, scale=0.1):
        return (scale * jax.random.normal(k, shape)).astype(jnp.float32)

    p = {}
    # encoder: Embedding(V, E) + GRU(E, H)
    p['enc_emb'] = nrm(ks[0], (VOCAB, EMB))
    p['enc_wih'] = nrm(ks[1], (EMB, 3 * HID))
    p['enc_whh'] = nrm(ks[2], (HID, 3 * HID))
    p['enc_bih'] = nrm(ks[3], (1, 3 * HID))
    p['enc_bhh'] = nrm(ks[4], (1, 3 * HID))
    # decoder: Embedding(V, E), attn Linear(E+H+2, L), attn_combine Linear(E+H, H),
    #          GRU(H, H), out Linear(H, V)
    p['dec_emb'] = nrm(ks[5], (VOCAB, EMB))
    p['dec_wa_e'] = nrm(ks[6], (EMB, IN_MAX_LEN))
    p['dec_wa_h'] = nrm(ks[7], (HID, IN_MAX_LEN))
    p['dec_wa_p'] = nrm(ks[8], (2, IN_MAX_LEN))
    p['dec_ba'] = nrm(ks[9], (1, IN_MAX_LEN))
    p['dec_wc_e'] = nrm(ks[10], (EMB, HID))
    p['dec_wc_a'] = nrm(ks[11], (HID, HID))
    p['dec_bc'] = nrm(ks[12], (1, HID))
    p['dec_wih'] = nrm(ks[13], (HID, 3 * HID))
    p['dec_whh'] = nrm(ks[14], (HID, 3 * HID))
    p['dec_bih'] = nrm(ks[15], (1, 3 * HID))
    p['dec_bhh'] = nrm(ks[16], (1, 3 * HID))
    p['dec_wo'] = nrm(ks[17], (HID, VOCAB))
    p['dec_bo'] = nrm(ks[18], (1, VOCAB))
    return p


# ----------------------------------------------------------------------------
# one-time fold of all parameters + kernel constants into ONE 128-lane slab
# ----------------------------------------------------------------------------
def pack_weights(p):
    L, T, Bp = IN_MAX_LEN, T_DEC, B_PAD
    W = jnp.zeros((_W_ROWS, _W_LANES), jnp.float32)

    def put(w, row, mat):
        mat = jnp.asarray(mat, jnp.float32)
        return w.at[row:row + mat.shape[0], :mat.shape[1]].set(mat)

    # one-hot rows sum to 1, so per-row folded biases are exact
    W = put(W, _R_ENC_GIW, p['enc_emb'] @ p['enc_wih'] + p['enc_bih'])
    W = put(W, _R_ENC_WHH, p['enc_whh'])
    W = put(W, _R_DEC_WIH, p['dec_wih'])
    W = put(W, _R_DEC_WHH, p['dec_whh'])
    W = put(W, _R_BIAS + 0, p['enc_bhh'])
    W = put(W, _R_BIAS + 1, p['dec_bih'])
    W = put(W, _R_BIAS + 2, p['dec_bhh'])
    W = put(W, _R_BIAS + 3, p['dec_bo'])
    W = put(W, _R_EMB_WAE, p['dec_emb'] @ p['dec_wa_e'])
    W = put(W, _R_WAH, p['dec_wa_h'])
    W = put(W, _R_EMB_WCE, p['dec_emb'] @ p['dec_wc_e'] + p['dec_bc'])
    W = put(W, _R_WCA, p['dec_wc_a'])
    W = put(W, _R_WO, p['dec_wo'])
    # attention bias with the (i, j) position term folded in, per (step, row)
    pos = jnp.array([[di // SEN_LEN, di % SEN_LEN] for di in range(T)],
                    jnp.float32)
    ba = p['dec_ba'] + pos @ p['dec_wa_p']                       # (T, L)
    W = put(W, _R_BA, jnp.repeat(ba, Bp, axis=0))                # (T*Bp, L)
    # constants for the block-diagonal attention contraction
    col = jnp.arange(L * Bp)
    W = put(W, _R_SEL,
            (col[None, :] // Bp == jnp.arange(L)[:, None]).astype(jnp.float32))
    W = put(W, _R_MSK,
            (col[None, :] % Bp == jnp.arange(Bp)[:, None]).astype(jnp.float32))
    return W


# ----------------------------------------------------------------------------
# forward pass == Seq2seq_6.forward (returns scalar summed NLL loss)
# ----------------------------------------------------------------------------
def seq2seq_forward(packed_w, input_batch, input_lengths, target_batch,
                    target_lengths, use_teacher_forcing=True):
    del target_lengths  # the fixed sen_num*sen_len loop ignores max(target_lengths)
    B = input_batch.shape[0]
    assert B <= B_PAD
    pad_b = B_PAD - B
    L, T = IN_MAX_LEN, T_DEC

    # NOTE: the reference sorts the batch by decreasing length (for
    # pack_padded_sequence); the loss is permutation-invariant over batch rows,
    # so the sort is dropped.  Only 3 tiny int32 arrays are built here — all
    # embedding lookups, masks and one-hots happen inside the fused kernel.
    enc_col = jnp.pad(input_batch, ((0, pad_b), (0, 0))).T.reshape(L * B_PAD, 1)
    dec_in = jnp.concatenate(
        [jnp.full((B, 1), SOS_TOKEN, input_batch.dtype), target_batch[:, :T - 1]],
        axis=1)
    dec_col = jnp.pad(dec_in, ((0, pad_b), (0, 0))).T.reshape(T * B_PAD, 1)
    tgt_col = jnp.pad(target_batch[:, :T], ((0, pad_b), (0, 0)),
                      constant_values=-1).T.reshape(T * B_PAD, 1)
    ids3 = jnp.concatenate([enc_col, dec_col, tgt_col], axis=1).astype(jnp.int32)
    lens = jnp.pad(input_lengths, (0, pad_b)).reshape(B_PAD, 1).astype(jnp.int32)

    kernel = _make_fused_kernel(bool(use_teacher_forcing), B)
    out = pl.pallas_call(
        kernel,
        out_shape=jax.ShapeDtypeStruct((8, 128), jnp.float32),
        in_specs=[_VMEM, _VMEM, _VMEM],
        out_specs=_VMEM,
        scratch_shapes=[
            pltpu.VMEM((L * B_PAD, 3 * HID), jnp.float32),     # encoder input gates
            pltpu.VMEM((L * B_PAD, HID), jnp.float32),          # encoder outputs
            pltpu.VMEM((T * B_PAD, IN_MAX_LEN), jnp.float32),   # hoisted attn proj
            pltpu.VMEM((T * B_PAD, HID), jnp.float32),          # hoisted combine proj
            pltpu.VMEM((T * B_PAD, HID), jnp.float32),          # decoder hidden states
        ],
    )(ids3, lens, packed_w)
    return out[0, 0]


if __name__ == "__main__":
    key = jax.random.PRNGKey(0)
    pkey, k_in, k_tgt = jax.random.split(key, 3)
    params = init_params(pkey)
    packed_w = pack_weights(params)   # one-time parameter fold/pack

    input_batch = jax.random.randint(k_in, (BATCH, IN_MAX_LEN), 0, VOCAB,
                                     dtype=jnp.int32)
    input_lengths = jnp.array([8, 6], jnp.int32)
    target_batch = jax.random.randint(k_tgt, (BATCH, TGT_MAX_LEN), 0, VOCAB,
                                      dtype=jnp.int32)
    target_lengths = jnp.array([8, 8], jnp.int32)

    # teacher_forcing_ratio = 1.0 -> random.random() < 1.0 is always True
    use_tf = random.random() < 1.0

    fwd = jax.jit(seq2seq_forward, static_argnames=("use_teacher_forcing",))
    loss = fwd(packed_w, input_batch, input_lengths, target_batch, target_lengths,
               use_teacher_forcing=use_tf)
    loss = jax.block_until_ready(loss)
    assert bool(jnp.isfinite(loss))
    print("KERNEL_OK")
</pallas_src>

<mosaic_0001>
module attributes {stable_mosaic.version = 11 : i64} {
  func.func @kernel(%arg0: memref<64x3xi32, #tpu.memory_space<vmem>>, %arg1: memref<8x1xi32, #tpu.memory_space<vmem>>, %arg2: memref<376x128xf32, #tpu.memory_space<vmem>>, %arg3: memref<8x128xf32, #tpu.memory_space<vmem>>, %arg4: memref<64x96xf32, #tpu.memory_space<vmem>>, %arg5: memref<64x32xf32, #tpu.memory_space<vmem>>, %arg6: memref<64x8xf32, #tpu.memory_space<vmem>>, %arg7: memref<64x32xf32, #tpu.memory_space<vmem>>, %arg8: memref<64x32xf32, #tpu.memory_space<vmem>>) attributes {dimension_semantics = [], scalar_prefetch = 0 : i64, scratch_operands = 5 : i64, tpu.core_type = #tpu.core_type<tc>} {
    %c0 = arith.constant 0 : index
    %c0_0 = arith.constant 0 : index
    %0 = vector.load %arg0[%c0, %c0_0] : memref<64x3xi32, #tpu.memory_space<vmem>>, vector<64x3xi32>
    %1 = tpu.iota {dimensions = array<i32: 1>} : vector<64x32xi32>
    %2 = vector.extract_strided_slice %0 {offsets = [0, 0], sizes = [64, 1], strides = [1, 1]} : vector<64x3xi32> to vector<64x1xi32>
    %3 = vector.broadcast %2 : vector<64x1xi32> to vector<64x32xi32>
    %4 = arith.cmpi eq, %1, %3 : vector<64x32xi32>
    %5 = arith.extui %4 : vector<64x32xi1> to vector<64x32xi32>
    %6 = arith.sitofp %5 : vector<64x32xi32> to vector<64x32xf32>
    %c0_1 = arith.constant 0 : index
    %c0_2 = arith.constant 0 : index
    %7 = vector.load %arg2[%c0_1, %c0_2] : memref<376x128xf32, #tpu.memory_space<vmem>>, vector<32x96xf32>
    %cst = arith.constant dense<0.000000e+00> : vector<64x96xf32>
    %8 = tpu.matmul %6, %7, %cst {dimension_numbers = #tpu.dot_dimension_numbers<[1], [0], [0], [1], [0, 0, 1, 1], [], []>} : vector<64x32xf32>, vector<32x96xf32>, vector<64x96xf32> -> vector<64x96xf32>
    %c0_3 = arith.constant 0 : index
    %c0_4 = arith.constant 0 : index
    %9 = vector.load %arg4[%c0_3, %c0_4] : memref<64x96xf32, #tpu.memory_space<vmem>>, vector<64x96xf32>
    tpu.vector_store %arg4[%c0_3, %c0_4], %8 {strides = array<i32>} : memref<64x96xf32, #tpu.memory_space<vmem>>, vector<64x96xf32>,
    %10 = vector.extract_strided_slice %0 {offsets = [0, 1], sizes = [64, 1], strides = [1, 1]} : vector<64x3xi32> to vector<64x1xi32>
    %11 = vector.broadcast %10 : vector<64x1xi32> to vector<64x32xi32>
    %12 = arith.cmpi eq, %1, %11 : vector<64x32xi32>
    %13 = arith.extui %12 : vector<64x32xi1> to vector<64x32xi32>
    %14 = arith.sitofp %13 : vector<64x32xi32> to vector<64x32xf32>
    %c136 = arith.constant 136 : index
    %c0_5 = arith.constant 0 : index
    %15 = vector.load %arg2[%c136, %c0_5] : memref<376x128xf32, #tpu.memory_space<vmem>>, vector<32x8xf32>
    %cst_6 = arith.constant dense<0.000000e+00> : vector<64x8xf32>
    %16 = tpu.matmul %14, %15, %cst_6 {dimension_numbers = #tpu.dot_dimension_numbers<[1], [0], [0], [1], [0, 0, 1, 1], [], []>} : vector<64x32xf32>, vector<32x8xf32>, vector<64x8xf32> -> vector<64x8xf32>
    %c296 = arith.constant 296 : index
    %c0_7 = arith.constant 0 : index
    %17 = vector.load %arg2[%c296, %c0_7] : memref<376x128xf32, #tpu.memory_space<vmem>>, vector<64x8xf32>
    %18 = arith.addf %16, %17 : vector<64x8xf32>
    %c0_8 = arith.constant 0 : index
    %c0_9 = arith.constant 0 : index
    %19 = vector.load %arg6[%c0_8, %c0_9] : memref<64x8xf32, #tpu.memory_space<vmem>>, vector<64x8xf32>
    tpu.vector_store %arg6[%c0_8, %c0_9], %18 {strides = array<i32>} : memref<64x8xf32, #tpu.memory_space<vmem>>, vector<64x8xf32>,
    %c200 = arith.constant 200 : index
    %c0_10 = arith.constant 0 : index
    %20 = vector.load %arg2[%c200, %c0_10] : memref<376x128xf32, #tpu.memory_space<vmem>>, vector<32x32xf32>
    %cst_11 = arith.constant dense<0.000000e+00> : vector<64x32xf32>
    %21 = tpu.matmul %14, %20, %cst_11 {dimension_numbers = #tpu.dot_dimension_numbers<[1], [0], [0], [1], [0, 0, 1, 1], [], []>} : vector<64x32xf32>, vector<32x32xf32>, vector<64x32xf32> -> vector<64x32xf32>
    %c0_12 = arith.constant 0 : index
    %c0_13 = arith.constant 0 : index
    %22 = vector.load %arg7[%c0_12, %c0_13] : memref<64x32xf32, #tpu.memory_space<vmem>>, vector<64x32xf32>
    tpu.vector_store %arg7[%c0_12, %c0_13], %21 {strides = array<i32>} : memref<64x32xf32, #tpu.memory_space<vmem>>, vector<64x32xf32>,
    %c0_14 = arith.constant 0 : index
    %c0_15 = arith.constant 0 : index
    %23 = vector.load %arg1[%c0_14, %c0_15] : memref<8x1xi32, #tpu.memory_space<vmem>>, vector<8x1xi32>
    %cst_16 = arith.constant 0.000000e+00 : f32
    %24 = vector.broadcast %cst_16 : f32 to vector<8x32xf32>
    %c128 = arith.constant 128 : index
    %c0_17 = arith.constant 0 : index
    %25 = vector.load %arg2[%c128, %c0_17] : memref<376x128xf32, #tpu.memory_space<vmem>>, vector<1x96xf32>
    %26 = vector.shape_cast %25 : vector<1x96xf32> to vector<1x96xf32>
    %27 = vector.broadcast %26 : vector<1x96xf32> to vector<8x96xf32>
    %c0_18 = arith.constant 0 : index
    %c0_19 = arith.constant 0 : index
    %28 = vector.load %arg4[%c0_18, %c0_19] : memref<64x96xf32, #tpu.memory_space<vmem>>, vector<8x96xf32>
    %29 = vector.extract_strided_slice %28 {offsets = [0, 0], sizes = [8, 32], strides = [1, 1]} : vector<8x96xf32> to vector<8x32xf32>
    %30 = vector.extract_strided_slice %27 {offsets = [0, 0], sizes = [8, 32], strides = [1, 1]} : vector<8x96xf32> to vector<8x32xf32>
    %31 = arith.addf %29, %30 : vector<8x32xf32>
    %32 = arith.negf %31 : vector<8x32xf32>
    %33 = math.exp %32 : vector<8x32xf32>
    %cst_20 = arith.constant 1.000000e+00 : f32
    %34 = vector.broadcast %cst_20 : f32 to vector<8x32xf32>
    %35 = arith.addf %34, %33 : vector<8x32xf32>
    %36 = arith.divf %34, %35 : vector<8x32xf32>
    %37 = vector.extract_strided_slice %28 {offsets = [0, 32], sizes = [8, 32], strides = [1, 1]} : vector<8x96xf32> to vector<8x32xf32>
    %38 = vector.extract_strided_slice %27 {offsets = [0, 32], sizes = [8, 32], strides = [1, 1]} : vector<8x96xf32> to vector<8x32xf32>
    %39 = arith.addf %37, %38 : vector<8x32xf32>
    %40 = arith.negf %39 : vector<8x32xf32>
    %41 = math.exp %40 : vector<8x32xf32>
    %cst_21 = arith.constant 1.000000e+00 : f32
    %42 = vector.broadcast %cst_21 : f32 to vector<8x32xf32>
    %43 = arith.addf %42, %41 : vector<8x32xf32>
    %44 = arith.divf %42, %43 : vector<8x32xf32>
    %45 = vector.extract_strided_slice %28 {offsets = [0, 64], sizes = [8, 32], strides = [1, 1]} : vector<8x96xf32> to vector<8x32xf32>
    %46 = vector.extract_strided_slice %27 {offsets = [0, 64], sizes = [8, 32], strides = [1, 1]} : vector<8x96xf32> to vector<8x32xf32>
    %47 = arith.mulf %36, %46 : vector<8x32xf32>
    %48 = arith.addf %45, %47 : vector<8x32xf32>
    %49 = math.tanh %48 : vector<8x32xf32>
    %cst_22 = arith.constant 1.000000e+00 : f32
    %50 = vector.broadcast %cst_22 : f32 to vector<8x32xf32>
    %51 = arith.subf %50, %44 : vector<8x32xf32>
    %52 = arith.mulf %51, %49 : vector<8x32xf32>
    %53 = arith.mulf %44, %24 : vector<8x32xf32>
    %54 = arith.addf %52, %53 : vector<8x32xf32>
    %c0_i32 = arith.constant 0 : i32
    %55 = vector.broadcast %c0_i32 : i32 to vector<8x1xi32>
    %56 = arith.cmpi sgt, %23, %55 : vector<8x1xi32>
    %57 = arith.extui %56 : vector<8x1xi1> to vector<8x1xi32>
    %58 = arith.sitofp %57 : vector<8x1xi32> to vector<8x1xf32>
    %59 = vector.broadcast %58 : vector<8x1xf32> to vector<8x32xf32>
    %60 = arith.mulf %59, %54 : vector<8x32xf32>
    %c0_23 = arith.constant 0 : index
    %c0_24 = arith.constant 0 : index
    %61 = vector.load %arg5[%c0_23, %c0_24] : memref<64x32xf32, #tpu.memory_space<vmem>>, vector<8x32xf32>
    tpu.vector_store %arg5[%c0_23, %c0_24], %60 {strides = array<i32>} : memref<64x32xf32, #tpu.memory_space<vmem>>, vector<8x32xf32>,
    %c32 = arith.constant 32 : index
    %c0_25 = arith.constant 0 : index
    %62 = vector.load %arg2[%c32, %c0_25] : memref<376x128xf32, #tpu.memory_space<vmem>>, vector<32x96xf32>
    %cst_26 = arith.constant dense<0.000000e+00> : vector<8x96xf32>
    %63 = tpu.matmul %60, %62, %cst_26 {dimension_numbers = #tpu.dot_dimension_numbers<[1], [0], [0], [1], [0, 0, 1, 1], [], []>} : vector<8x32xf32>, vector<32x96xf32>, vector<8x96xf32> -> vector<8x96xf32>
    %c128_27 = arith.constant 128 : index
    %c0_28 = arith.constant 0 : index
    %64 = vector.load %arg2[%c128_27, %c0_28] : memref<376x128xf32, #tpu.memory_space<vmem>>, vector<1x96xf32>
    %65 = vector.broadcast %64 : vector<1x96xf32> to vector<8x96xf32>
    %66 = arith.addf %63, %65 : vector<8x96xf32>
    %c8 = arith.constant 8 : index
    %c0_29 = arith.constant 0 : index
    %67 = vector.load %arg4[%c8, %c0_29] : memref<64x96xf32, #tpu.memory_space<vmem>>, vector<8x96xf32>
    %68 = vector.extract_strided_slice %67 {offsets = [0, 0], sizes = [8, 32], strides = [1, 1]} : vector<8x96xf32> to vector<8x32xf32>
    %69 = vector.extract_strided_slice %66 {offsets = [0, 0], sizes = [8, 32], strides = [1, 1]} : vector<8x96xf32> to vector<8x32xf32>
    %70 = arith.addf %68, %69 : vector<8x32xf32>
    %71 = arith.negf %70 : vector<8x32xf32>
    %72 = math.exp %71 : vector<8x32xf32>
    %cst_30 = arith.constant 1.000000e+00 : f32
    %73 = vector.broadcast %cst_30 : f32 to vector<8x32xf32>
    %74 = arith.addf %73, %72 : vector<8x32xf32>
    %75 = arith.divf %73, %74 : vector<8x32xf32>
    %76 = vector.extract_strided_slice %67 {offsets = [0, 32], sizes = [8, 32], strides = [1, 1]} : vector<8x96xf32> to vector<8x32xf32>
    %77 = vector.extract_strided_slice %66 {offsets = [0, 32], sizes = [8, 32], strides = [1, 1]} : vector<8x96xf32> to vector<8x32xf32>
    %78 = arith.addf %76, %77 : vector<8x32xf32>
    %79 = arith.negf %78 : vector<8x32xf32>
    %80 = math.exp %79 : vector<8x32xf32>
    %cst_31 = arith.constant 1.000000e+00 : f32
    %81 = vector.broadcast %cst_31 : f32 to vector<8x32xf32>
    %82 = arith.addf %81, %80 : vector<8x32xf32>
    %83 = arith.divf %81, %82 : vector<8x32xf32>
    %84 = vector.extract_strided_slice %67 {offsets = [0, 64], sizes = [8, 32], strides = [1, 1]} : vector<8x96xf32> to vector<8x32xf32>
    %85 = vector.extract_strided_slice %66 {offsets = [0, 64], sizes = [8, 32], strides = [1, 1]} : vector<8x96xf32> to vector<8x32xf32>
    %86 = arith.mulf %75, %85 : vector<8x32xf32>
    %87 = arith.addf %84, %86 : vector<8x32xf32>
    %88 = math.tanh %87 : vector<8x32xf32>
    %cst_32 = arith.constant 1.000000e+00 : f32
    %89 = vector.broadcast %cst_32 : f32 to vector<8x32xf32>
    %90 = arith.subf %89, %83 : vector<8x32xf32>
    %91 = arith.mulf %90, %88 : vector<8x32xf32>
    %92 = arith.mulf %83, %60 : vector<8x32xf32>
    %93 = arith.addf %91, %92 : vector<8x32xf32>
    %c1_i32 = arith.constant 1 : i32
    %94 = vector.broadcast %c1_i32 : i32 to vector<8x1xi32>
    %95 = arith.cmpi sgt, %23, %94 : vector<8x1xi32>
    %96 = arith.extui %95 : vector<8x1xi1> to vector<8x1xi32>
    %97 = arith.sitofp %96 : vector<8x1xi32> to vector<8x1xf32>
    %98 = vector.broadcast %97 : vector<8x1xf32> to vector<8x32xf32>
    %99 = arith.mulf %98, %93 : vector<8x32xf32>
    %cst_33 = arith.constant 1.000000e+00 : f32
    %100 = vector.broadcast %cst_33 : f32 to vector<8x1xf32>
    %101 = arith.subf %100, %97 : vector<8x1xf32>
    %102 = vector.broadcast %101 : vector<8x1xf32> to vector<8x32xf32>
    %103 = arith.mulf %102, %60 : vector<8x32xf32>
    %104 = arith.addf %99, %103 : vector<8x32xf32>
    %c8_34 = arith.constant 8 : index
    %c0_35 = arith.constant 0 : index
    %105 = vector.load %arg5[%c8_34, %c0_35] : memref<64x32xf32, #tpu.memory_space<vmem>>, vector<8x32xf32>
    tpu.vector_store %arg5[%c8_34, %c0_35], %99 {strides = array<i32>} : memref<64x32xf32, #tpu.memory_space<vmem>>, vector<8x32xf32>,
    %c32_36 = arith.constant 32 : index
    %c0_37 = arith.constant 0 : index
    %106 = vector.load %arg2[%c32_36, %c0_37] : memref<376x128xf32, #tpu.memory_space<vmem>>, vector<32x96xf32>
    %cst_38 = arith.constant dense<0.000000e+00> : vector<8x96xf32>
    %107 = tpu.matmul %104, %106, %cst_38 {dimension_numbers = #tpu.dot_dimension_numbers<[1], [0], [0], [1], [0, 0, 1, 1], [], []>} : vector<8x32xf32>, vector<32x96xf32>, vector<8x96xf32> -> vector<8x96xf32>
    %c128_39 = arith.constant 128 : index
    %c0_40 = arith.constant 0 : index
    %108 = vector.load %arg2[%c128_39, %c0_40] : memref<376x128xf32, #tpu.memory_space<vmem>>, vector<1x96xf32>
    %109 = vector.broadcast %108 : vector<1x96xf32> to vector<8x96xf32>
    %110 = arith.addf %107, %109 : vector<8x96xf32>
    %c16 = arith.constant 16 : index
    %c0_41 = arith.constant 0 : index
    %111 = vector.load %arg4[%c16, %c0_41] : memref<64x96xf32, #tpu.memory_space<vmem>>, vector<8x96xf32>
    %112 = vector.extract_strided_slice %111 {offsets = [0, 0], sizes = [8, 32], strides = [1, 1]} : vector<8x96xf32> to vector<8x32xf32>
    %113 = vector.extract_strided_slice %110 {offsets = [0, 0], sizes = [8, 32], strides = [1, 1]} : vector<8x96xf32> to vector<8x32xf32>
    %114 = arith.addf %112, %113 : vector<8x32xf32>
    %115 = arith.negf %114 : vector<8x32xf32>
    %116 = math.exp %115 : vector<8x32xf32>
    %cst_42 = arith.constant 1.000000e+00 : f32
    %117 = vector.broadcast %cst_42 : f32 to vector<8x32xf32>
    %118 = arith.addf %117, %116 : vector<8x32xf32>
    %119 = arith.divf %117, %118 : vector<8x32xf32>
    %120 = vector.extract_strided_slice %111 {offsets = [0, 32], sizes = [8, 32], strides = [1, 1]} : vector<8x96xf32> to vector<8x32xf32>
    %121 = vector.extract_strided_slice %110 {offsets = [0, 32], sizes = [8, 32], strides = [1, 1]} : vector<8x96xf32> to vector<8x32xf32>
    %122 = arith.addf %120, %121 : vector<8x32xf32>
    %123 = arith.negf %122 : vector<8x32xf32>
    %124 = math.exp %123 : vector<8x32xf32>
    %cst_43 = arith.constant 1.000000e+00 : f32
    %125 = vector.broadcast %cst_43 : f32 to vector<8x32xf32>
    %126 = arith.addf %125, %124 : vector<8x32xf32>
    %127 = arith.divf %125, %126 : vector<8x32xf32>
    %128 = vector.extract_strided_slice %111 {offsets = [0, 64], sizes = [8, 32], strides = [1, 1]} : vector<8x96xf32> to vector<8x32xf32>
    %129 = vector.extract_strided_slice %110 {offsets = [0, 64], sizes = [8, 32], strides = [1, 1]} : vector<8x96xf32> to vector<8x32xf32>
    %130 = arith.mulf %119, %129 : vector<8x32xf32>
    %131 = arith.addf %128, %130 : vector<8x32xf32>
    %132 = math.tanh %131 : vector<8x32xf32>
    %cst_44 = arith.constant 1.000000e+00 : f32
    %133 = vector.broadcast %cst_44 : f32 to vector<8x32xf32>
    %134 = arith.subf %133, %127 : vector<8x32xf32>
    %135 = arith.mulf %134, %132 : vector<8x32xf32>
    %136 = arith.mulf %127, %104 : vector<8x32xf32>
    %137 = arith.addf %135, %136 : vector<8x32xf32>
    %c2_i32 = arith.constant 2 : i32
    %138 = vector.broadcast %c2_i32 : i32 to vector<8x1xi32>
    %139 = arith.cmpi sgt, %23, %138 : vector<8x1xi32>
    %140 = arith.extui %139 : vector<8x1xi1> to vector<8x1xi32>
    %141 = arith.sitofp %140 : vector<8x1xi32> to vector<8x1xf32>
    %142 = vector.broadcast %141 : vector<8x1xf32> to vector<8x32xf32>
    %143 = arith.mulf %142, %137 : vector<8x32xf32>
    %cst_45 = arith.constant 1.000000e+00 : f32
    %144 = vector.broadcast %cst_45 : f32 to vector<8x1xf32>
    %145 = arith.subf %144, %141 : vector<8x1xf32>
    %146 = vector.broadcast %145 : vector<8x1xf32> to vector<8x32xf32>
    %147 = arith.mulf %146, %104 : vector<8x32xf32>
    %148 = arith.addf %143, %147 : vector<8x32xf32>
    %c16_46 = arith.constant 16 : index
    %c0_47 = arith.constant 0 : index
    %149 = vector.load %arg5[%c16_46, %c0_47] : memref<64x32xf32, #tpu.memory_space<vmem>>, vector<8x32xf32>
    tpu.vector_store %arg5[%c16_46, %c0_47], %143 {strides = array<i32>} : memref<64x32xf32, #tpu.memory_space<vmem>>, vector<8x32xf32>,
    %c32_48 = arith.constant 32 : index
    %c0_49 = arith.constant 0 : index
    %150 = vector.load %arg2[%c32_48, %c0_49] : memref<376x128xf32, #tpu.memory_space<vmem>>, vector<32x96xf32>
    %cst_50 = arith.constant dense<0.000000e+00> : vector<8x96xf32>
    %151 = tpu.matmul %148, %150, %cst_50 {dimension_numbers = #tpu.dot_dimension_numbers<[1], [0], [0], [1], [0, 0, 1, 1], [], []>} : vector<8x32xf32>, vector<32x96xf32>, vector<8x96xf32> -> vector<8x96xf32>
    %c128_51 = arith.constant 128 : index
    %c0_52 = arith.constant 0 : index
    %152 = vector.load %arg2[%c128_51, %c0_52] : memref<376x128xf32, #tpu.memory_space<vmem>>, vector<1x96xf32>
    %153 = vector.broadcast %152 : vector<1x96xf32> to vector<8x96xf32>
    %154 = arith.addf %151, %153 : vector<8x96xf32>
    %c24 = arith.constant 24 : index
    %c0_53 = arith.constant 0 : index
    %155 = vector.load %arg4[%c24, %c0_53] : memref<64x96xf32, #tpu.memory_space<vmem>>, vector<8x96xf32>
    %156 = vector.extract_strided_slice %155 {offsets = [0, 0], sizes = [8, 32], strides = [1, 1]} : vector<8x96xf32> to vector<8x32xf32>
    %157 = vector.extract_strided_slice %154 {offsets = [0, 0], sizes = [8, 32], strides = [1, 1]} : vector<8x96xf32> to vector<8x32xf32>
    %158 = arith.addf %156, %157 : vector<8x32xf32>
    %159 = arith.negf %158 : vector<8x32xf32>
    %160 = math.exp %159 : vector<8x32xf32>
    %cst_54 = arith.constant 1.000000e+00 : f32
    %161 = vector.broadcast %cst_54 : f32 to vector<8x32xf32>
    %162 = arith.addf %161, %160 : vector<8x32xf32>
    %163 = arith.divf %161, %162 : vector<8x32xf32>
    %164 = vector.extract_strided_slice %155 {offsets = [0, 32], sizes = [8, 32], strides = [1, 1]} : vector<8x96xf32> to vector<8x32xf32>
    %165 = vector.extract_strided_slice %154 {offsets = [0, 32], sizes = [8, 32], strides = [1, 1]} : vector<8x96xf32> to vector<8x32xf32>
    %166 = arith.addf %164, %165 : vector<8x32xf32>
    %167 = arith.negf %166 : vector<8x32xf32>
    %168 = math.exp %167 : vector<8x32xf32>
    %cst_55 = arith.constant 1.000000e+00 : f32
    %169 = vector.broadcast %cst_55 : f32 to vector<8x32xf32>
    %170 = arith.addf %169, %168 : vector<8x32xf32>
    %171 = arith.divf %169, %170 : vector<8x32xf32>
    %172 = vector.extract_strided_slice %155 {offsets = [0, 64], sizes = [8, 32], strides = [1, 1]} : vector<8x96xf32> to vector<8x32xf32>
    %173 = vector.extract_strided_slice %154 {offsets = [0, 64], sizes = [8, 32], strides = [1, 1]} : vector<8x96xf32> to vector<8x32xf32>
    %174 = arith.mulf %163, %173 : vector<8x32xf32>
    %175 = arith.addf %172, %174 : vector<8x32xf32>
    %176 = math.tanh %175 : vector<8x32xf32>
    %cst_56 = arith.constant 1.000000e+00 : f32
    %177 = vector.broadcast %cst_56 : f32 to vector<8x32xf32>
    %178 = arith.subf %177, %171 : vector<8x32xf32>
    %179 = arith.mulf %178, %176 : vector<8x32xf32>
    %180 = arith.mulf %171, %148 : vector<8x32xf32>
    %181 = arith.addf %179, %180 : vector<8x32xf32>
    %c3_i32 = arith.constant 3 : i32
    %182 = vector.broadcast %c3_i32 : i32 to vector<8x1xi32>
    %183 = arith.cmpi sgt, %23, %182 : vector<8x1xi32>
    %184 = arith.extui %183 : vector<8x1xi1> to vector<8x1xi32>
    %185 = arith.sitofp %184 : vector<8x1xi32> to vector<8x1xf32>
    %186 = vector.broadcast %185 : vector<8x1xf32> to vector<8x32xf32>
    %187 = arith.mulf %186, %181 : vector<8x32xf32>
    %cst_57 = arith.constant 1.000000e+00 : f32
    %188 = vector.broadcast %cst_57 : f32 to vector<8x1xf32>
    %189 = arith.subf %188, %185 : vector<8x1xf32>
    %190 = vector.broadcast %189 : vector<8x1xf32> to vector<8x32xf32>
    %191 = arith.mulf %190, %148 : vector<8x32xf32>
    %192 = arith.addf %187, %191 : vector<8x32xf32>
    %c24_58 = arith.constant 24 : index
    %c0_59 = arith.constant 0 : index
    %193 = vector.load %arg5[%c24_58, %c0_59] : memref<64x32xf32, #tpu.memory_space<vmem>>, vector<8x32xf32>
    tpu.vector_store %arg5[%c24_58, %c0_59], %187 {strides = array<i32>} : memref<64x32xf32, #tpu.memory_space<vmem>>, vector<8x32xf32>,
    %c32_60 = arith.constant 32 : index
    %c0_61 = arith.constant 0 : index
    %194 = vector.load %arg2[%c32_60, %c0_61] : memref<376x128xf32, #tpu.memory_space<vmem>>, vector<32x96xf32>
    %cst_62 = arith.constant dense<0.000000e+00> : vector<8x96xf32>
    %195 = tpu.matmul %192, %194, %cst_62 {dimension_numbers = #tpu.dot_dimension_numbers<[1], [0], [0], [1], [0, 0, 1, 1], [], []>} : vector<8x32xf32>, vector<32x96xf32>, vector<8x96xf32> -> vector<8x96xf32>
    %c128_63 = arith.constant 128 : index
    %c0_64 = arith.constant 0 : index
    %196 = vector.load %arg2[%c128_63, %c0_64] : memref<376x128xf32, #tpu.memory_space<vmem>>, vector<1x96xf32>
    %197 = vector.broadcast %196 : vector<1x96xf32> to vector<8x96xf32>
    %198 = arith.addf %195, %197 : vector<8x96xf32>
    %c32_65 = arith.constant 32 : index
    %c0_66 = arith.constant 0 : index
    %199 = vector.load %arg4[%c32_65, %c0_66] : memref<64x96xf32, #tpu.memory_space<vmem>>, vector<8x96xf32>
    %200 = vector.extract_strided_slice %199 {offsets = [0, 0], sizes = [8, 32], strides = [1, 1]} : vector<8x96xf32> to vector<8x32xf32>
    %201 = vector.extract_strided_slice %198 {offsets = [0, 0], sizes = [8, 32], strides = [1, 1]} : vector<8x96xf32> to vector<8x32xf32>
    %202 = arith.addf %200, %201 : vector<8x32xf32>
    %203 = arith.negf %202 : vector<8x32xf32>
    %204 = math.exp %203 : vector<8x32xf32>
    %cst_67 = arith.constant 1.000000e+00 : f32
    %205 = vector.broadcast %cst_67 : f32 to vector<8x32xf32>
    %206 = arith.addf %205, %204 : vector<8x32xf32>
    %207 = arith.divf %205, %206 : vector<8x32xf32>
    %208 = vector.extract_strided_slice %199 {offsets = [0, 32], sizes = [8, 32], strides = [1, 1]} : vector<8x96xf32> to vector<8x32xf32>
    %209 = vector.extract_strided_slice %198 {offsets = [0, 32], sizes = [8, 32], strides = [1, 1]} : vector<8x96xf32> to vector<8x32xf32>
    %210 = arith.addf %208, %209 : vector<8x32xf32>
    %211 = arith.negf %210 : vector<8x32xf32>
    %212 = math.exp %211 : vector<8x32xf32>
    %cst_68 = arith.constant 1.000000e+00 : f32
    %213 = vector.broadcast %cst_68 : f32 to vector<8x32xf32>
    %214 = arith.addf %213, %212 : vector<8x32xf32>
    %215 = arith.divf %213, %214 : vector<8x32xf32>
    %216 = vector.extract_strided_slice %199 {offsets = [0, 64], sizes = [8, 32], strides = [1, 1]} : vector<8x96xf32> to vector<8x32xf32>
    %217 = vector.extract_strided_slice %198 {offsets = [0, 64], sizes = [8, 32], strides = [1, 1]} : vector<8x96xf32> to vector<8x32xf32>
    %218 = arith.mulf %207, %217 : vector<8x32xf32>
    %219 = arith.addf %216, %218 : vector<8x32xf32>
    %220 = math.tanh %219 : vector<8x32xf32>
    %cst_69 = arith.constant 1.000000e+00 : f32
    %221 = vector.broadcast %cst_69 : f32 to vector<8x32xf32>
    %222 = arith.subf %221, %215 : vector<8x32xf32>
    %223 = arith.mulf %222, %220 : vector<8x32xf32>
    %224 = arith.mulf %215, %192 : vector<8x32xf32>
    %225 = arith.addf %223, %224 : vector<8x32xf32>
    %c4_i32 = arith.constant 4 : i32
    %226 = vector.broadcast %c4_i32 : i32 to vector<8x1xi32>
    %227 = arith.cmpi sgt, %23, %226 : vector<8x1xi32>
    %228 = arith.extui %227 : vector<8x1xi1> to vector<8x1xi32>
    %229 = arith.sitofp %228 : vector<8x1xi32> to vector<8x1xf32>
    %230 = vector.broadcast %229 : vector<8x1xf32> to vector<8x32xf32>
    %231 = arith.mulf %230, %225 : vector<8x32xf32>
    %cst_70 = arith.constant 1.000000e+00 : f32
    %232 = vector.broadcast %cst_70 : f32 to vector<8x1xf32>
    %233 = arith.subf %232, %229 : vector<8x1xf32>
    %234 = vector.broadcast %233 : vector<8x1xf32> to vector<8x32xf32>
    %235 = arith.mulf %234, %192 : vector<8x32xf32>
    %236 = arith.addf %231, %235 : vector<8x32xf32>
    %c32_71 = arith.constant 32 : index
    %c0_72 = arith.constant 0 : index
    %237 = vector.load %arg5[%c32_71, %c0_72] : memref<64x32xf32, #tpu.memory_space<vmem>>, vector<8x32xf32>
    tpu.vector_store %arg5[%c32_71, %c0_72], %231 {strides = array<i32>} : memref<64x32xf32, #tpu.memory_space<vmem>>, vector<8x32xf32>,
    %c32_73 = arith.constant 32 : index
    %c0_74 = arith.constant 0 : index
    %238 = vector.load %arg2[%c32_73, %c0_74] : memref<376x128xf32, #tpu.memory_space<vmem>>, vector<32x96xf32>
    %cst_75 = arith.constant dense<0.000000e+00> : vector<8x96xf32>
    %239 = tpu.matmul %236, %238, %cst_75 {dimension_numbers = #tpu.dot_dimension_numbers<[1], [0], [0], [1], [0, 0, 1, 1], [], []>} : vector<8x32xf32>, vector<32x96xf32>, vector<8x96xf32> -> vector<8x96xf32>
    %c128_76 = arith.constant 128 : index
    %c0_77 = arith.constant 0 : index
    %240 = vector.load %arg2[%c128_76, %c0_77] : memref<376x128xf32, #tpu.memory_space<vmem>>, vector<1x96xf32>
    %241 = vector.broadcast %240 : vector<1x96xf32> to vector<8x96xf32>
    %242 = arith.addf %239, %241 : vector<8x96xf32>
    %c40 = arith.constant 40 : index
    %c0_78 = arith.constant 0 : index
    %243 = vector.load %arg4[%c40, %c0_78] : memref<64x96xf32, #tpu.memory_space<vmem>>, vector<8x96xf32>
    %244 = vector.extract_strided_slice %243 {offsets = [0, 0], sizes = [8, 32], strides = [1, 1]} : vector<8x96xf32> to vector<8x32xf32>
    %245 = vector.extract_strided_slice %242 {offsets = [0, 0], sizes = [8, 32], strides = [1, 1]} : vector<8x96xf32> to vector<8x32xf32>
    %246 = arith.addf %244, %245 : vector<8x32xf32>
    %247 = arith.negf %246 : vector<8x32xf32>
    %248 = math.exp %247 : vector<8x32xf32>
    %cst_79 = arith.constant 1.000000e+00 : f32
    %249 = vector.broadcast %cst_79 : f32 to vector<8x32xf32>
    %250 = arith.addf %249, %248 : vector<8x32xf32>
    %251 = arith.divf %249, %250 : vector<8x32xf32>
    %252 = vector.extract_strided_slice %243 {offsets = [0, 32], sizes = [8, 32], strides = [1, 1]} : vector<8x96xf32> to vector<8x32xf32>
    %253 = vector.extract_strided_slice %242 {offsets = [0, 32], sizes = [8, 32], strides = [1, 1]} : vector<8x96xf32> to vector<8x32xf32>
    %254 = arith.addf %252, %253 : vector<8x32xf32>
    %255 = arith.negf %254 : vector<8x32xf32>
    %256 = math.exp %255 : vector<8x32xf32>
    %cst_80 = arith.constant 1.000000e+00 : f32
    %257 = vector.broadcast %cst_80 : f32 to vector<8x32xf32>
    %258 = arith.addf %257, %256 : vector<8x32xf32>
    %259 = arith.divf %257, %258 : vector<8x32xf32>
    %260 = vector.extract_strided_slice %243 {offsets = [0, 64], sizes = [8, 32], strides = [1, 1]} : vector<8x96xf32> to vector<8x32xf32>
    %261 = vector.extract_strided_slice %242 {offsets = [0, 64], sizes = [8, 32], strides = [1, 1]} : vector<8x96xf32> to vector<8x32xf32>
    %262 = arith.mulf %251, %261 : vector<8x32xf32>
    %263 = arith.addf %260, %262 : vector<8x32xf32>
    %264 = math.tanh %263 : vector<8x32xf32>
    %cst_81 = arith.constant 1.000000e+00 : f32
    %265 = vector.broadcast %cst_81 : f32 to vector<8x32xf32>
    %266 = arith.subf %265, %259 : vector<8x32xf32>
    %267 = arith.mulf %266, %264 : vector<8x32xf32>
    %268 = arith.mulf %259, %236 : vector<8x32xf32>
    %269 = arith.addf %267, %268 : vector<8x32xf32>
    %c5_i32 = arith.constant 5 : i32
    %270 = vector.broadcast %c5_i32 : i32 to vector<8x1xi32>
    %271 = arith.cmpi sgt, %23, %270 : vector<8x1xi32>
    %272 = arith.extui %271 : vector<8x1xi1> to vector<8x1xi32>
    %273 = arith.sitofp %272 : vector<8x1xi32> to vector<8x1xf32>
    %274 = vector.broadcast %273 : vector<8x1xf32> to vector<8x32xf32>
    %275 = arith.mulf %274, %269 : vector<8x32xf32>
    %cst_82 = arith.constant 1.000000e+00 : f32
    %276 = vector.broadcast %cst_82 : f32 to vector<8x1xf32>
    %277 = arith.subf %276, %273 : vector<8x1xf32>
    %278 = vector.broadcast %277 : vector<8x1xf32> to vector<8x32xf32>
    %279 = arith.mulf %278, %236 : vector<8x32xf32>
    %280 = arith.addf %275, %279 : vector<8x32xf32>
    %c40_83 = arith.constant 40 : index
    %c0_84 = arith.constant 0 : index
    %281 = vector.load %arg5[%c40_83, %c0_84] : memref<64x32xf32, #tpu.memory_space<vmem>>, vector<8x32xf32>
    tpu.vector_store %arg5[%c40_83, %c0_84], %275 {strides = array<i32>} : memref<64x32xf32, #tpu.memory_space<vmem>>, vector<8x32xf32>,
    %c32_85 = arith.constant 32 : index
    %c0_86 = arith.constant 0 : index
    %282 = vector.load %arg2[%c32_85, %c0_86] : memref<376x128xf32, #tpu.memory_space<vmem>>, vector<32x96xf32>
    %cst_87 = arith.constant dense<0.000000e+00> : vector<8x96xf32>
    %283 = tpu.matmul %280, %282, %cst_87 {dimension_numbers = #tpu.dot_dimension_numbers<[1], [0], [0], [1], [0, 0, 1, 1], [], []>} : vector<8x32xf32>, vector<32x96xf32>, vector<8x96xf32> -> vector<8x96xf32>
    %c128_88 = arith.constant 128 : index
    %c0_89 = arith.constant 0 : index
    %284 = vector.load %arg2[%c128_88, %c0_89] : memref<376x128xf32, #tpu.memory_space<vmem>>, vector<1x96xf32>
    %285 = vector.broadcast %284 : vector<1x96xf32> to vector<8x96xf32>
    %286 = arith.addf %283, %285 : vector<8x96xf32>
    %c48 = arith.constant 48 : index
    %c0_90 = arith.constant 0 : index
    %287 = vector.load %arg4[%c48, %c0_90] : memref<64x96xf32, #tpu.memory_space<vmem>>, vector<8x96xf32>
    %288 = vector.extract_strided_slice %287 {offsets = [0, 0], sizes = [8, 32], strides = [1, 1]} : vector<8x96xf32> to vector<8x32xf32>
    %289 = vector.extract_strided_slice %286 {offsets = [0, 0], sizes = [8, 32], strides = [1, 1]} : vector<8x96xf32> to vector<8x32xf32>
    %290 = arith.addf %288, %289 : vector<8x32xf32>
    %291 = arith.negf %290 : vector<8x32xf32>
    %292 = math.exp %291 : vector<8x32xf32>
    %cst_91 = arith.constant 1.000000e+00 : f32
    %293 = vector.broadcast %cst_91 : f32 to vector<8x32xf32>
    %294 = arith.addf %293, %292 : vector<8x32xf32>
    %295 = arith.divf %293, %294 : vector<8x32xf32>
    %296 = vector.extract_strided_slice %287 {offsets = [0, 32], sizes = [8, 32], strides = [1, 1]} : vector<8x96xf32> to vector<8x32xf32>
    %297 = vector.extract_strided_slice %286 {offsets = [0, 32], sizes = [8, 32], strides = [1, 1]} : vector<8x96xf32> to vector<8x32xf32>
    %298 = arith.addf %296, %297 : vector<8x32xf32>
    %299 = arith.negf %298 : vector<8x32xf32>
    %300 = math.exp %299 : vector<8x32xf32>
    %cst_92 = arith.constant 1.000000e+00 : f32
    %301 = vector.broadcast %cst_92 : f32 to vector<8x32xf32>
    %302 = arith.addf %301, %300 : vector<8x32xf32>
    %303 = arith.divf %301, %302 : vector<8x32xf32>
    %304 = vector.extract_strided_slice %287 {offsets = [0, 64], sizes = [8, 32], strides = [1, 1]} : vector<8x96xf32> to vector<8x32xf32>
    %305 = vector.extract_strided_slice %286 {offsets = [0, 64], sizes = [8, 32], strides = [1, 1]} : vector<8x96xf32> to vector<8x32xf32>
    %306 = arith.mulf %295, %305 : vector<8x32xf32>
    %307 = arith.addf %304, %306 : vector<8x32xf32>
    %308 = math.tanh %307 : vector<8x32xf32>
    %cst_93 = arith.constant 1.000000e+00 : f32
    %309 = vector.broadcast %cst_93 : f32 to vector<8x32xf32>
    %310 = arith.subf %309, %303 : vector<8x32xf32>
    %311 = arith.mulf %310, %308 : vector<8x32xf32>
    %312 = arith.mulf %303, %280 : vector<8x32xf32>
    %313 = arith.addf %311, %312 : vector<8x32xf32>
    %c6_i32 = arith.constant 6 : i32
    %314 = vector.broadcast %c6_i32 : i32 to vector<8x1xi32>
    %315 = arith.cmpi sgt, %23, %314 : vector<8x1xi32>
    %316 = arith.extui %315 : vector<8x1xi1> to vector<8x1xi32>
    %317 = arith.sitofp %316 : vector<8x1xi32> to vector<8x1xf32>
    %318 = vector.broadcast %317 : vector<8x1xf32> to vector<8x32xf32>
    %319 = arith.mulf %318, %313 : vector<8x32xf32>
    %cst_94 = arith.constant 1.000000e+00 : f32
    %320 = vector.broadcast %cst_94 : f32 to vector<8x1xf32>
    %321 = arith.subf %320, %317 : vector<8x1xf32>
    %322 = vector.broadcast %321 : vector<8x1xf32> to vector<8x32xf32>
    %323 = arith.mulf %322, %280 : vector<8x32xf32>
    %324 = arith.addf %319, %323 : vector<8x32xf32>
    %c48_95 = arith.constant 48 : index
    %c0_96 = arith.constant 0 : index
    %325 = vector.load %arg5[%c48_95, %c0_96] : memref<64x32xf32, #tpu.memory_space<vmem>>, vector<8x32xf32>
    tpu.vector_store %arg5[%c48_95, %c0_96], %319 {strides = array<i32>} : memref<64x32xf32, #tpu.memory_space<vmem>>, vector<8x32xf32>,
    %c32_97 = arith.constant 32 : index
    %c0_98 = arith.constant 0 : index
    %326 = vector.load %arg2[%c32_97, %c0_98] : memref<376x128xf32, #tpu.memory_space<vmem>>, vector<32x96xf32>
    %cst_99 = arith.constant dense<0.000000e+00> : vector<8x96xf32>
    %327 = tpu.matmul %324, %326, %cst_99 {dimension_numbers = #tpu.dot_dimension_numbers<[1], [0], [0], [1], [0, 0, 1, 1], [], []>} : vector<8x32xf32>, vector<32x96xf32>, vector<8x96xf32> -> vector<8x96xf32>
    %c128_100 = arith.constant 128 : index
    %c0_101 = arith.constant 0 : index
    %328 = vector.load %arg2[%c128_100, %c0_101] : memref<376x128xf32, #tpu.memory_space<vmem>>, vector<1x96xf32>
    %329 = vector.broadcast %328 : vector<1x96xf32> to vector<8x96xf32>
    %330 = arith.addf %327, %329 : vector<8x96xf32>
    %c56 = arith.constant 56 : index
    %c0_102 = arith.constant 0 : index
    %331 = vector.load %arg4[%c56, %c0_102] : memref<64x96xf32, #tpu.memory_space<vmem>>, vector<8x96xf32>
    %332 = vector.extract_strided_slice %331 {offsets = [0, 0], sizes = [8, 32], strides = [1, 1]} : vector<8x96xf32> to vector<8x32xf32>
    %333 = vector.extract_strided_slice %330 {offsets = [0, 0], sizes = [8, 32], strides = [1, 1]} : vector<8x96xf32> to vector<8x32xf32>
    %334 = arith.addf %332, %333 : vector<8x32xf32>
    %335 = arith.negf %334 : vector<8x32xf32>
    %336 = math.exp %335 : vector<8x32xf32>
    %cst_103 = arith.constant 1.000000e+00 : f32
    %337 = vector.broadcast %cst_103 : f32 to vector<8x32xf32>
    %338 = arith.addf %337, %336 : vector<8x32xf32>
    %339 = arith.divf %337, %338 : vector<8x32xf32>
    %340 = vector.extract_strided_slice %331 {offsets = [0, 32], sizes = [8, 32], strides = [1, 1]} : vector<8x96xf32> to vector<8x32xf32>
    %341 = vector.extract_strided_slice %330 {offsets = [0, 32], sizes = [8, 32], strides = [1, 1]} : vector<8x96xf32> to vector<8x32xf32>
    %342 = arith.addf %340, %341 : vector<8x32xf32>
    %343 = arith.negf %342 : vector<8x32xf32>
    %344 = math.exp %343 : vector<8x32xf32>
    %cst_104 = arith.constant 1.000000e+00 : f32
    %345 = vector.broadcast %cst_104 : f32 to vector<8x32xf32>
    %346 = arith.addf %345, %344 : vector<8x32xf32>
    %347 = arith.divf %345, %346 : vector<8x32xf32>
    %348 = vector.extract_strided_slice %331 {offsets = [0, 64], sizes = [8, 32], strides = [1, 1]} : vector<8x96xf32> to vector<8x32xf32>
    %349 = vector.extract_strided_slice %330 {offsets = [0, 64], sizes = [8, 32], strides = [1, 1]} : vector<8x96xf32> to vector<8x32xf32>
    %350 = arith.mulf %339, %349 : vector<8x32xf32>
    %351 = arith.addf %348, %350 : vector<8x32xf32>
    %352 = math.tanh %351 : vector<8x32xf32>
    %cst_105 = arith.constant 1.000000e+00 : f32
    %353 = vector.broadcast %cst_105 : f32 to vector<8x32xf32>
    %354 = arith.subf %353, %347 : vector<8x32xf32>
    %355 = arith.mulf %354, %352 : vector<8x32xf32>
    %356 = arith.mulf %347, %324 : vector<8x32xf32>
    %357 = arith.addf %355, %356 : vector<8x32xf32>
    %c7_i32 = arith.constant 7 : i32
    %358 = vector.broadcast %c7_i32 : i32 to vector<8x1xi32>
    %359 = arith.cmpi sgt, %23, %358 : vector<8x1xi32>
    %360 = arith.extui %359 : vector<8x1xi1> to vector<8x1xi32>
    %361 = arith.sitofp %360 : vector<8x1xi32> to vector<8x1xf32>
    %362 = vector.broadcast %361 : vector<8x1xf32> to vector<8x32xf32>
    %363 = arith.mulf %362, %357 : vector<8x32xf32>
    %cst_106 = arith.constant 1.000000e+00 : f32
    %364 = vector.broadcast %cst_106 : f32 to vector<8x1xf32>
    %365 = arith.subf %364, %361 : vector<8x1xf32>
    %366 = vector.broadcast %365 : vector<8x1xf32> to vector<8x32xf32>
    %367 = arith.mulf %366, %324 : vector<8x32xf32>
    %368 = arith.addf %363, %367 : vector<8x32xf32>
    %c56_107 = arith.constant 56 : index
    %c0_108 = arith.constant 0 : index
    %369 = vector.load %arg5[%c56_107, %c0_108] : memref<64x32xf32, #tpu.memory_space<vmem>>, vector<8x32xf32>
    tpu.vector_store %arg5[%c56_107, %c0_108], %363 {strides = array<i32>} : memref<64x32xf32, #tpu.memory_space<vmem>>, vector<8x32xf32>,
    %c0_109 = arith.constant 0 : index
    %c0_110 = arith.constant 0 : index
    %370 = vector.load %arg6[%c0_109, %c0_110] : memref<64x8xf32, #tpu.memory_space<vmem>>, vector<8x8xf32>
    %c0_111 = arith.constant 0 : index
    %c0_112 = arith.constant 0 : index
    %371 = vector.load %arg7[%c0_111, %c0_112] : memref<64x32xf32, #tpu.memory_space<vmem>>, vector<8x32xf32>
    %c168 = arith.constant 168 : index
    %c0_113 = arith.constant 0 : index
    %372 = vector.load %arg2[%c168, %c0_113] : memref<376x128xf32, #tpu.memory_space<vmem>>, vector<32x8xf32>
    %cst_114 = arith.constant dense<0.000000e+00> : vector<8x8xf32>
    %373 = tpu.matmul %368, %372, %cst_114 {dimension_numbers = #tpu.dot_dimension_numbers<[1], [0], [0], [1], [0, 0, 1, 1], [], []>} : vector<8x32xf32>, vector<32x8xf32>, vector<8x8xf32> -> vector<8x8xf32>
    %374 = arith.addf %370, %373 : vector<8x8xf32>
    %cst_115 = arith.constant dense<0xFF800000> : vector<8xf32>
    %375 = vector.multi_reduction <maximumf>, %374, %cst_115 [1] : vector<8x8xf32> to vector<8xf32>
    %376 = vector.shape_cast %375 : vector<8xf32> to vector<8x1xf32>
    %377 = vector.broadcast %376 : vector<8x1xf32> to vector<8x8xf32>
    %378 = arith.subf %374, %377 : vector<8x8xf32>
    %379 = math.exp %378 : vector<8x8xf32>
    %cst_116 = arith.constant dense<0.000000e+00> : vector<8xf32>
    %380 = vector.multi_reduction <add>, %379, %cst_116 [1] : vector<8x8xf32> to vector<8xf32>
    %381 = vector.shape_cast %380 : vector<8xf32> to vector<8x1xf32>
    %382 = tpu.reciprocal %381 {approx = true} : vector<8x1xf32> -> vector<8x1xf32>
    %383 = vector.broadcast %382 : vector<8x1xf32> to vector<8x8xf32>
    %384 = arith.mulf %379, %383 : vector<8x8xf32>
    %c360 = arith.constant 360 : index
    %c0_117 = arith.constant 0 : index
    %385 = vector.load %arg2[%c360, %c0_117] : memref<376x128xf32, #tpu.memory_space<vmem>>, vector<8x64xf32>
    %cst_118 = arith.constant dense<0.000000e+00> : vector<8x64xf32>
    %386 = tpu.matmul %384, %385, %cst_118 {dimension_numbers = #tpu.dot_dimension_numbers<[1], [0], [0], [1], [0, 0, 1, 1], [], []>} : vector<8x8xf32>, vector<8x64xf32>, vector<8x64xf32> -> vector<8x64xf32>
    %c368 = arith.constant 368 : index
    %c0_119 = arith.constant 0 : index
    %387 = vector.load %arg2[%c368, %c0_119] : memref<376x128xf32, #tpu.memory_space<vmem>>, vector<8x64xf32>
    %388 = arith.mulf %386, %387 : vector<8x64xf32>
    %c0_120 = arith.constant 0 : index
    %c0_121 = arith.constant 0 : index
    %389 = vector.load %arg5[%c0_120, %c0_121] : memref<64x32xf32, #tpu.memory_space<vmem>>, vector<64x32xf32>
    %cst_122 = arith.constant dense<0.000000e+00> : vector<8x32xf32>
    %390 = tpu.matmul %388, %389, %cst_122 {dimension_numbers = #tpu.dot_dimension_numbers<[1], [0], [0], [1], [0, 0, 1, 1], [], []>} : vector<8x64xf32>, vector<64x32xf32>, vector<8x32xf32> -> vector<8x32xf32>
    %c232 = arith.constant 232 : index
    %c0_123 = arith.constant 0 : index
    %391 = vector.load %arg2[%c232, %c0_123] : memref<376x128xf32, #tpu.memory_space<vmem>>, vector<32x32xf32>
    %cst_124 = arith.constant dense<0.000000e+00> : vector<8x32xf32>
    %392 = tpu.matmul %390, %391, %cst_124 {dimension_numbers = #tpu.dot_dimension_numbers<[1], [0], [0], [1], [0, 0, 1, 1], [], []>} : vector<8x32xf32>, vector<32x32xf32>, vector<8x32xf32> -> vector<8x32xf32>
    %393 = arith.addf %371, %392 : vector<8x32xf32>
    %cst_125 = arith.constant 0.000000e+00 : f32
    %394 = vector.broadcast %cst_125 : f32 to vector<8x32xf32>
    %395 = arith.maximumf %393, %394 : vector<8x32xf32>
    %c64 = arith.constant 64 : index
    %c0_126 = arith.constant 0 : index
    %396 = vector.load %arg2[%c64, %c0_126] : memref<376x128xf32, #tpu.memory_space<vmem>>, vector<32x96xf32>
    %cst_127 = arith.constant dense<0.000000e+00> : vector<8x96xf32>
    %397 = tpu.matmul %395, %396, %cst_127 {dimension_numbers = #tpu.dot_dimension_numbers<[1], [0], [0], [1], [0, 0, 1, 1], [], []>} : vector<8x32xf32>, vector<32x96xf32>, vector<8x96xf32> -> vector<8x96xf32>
    %c129 = arith.constant 129 : index
    %c0_128 = arith.constant 0 : index
    %398 = vector.load %arg2[%c129, %c0_128] : memref<376x128xf32, #tpu.memory_space<vmem>>, vector<1x96xf32>
    %399 = vector.broadcast %398 : vector<1x96xf32> to vector<8x96xf32>
    %400 = arith.addf %397, %399 : vector<8x96xf32>
    %c96 = arith.constant 96 : index
    %c0_129 = arith.constant 0 : index
    %401 = vector.load %arg2[%c96, %c0_129] : memref<376x128xf32, #tpu.memory_space<vmem>>, vector<32x96xf32>
    %cst_130 = arith.constant dense<0.000000e+00> : vector<8x96xf32>
    %402 = tpu.matmul %368, %401, %cst_130 {dimension_numbers = #tpu.dot_dimension_numbers<[1], [0], [0], [1], [0, 0, 1, 1], [], []>} : vector<8x32xf32>, vector<32x96xf32>, vector<8x96xf32> -> vector<8x96xf32>
    %c130 = arith.constant 130 : index
    %c0_131 = arith.constant 0 : index
    %403 = vector.load %arg2[%c130, %c0_131] : memref<376x128xf32, #tpu.memory_space<vmem>>, vector<1x96xf32>
    %404 = vector.broadcast %403 : vector<1x96xf32> to vector<8x96xf32>
    %405 = arith.addf %402, %404 : vector<8x96xf32>
    %406 = vector.extract_strided_slice %400 {offsets = [0, 0], sizes = [8, 32], strides = [1, 1]} : vector<8x96xf32> to vector<8x32xf32>
    %407 = vector.extract_strided_slice %405 {offsets = [0, 0], sizes = [8, 32], strides = [1, 1]} : vector<8x96xf32> to vector<8x32xf32>
    %408 = arith.addf %406, %407 : vector<8x32xf32>
    %409 = arith.negf %408 : vector<8x32xf32>
    %410 = math.exp %409 : vector<8x32xf32>
    %cst_132 = arith.constant 1.000000e+00 : f32
    %411 = vector.broadcast %cst_132 : f32 to vector<8x32xf32>
    %412 = arith.addf %411, %410 : vector<8x32xf32>
    %413 = arith.divf %411, %412 : vector<8x32xf32>
    %414 = vector.extract_strided_slice %400 {offsets = [0, 32], sizes = [8, 32], strides = [1, 1]} : vector<8x96xf32> to vector<8x32xf32>
    %415 = vector.extract_strided_slice %405 {offsets = [0, 32], sizes = [8, 32], strides = [1, 1]} : vector<8x96xf32> to vector<8x32xf32>
    %416 = arith.addf %414, %415 : vector<8x32xf32>
    %417 = arith.negf %416 : vector<8x32xf32>
    %418 = math.exp %417 : vector<8x32xf32>
    %cst_133 = arith.constant 1.000000e+00 : f32
    %419 = vector.broadcast %cst_133 : f32 to vector<8x32xf32>
    %420 = arith.addf %419, %418 : vector<8x32xf32>
    %421 = arith.divf %419, %420 : vector<8x32xf32>
    %422 = vector.extract_strided_slice %400 {offsets = [0, 64], sizes = [8, 32], strides = [1, 1]} : vector<8x96xf32> to vector<8x32xf32>
    %423 = vector.extract_strided_slice %405 {offsets = [0, 64], sizes = [8, 32], strides = [1, 1]} : vector<8x96xf32> to vector<8x32xf32>
    %424 = arith.mulf %413, %423 : vector<8x32xf32>
    %425 = arith.addf %422, %424 : vector<8x32xf32>
    %426 = math.tanh %425 : vector<8x32xf32>
    %cst_134 = arith.constant 1.000000e+00 : f32
    %427 = vector.broadcast %cst_134 : f32 to vector<8x32xf32>
    %428 = arith.subf %427, %421 : vector<8x32xf32>
    %429 = arith.mulf %428, %426 : vector<8x32xf32>
    %430 = arith.mulf %421, %368 : vector<8x32xf32>
    %431 = arith.addf %429, %430 : vector<8x32xf32>
    %c0_135 = arith.constant 0 : index
    %c0_136 = arith.constant 0 : index
    %432 = vector.load %arg8[%c0_135, %c0_136] : memref<64x32xf32, #tpu.memory_space<vmem>>, vector<8x32xf32>
    tpu.vector_store %arg8[%c0_135, %c0_136], %431 {strides = array<i32>} : memref<64x32xf32, #tpu.memory_space<vmem>>, vector<8x32xf32>,
    %c8_137 = arith.constant 8 : index
    %c0_138 = arith.constant 0 : index
    %433 = vector.load %arg6[%c8_137, %c0_138] : memref<64x8xf32, #tpu.memory_space<vmem>>, vector<8x8xf32>
    %c8_139 = arith.constant 8 : index
    %c0_140 = arith.constant 0 : index
    %434 = vector.load %arg7[%c8_139, %c0_140] : memref<64x32xf32, #tpu.memory_space<vmem>>, vector<8x32xf32>
    %c168_141 = arith.constant 168 : index
    %c0_142 = arith.constant 0 : index
    %435 = vector.load %arg2[%c168_141, %c0_142] : memref<376x128xf32, #tpu.memory_space<vmem>>, vector<32x8xf32>
    %cst_143 = arith.constant dense<0.000000e+00> : vector<8x8xf32>
    %436 = tpu.matmul %431, %435, %cst_143 {dimension_numbers = #tpu.dot_dimension_numbers<[1], [0], [0], [1], [0, 0, 1, 1], [], []>} : vector<8x32xf32>, vector<32x8xf32>, vector<8x8xf32> -> vector<8x8xf32>
    %437 = arith.addf %433, %436 : vector<8x8xf32>
    %cst_144 = arith.constant dense<0xFF800000> : vector<8xf32>
    %438 = vector.multi_reduction <maximumf>, %437, %cst_144 [1] : vector<8x8xf32> to vector<8xf32>
    %439 = vector.shape_cast %438 : vector<8xf32> to vector<8x1xf32>
    %440 = vector.broadcast %439 : vector<8x1xf32> to vector<8x8xf32>
    %441 = arith.subf %437, %440 : vector<8x8xf32>
    %442 = math.exp %441 : vector<8x8xf32>
    %cst_145 = arith.constant dense<0.000000e+00> : vector<8xf32>
    %443 = vector.multi_reduction <add>, %442, %cst_145 [1] : vector<8x8xf32> to vector<8xf32>
    %444 = vector.shape_cast %443 : vector<8xf32> to vector<8x1xf32>
    %445 = tpu.reciprocal %444 {approx = true} : vector<8x1xf32> -> vector<8x1xf32>
    %446 = vector.broadcast %445 : vector<8x1xf32> to vector<8x8xf32>
    %447 = arith.mulf %442, %446 : vector<8x8xf32>
    %c360_146 = arith.constant 360 : index
    %c0_147 = arith.constant 0 : index
    %448 = vector.load %arg2[%c360_146, %c0_147] : memref<376x128xf32, #tpu.memory_space<vmem>>, vector<8x64xf32>
    %cst_148 = arith.constant dense<0.000000e+00> : vector<8x64xf32>
    %449 = tpu.matmul %447, %448, %cst_148 {dimension_numbers = #tpu.dot_dimension_numbers<[1], [0], [0], [1], [0, 0, 1, 1], [], []>} : vector<8x8xf32>, vector<8x64xf32>, vector<8x64xf32> -> vector<8x64xf32>
    %c368_149 = arith.constant 368 : index
    %c0_150 = arith.constant 0 : index
    %450 = vector.load %arg2[%c368_149, %c0_150] : memref<376x128xf32, #tpu.memory_space<vmem>>, vector<8x64xf32>
    %451 = arith.mulf %449, %450 : vector<8x64xf32>
    %c0_151 = arith.constant 0 : index
    %c0_152 = arith.constant 0 : index
    %452 = vector.load %arg5[%c0_151, %c0_152] : memref<64x32xf32, #tpu.memory_space<vmem>>, vector<64x32xf32>
    %cst_153 = arith.constant dense<0.000000e+00> : vector<8x32xf32>
    %453 = tpu.matmul %451, %452, %cst_153 {dimension_numbers = #tpu.dot_dimension_numbers<[1], [0], [0], [1], [0, 0, 1, 1], [], []>} : vector<8x64xf32>, vector<64x32xf32>, vector<8x32xf32> -> vector<8x32xf32>
    %c232_154 = arith.constant 232 : index
    %c0_155 = arith.constant 0 : index
    %454 = vector.load %arg2[%c232_154, %c0_155] : memref<376x128xf32, #tpu.memory_space<vmem>>, vector<32x32xf32>
    %cst_156 = arith.constant dense<0.000000e+00> : vector<8x32xf32>
    %455 = tpu.matmul %453, %454, %cst_156 {dimension_numbers = #tpu.dot_dimension_numbers<[1], [0], [0], [1], [0, 0, 1, 1], [], []>} : vector<8x32xf32>, vector<32x32xf32>, vector<8x32xf32> -> vector<8x32xf32>
    %456 = arith.addf %434, %455 : vector<8x32xf32>
    %cst_157 = arith.constant 0.000000e+00 : f32
    %457 = vector.broadcast %cst_157 : f32 to vector<8x32xf32>
    %458 = arith.maximumf %456, %457 : vector<8x32xf32>
    %c64_158 = arith.constant 64 : index
    %c0_159 = arith.constant 0 : index
    %459 = vector.load %arg2[%c64_158, %c0_159] : memref<376x128xf32, #tpu.memory_space<vmem>>, vector<32x96xf32>
    %cst_160 = arith.constant dense<0.000000e+00> : vector<8x96xf32>
    %460 = tpu.matmul %458, %459, %cst_160 {dimension_numbers = #tpu.dot_dimension_numbers<[1], [0], [0], [1], [0, 0, 1, 1], [], []>} : vector<8x32xf32>, vector<32x96xf32>, vector<8x96xf32> -> vector<8x96xf32>
    %c129_161 = arith.constant 129 : index
    %c0_162 = arith.constant 0 : index
    %461 = vector.load %arg2[%c129_161, %c0_162] : memref<376x128xf32, #tpu.memory_space<vmem>>, vector<1x96xf32>
    %462 = vector.broadcast %461 : vector<1x96xf32> to vector<8x96xf32>
    %463 = arith.addf %460, %462 : vector<8x96xf32>
    %c96_163 = arith.constant 96 : index
    %c0_164 = arith.constant 0 : index
    %464 = vector.load %arg2[%c96_163, %c0_164] : memref<376x128xf32, #tpu.memory_space<vmem>>, vector<32x96xf32>
    %cst_165 = arith.constant dense<0.000000e+00> : vector<8x96xf32>
    %465 = tpu.matmul %431, %464, %cst_165 {dimension_numbers = #tpu.dot_dimension_numbers<[1], [0], [0], [1], [0, 0, 1, 1], [], []>} : vector<8x32xf32>, vector<32x96xf32>, vector<8x96xf32> -> vector<8x96xf32>
    %c130_166 = arith.constant 130 : index
    %c0_167 = arith.constant 0 : index
    %466 = vector.load %arg2[%c130_166, %c0_167] : memref<376x128xf32, #tpu.memory_space<vmem>>, vector<1x96xf32>
    %467 = vector.broadcast %466 : vector<1x96xf32> to vector<8x96xf32>
    %468 = arith.addf %465, %467 : vector<8x96xf32>
    %469 = vector.extract_strided_slice %463 {offsets = [0, 0], sizes = [8, 32], strides = [1, 1]} : vector<8x96xf32> to vector<8x32xf32>
    %470 = vector.extract_strided_slice %468 {offsets = [0, 0], sizes = [8, 32], strides = [1, 1]} : vector<8x96xf32> to vector<8x32xf32>
    %471 = arith.addf %469, %470 : vector<8x32xf32>
    %472 = arith.negf %471 : vector<8x32xf32>
    %473 = math.exp %472 : vector<8x32xf32>
    %cst_168 = arith.constant 1.000000e+00 : f32
    %474 = vector.broadcast %cst_168 : f32 to vector<8x32xf32>
    %475 = arith.addf %474, %473 : vector<8x32xf32>
    %476 = arith.divf %474, %475 : vector<8x32xf32>
    %477 = vector.extract_strided_slice %463 {offsets = [0, 32], sizes = [8, 32], strides = [1, 1]} : vector<8x96xf32> to vector<8x32xf32>
    %478 = vector.extract_strided_slice %468 {offsets = [0, 32], sizes = [8, 32], strides = [1, 1]} : vector<8x96xf32> to vector<8x32xf32>
    %479 = arith.addf %477, %478 : vector<8x32xf32>
    %480 = arith.negf %479 : vector<8x32xf32>
    %481 = math.exp %480 : vector<8x32xf32>
    %cst_169 = arith.constant 1.000000e+00 : f32
    %482 = vector.broadcast %cst_169 : f32 to vector<8x32xf32>
    %483 = arith.addf %482, %481 : vector<8x32xf32>
    %484 = arith.divf %482, %483 : vector<8x32xf32>
    %485 = vector.extract_strided_slice %463 {offsets = [0, 64], sizes = [8, 32], strides = [1, 1]} : vector<8x96xf32> to vector<8x32xf32>
    %486 = vector.extract_strided_slice %468 {offsets = [0, 64], sizes = [8, 32], strides = [1, 1]} : vector<8x96xf32> to vector<8x32xf32>
    %487 = arith.mulf %476, %486 : vector<8x32xf32>
    %488 = arith.addf %485, %487 : vector<8x32xf32>
    %489 = math.tanh %488 : vector<8x32xf32>
    %cst_170 = arith.constant 1.000000e+00 : f32
    %490 = vector.broadcast %cst_170 : f32 to vector<8x32xf32>
    %491 = arith.subf %490, %484 : vector<8x32xf32>
    %492 = arith.mulf %491, %489 : vector<8x32xf32>
    %493 = arith.mulf %484, %431 : vector<8x32xf32>
    %494 = arith.addf %492, %493 : vector<8x32xf32>
    %c8_171 = arith.constant 8 : index
    %c0_172 = arith.constant 0 : index
    %495 = vector.load %arg8[%c8_171, %c0_172] : memref<64x32xf32, #tpu.memory_space<vmem>>, vector<8x32xf32>
    tpu.vector_store %arg8[%c8_171, %c0_172], %494 {strides = array<i32>} : memref<64x32xf32, #tpu.memory_space<vmem>>, vector<8x32xf32>,
    %c16_173 = arith.constant 16 : index
    %c0_174 = arith.constant 0 : index
    %496 = vector.load %arg6[%c16_173, %c0_174] : memref<64x8xf32, #tpu.memory_space<vmem>>, vector<8x8xf32>
    %c16_175 = arith.constant 16 : index
    %c0_176 = arith.constant 0 : index
    %497 = vector.load %arg7[%c16_175, %c0_176] : memref<64x32xf32, #tpu.memory_space<vmem>>, vector<8x32xf32>
    %c168_177 = arith.constant 168 : index
    %c0_178 = arith.constant 0 : index
    %498 = vector.load %arg2[%c168_177, %c0_178] : memref<376x128xf32, #tpu.memory_space<vmem>>, vector<32x8xf32>
    %cst_179 = arith.constant dense<0.000000e+00> : vector<8x8xf32>
    %499 = tpu.matmul %494, %498, %cst_179 {dimension_numbers = #tpu.dot_dimension_numbers<[1], [0], [0], [1], [0, 0, 1, 1], [], []>} : vector<8x32xf32>, vector<32x8xf32>, vector<8x8xf32> -> vector<8x8xf32>
    %500 = arith.addf %496, %499 : vector<8x8xf32>
    %cst_180 = arith.constant dense<0xFF800000> : vector<8xf32>
    %501 = vector.multi_reduction <maximumf>, %500, %cst_180 [1] : vector<8x8xf32> to vector<8xf32>
    %502 = vector.shape_cast %501 : vector<8xf32> to vector<8x1xf32>
    %503 = vector.broadcast %502 : vector<8x1xf32> to vector<8x8xf32>
    %504 = arith.subf %500, %503 : vector<8x8xf32>
    %505 = math.exp %504 : vector<8x8xf32>
    %cst_181 = arith.constant dense<0.000000e+00> : vector<8xf32>
    %506 = vector.multi_reduction <add>, %505, %cst_181 [1] : vector<8x8xf32> to vector<8xf32>
    %507 = vector.shape_cast %506 : vector<8xf32> to vector<8x1xf32>
    %508 = tpu.reciprocal %507 {approx = true} : vector<8x1xf32> -> vector<8x1xf32>
    %509 = vector.broadcast %508 : vector<8x1xf32> to vector<8x8xf32>
    %510 = arith.mulf %505, %509 : vector<8x8xf32>
    %c360_182 = arith.constant 360 : index
    %c0_183 = arith.constant 0 : index
    %511 = vector.load %arg2[%c360_182, %c0_183] : memref<376x128xf32, #tpu.memory_space<vmem>>, vector<8x64xf32>
    %cst_184 = arith.constant dense<0.000000e+00> : vector<8x64xf32>
    %512 = tpu.matmul %510, %511, %cst_184 {dimension_numbers = #tpu.dot_dimension_numbers<[1], [0], [0], [1], [0, 0, 1, 1], [], []>} : vector<8x8xf32>, vector<8x64xf32>, vector<8x64xf32> -> vector<8x64xf32>
    %c368_185 = arith.constant 368 : index
    %c0_186 = arith.constant 0 : index
    %513 = vector.load %arg2[%c368_185, %c0_186] : memref<376x128xf32, #tpu.memory_space<vmem>>, vector<8x64xf32>
    %514 = arith.mulf %512, %513 : vector<8x64xf32>
    %c0_187 = arith.constant 0 : index
    %c0_188 = arith.constant 0 : index
    %515 = vector.load %arg5[%c0_187, %c0_188] : memref<64x32xf32, #tpu.memory_space<vmem>>, vector<64x32xf32>
    %cst_189 = arith.constant dense<0.000000e+00> : vector<8x32xf32>
    %516 = tpu.matmul %514, %515, %cst_189 {dimension_numbers = #tpu.dot_dimension_numbers<[1], [0], [0], [1], [0, 0, 1, 1], [], []>} : vector<8x64xf32>, vector<64x32xf32>, vector<8x32xf32> -> vector<8x32xf32>
    %c232_190 = arith.constant 232 : index
    %c0_191 = arith.constant 0 : index
    %517 = vector.load %arg2[%c232_190, %c0_191] : memref<376x128xf32, #tpu.memory_space<vmem>>, vector<32x32xf32>
    %cst_192 = arith.constant dense<0.000000e+00> : vector<8x32xf32>
    %518 = tpu.matmul %516, %517, %cst_192 {dimension_numbers = #tpu.dot_dimension_numbers<[1], [0], [0], [1], [0, 0, 1, 1], [], []>} : vector<8x32xf32>, vector<32x32xf32>, vector<8x32xf32> -> vector<8x32xf32>
    %519 = arith.addf %497, %518 : vector<8x32xf32>
    %cst_193 = arith.constant 0.000000e+00 : f32
    %520 = vector.broadcast %cst_193 : f32 to vector<8x32xf32>
    %521 = arith.maximumf %519, %520 : vector<8x32xf32>
    %c64_194 = arith.constant 64 : index
    %c0_195 = arith.constant 0 : index
    %522 = vector.load %arg2[%c64_194, %c0_195] : memref<376x128xf32, #tpu.memory_space<vmem>>, vector<32x96xf32>
    %cst_196 = arith.constant dense<0.000000e+00> : vector<8x96xf32>
    %523 = tpu.matmul %521, %522, %cst_196 {dimension_numbers = #tpu.dot_dimension_numbers<[1], [0], [0], [1], [0, 0, 1, 1], [], []>} : vector<8x32xf32>, vector<32x96xf32>, vector<8x96xf32> -> vector<8x96xf32>
    %c129_197 = arith.constant 129 : index
    %c0_198 = arith.constant 0 : index
    %524 = vector.load %arg2[%c129_197, %c0_198] : memref<376x128xf32, #tpu.memory_space<vmem>>, vector<1x96xf32>
    %525 = vector.broadcast %524 : vector<1x96xf32> to vector<8x96xf32>
    %526 = arith.addf %523, %525 : vector<8x96xf32>
    %c96_199 = arith.constant 96 : index
    %c0_200 = arith.constant 0 : index
    %527 = vector.load %arg2[%c96_199, %c0_200] : memref<376x128xf32, #tpu.memory_space<vmem>>, vector<32x96xf32>
    %cst_201 = arith.constant dense<0.000000e+00> : vector<8x96xf32>
    %528 = tpu.matmul %494, %527, %cst_201 {dimension_numbers = #tpu.dot_dimension_numbers<[1], [0], [0], [1], [0, 0, 1, 1], [], []>} : vector<8x32xf32>, vector<32x96xf32>, vector<8x96xf32> -> vector<8x96xf32>
    %c130_202 = arith.constant 130 : index
    %c0_203 = arith.constant 0 : index
    %529 = vector.load %arg2[%c130_202, %c0_203] : memref<376x128xf32, #tpu.memory_space<vmem>>, vector<1x96xf32>
    %530 = vector.broadcast %529 : vector<1x96xf32> to vector<8x96xf32>
    %531 = arith.addf %528, %530 : vector<8x96xf32>
    %532 = vector.extract_strided_slice %526 {offsets = [0, 0], sizes = [8, 32], strides = [1, 1]} : vector<8x96xf32> to vector<8x32xf32>
    %533 = vector.extract_strided_slice %531 {offsets = [0, 0], sizes = [8, 32], strides = [1, 1]} : vector<8x96xf32> to vector<8x32xf32>
    %534 = arith.addf %532, %533 : vector<8x32xf32>
    %535 = arith.negf %534 : vector<8x32xf32>
    %536 = math.exp %535 : vector<8x32xf32>
    %cst_204 = arith.constant 1.000000e+00 : f32
    %537 = vector.broadcast %cst_204 : f32 to vector<8x32xf32>
    %538 = arith.addf %537, %536 : vector<8x32xf32>
    %539 = arith.divf %537, %538 : vector<8x32xf32>
    %540 = vector.extract_strided_slice %526 {offsets = [0, 32], sizes = [8, 32], strides = [1, 1]} : vector<8x96xf32> to vector<8x32xf32>
    %541 = vector.extract_strided_slice %531 {offsets = [0, 32], sizes = [8, 32], strides = [1, 1]} : vector<8x96xf32> to vector<8x32xf32>
    %542 = arith.addf %540, %541 : vector<8x32xf32>
    %543 = arith.negf %542 : vector<8x32xf32>
    %544 = math.exp %543 : vector<8x32xf32>
    %cst_205 = arith.constant 1.000000e+00 : f32
    %545 = vector.broadcast %cst_205 : f32 to vector<8x32xf32>
    %546 = arith.addf %545, %544 : vector<8x32xf32>
    %547 = arith.divf %545, %546 : vector<8x32xf32>
    %548 = vector.extract_strided_slice %526 {offsets = [0, 64], sizes = [8, 32], strides = [1, 1]} : vector<8x96xf32> to vector<8x32xf32>
    %549 = vector.extract_strided_slice %531 {offsets = [0, 64], sizes = [8, 32], strides = [1, 1]} : vector<8x96xf32> to vector<8x32xf32>
    %550 = arith.mulf %539, %549 : vector<8x32xf32>
    %551 = arith.addf %548, %550 : vector<8x32xf32>
    %552 = math.tanh %551 : vector<8x32xf32>
    %cst_206 = arith.constant 1.000000e+00 : f32
    %553 = vector.broadcast %cst_206 : f32 to vector<8x32xf32>
    %554 = arith.subf %553, %547 : vector<8x32xf32>
    %555 = arith.mulf %554, %552 : vector<8x32xf32>
    %556 = arith.mulf %547, %494 : vector<8x32xf32>
    %557 = arith.addf %555, %556 : vector<8x32xf32>
    %c16_207 = arith.constant 16 : index
    %c0_208 = arith.constant 0 : index
    %558 = vector.load %arg8[%c16_207, %c0_208] : memref<64x32xf32, #tpu.memory_space<vmem>>, vector<8x32xf32>
    tpu.vector_store %arg8[%c16_207, %c0_208], %557 {strides = array<i32>} : memref<64x32xf32, #tpu.memory_space<vmem>>, vector<8x32xf32>,
    %c24_209 = arith.constant 24 : index
    %c0_210 = arith.constant 0 : index
    %559 = vector.load %arg6[%c24_209, %c0_210] : memref<64x8xf32, #tpu.memory_space<vmem>>, vector<8x8xf32>
    %c24_211 = arith.constant 24 : index
    %c0_212 = arith.constant 0 : index
    %560 = vector.load %arg7[%c24_211, %c0_212] : memref<64x32xf32, #tpu.memory_space<vmem>>, vector<8x32xf32>
    %c168_213 = arith.constant 168 : index
    %c0_214 = arith.constant 0 : index
    %561 = vector.load %arg2[%c168_213, %c0_214] : memref<376x128xf32, #tpu.memory_space<vmem>>, vector<32x8xf32>
    %cst_215 = arith.constant dense<0.000000e+00> : vector<8x8xf32>
    %562 = tpu.matmul %557, %561, %cst_215 {dimension_numbers = #tpu.dot_dimension_numbers<[1], [0], [0], [1], [0, 0, 1, 1], [], []>} : vector<8x32xf32>, vector<32x8xf32>, vector<8x8xf32> -> vector<8x8xf32>
    %563 = arith.addf %559, %562 : vector<8x8xf32>
    %cst_216 = arith.constant dense<0xFF800000> : vector<8xf32>
    %564 = vector.multi_reduction <maximumf>, %563, %cst_216 [1] : vector<8x8xf32> to vector<8xf32>
    %565 = vector.shape_cast %564 : vector<8xf32> to vector<8x1xf32>
    %566 = vector.broadcast %565 : vector<8x1xf32> to vector<8x8xf32>
    %567 = arith.subf %563, %566 : vector<8x8xf32>
    %568 = math.exp %567 : vector<8x8xf32>
    %cst_217 = arith.constant dense<0.000000e+00> : vector<8xf32>
    %569 = vector.multi_reduction <add>, %568, %cst_217 [1] : vector<8x8xf32> to vector<8xf32>
    %570 = vector.shape_cast %569 : vector<8xf32> to vector<8x1xf32>
    %571 = tpu.reciprocal %570 {approx = true} : vector<8x1xf32> -> vector<8x1xf32>
    %572 = vector.broadcast %571 : vector<8x1xf32> to vector<8x8xf32>
    %573 = arith.mulf %568, %572 : vector<8x8xf32>
    %c360_218 = arith.constant 360 : index
    %c0_219 = arith.constant 0 : index
    %574 = vector.load %arg2[%c360_218, %c0_219] : memref<376x128xf32, #tpu.memory_space<vmem>>, vector<8x64xf32>
    %cst_220 = arith.constant dense<0.000000e+00> : vector<8x64xf32>
    %575 = tpu.matmul %573, %574, %cst_220 {dimension_numbers = #tpu.dot_dimension_numbers<[1], [0], [0], [1], [0, 0, 1, 1], [], []>} : vector<8x8xf32>, vector<8x64xf32>, vector<8x64xf32> -> vector<8x64xf32>
    %c368_221 = arith.constant 368 : index
    %c0_222 = arith.constant 0 : index
    %576 = vector.load %arg2[%c368_221, %c0_222] : memref<376x128xf32, #tpu.memory_space<vmem>>, vector<8x64xf32>
    %577 = arith.mulf %575, %576 : vector<8x64xf32>
    %c0_223 = arith.constant 0 : index
    %c0_224 = arith.constant 0 : index
    %578 = vector.load %arg5[%c0_223, %c0_224] : memref<64x32xf32, #tpu.memory_space<vmem>>, vector<64x32xf32>
    %cst_225 = arith.constant dense<0.000000e+00> : vector<8x32xf32>
    %579 = tpu.matmul %577, %578, %cst_225 {dimension_numbers = #tpu.dot_dimension_numbers<[1], [0], [0], [1], [0, 0, 1, 1], [], []>} : vector<8x64xf32>, vector<64x32xf32>, vector<8x32xf32> -> vector<8x32xf32>
    %c232_226 = arith.constant 232 : index
    %c0_227 = arith.constant 0 : index
    %580 = vector.load %arg2[%c232_226, %c0_227] : memref<376x128xf32, #tpu.memory_space<vmem>>, vector<32x32xf32>
    %cst_228 = arith.constant dense<0.000000e+00> : vector<8x32xf32>
    %581 = tpu.matmul %579, %580, %cst_228 {dimension_numbers = #tpu.dot_dimension_numbers<[1], [0], [0], [1], [0, 0, 1, 1], [], []>} : vector<8x32xf32>, vector<32x32xf32>, vector<8x32xf32> -> vector<8x32xf32>
    %582 = arith.addf %560, %581 : vector<8x32xf32>
    %cst_229 = arith.constant 0.000000e+00 : f32
    %583 = vector.broadcast %cst_229 : f32 to vector<8x32xf32>
    %584 = arith.maximumf %582, %583 : vector<8x32xf32>
    %c64_230 = arith.constant 64 : index
    %c0_231 = arith.constant 0 : index
    %585 = vector.load %arg2[%c64_230, %c0_231] : memref<376x128xf32, #tpu.memory_space<vmem>>, vector<32x96xf32>
    %cst_232 = arith.constant dense<0.000000e+00> : vector<8x96xf32>
    %586 = tpu.matmul %584, %585, %cst_232 {dimension_numbers = #tpu.dot_dimension_numbers<[1], [0], [0], [1], [0, 0, 1, 1], [], []>} : vector<8x32xf32>, vector<32x96xf32>, vector<8x96xf32> -> vector<8x96xf32>
    %c129_233 = arith.constant 129 : index
    %c0_234 = arith.constant 0 : index
    %587 = vector.load %arg2[%c129_233, %c0_234] : memref<376x128xf32, #tpu.memory_space<vmem>>, vector<1x96xf32>
    %588 = vector.broadcast %587 : vector<1x96xf32> to vector<8x96xf32>
    %589 = arith.addf %586, %588 : vector<8x96xf32>
    %c96_235 = arith.constant 96 : index
    %c0_236 = arith.constant 0 : index
    %590 = vector.load %arg2[%c96_235, %c0_236] : memref<376x128xf32, #tpu.memory_space<vmem>>, vector<32x96xf32>
    %cst_237 = arith.constant dense<0.000000e+00> : vector<8x96xf32>
    %591 = tpu.matmul %557, %590, %cst_237 {dimension_numbers = #tpu.dot_dimension_numbers<[1], [0], [0], [1], [0, 0, 1, 1], [], []>} : vector<8x32xf32>, vector<32x96xf32>, vector<8x96xf32> -> vector<8x96xf32>
    %c130_238 = arith.constant 130 : index
    %c0_239 = arith.constant 0 : index
    %592 = vector.load %arg2[%c130_238, %c0_239] : memref<376x128xf32, #tpu.memory_space<vmem>>, vector<1x96xf32>
    %593 = vector.broadcast %592 : vector<1x96xf32> to vector<8x96xf32>
    %594 = arith.addf %591, %593 : vector<8x96xf32>
    %595 = vector.extract_strided_slice %589 {offsets = [0, 0], sizes = [8, 32], strides = [1, 1]} : vector<8x96xf32> to vector<8x32xf32>
    %596 = vector.extract_strided_slice %594 {offsets = [0, 0], sizes = [8, 32], strides = [1, 1]} : vector<8x96xf32> to vector<8x32xf32>
    %597 = arith.addf %595, %596 : vector<8x32xf32>
    %598 = arith.negf %597 : vector<8x32xf32>
    %599 = math.exp %598 : vector<8x32xf32>
    %cst_240 = arith.constant 1.000000e+00 : f32
    %600 = vector.broadcast %cst_240 : f32 to vector<8x32xf32>
    %601 = arith.addf %600, %599 : vector<8x32xf32>
    %602 = arith.divf %600, %601 : vector<8x32xf32>
    %603 = vector.extract_strided_slice %589 {offsets = [0, 32], sizes = [8, 32], strides = [1, 1]} : vector<8x96xf32> to vector<8x32xf32>
    %604 = vector.extract_strided_slice %594 {offsets = [0, 32], sizes = [8, 32], strides = [1, 1]} : vector<8x96xf32> to vector<8x32xf32>
    %605 = arith.addf %603, %604 : vector<8x32xf32>
    %606 = arith.negf %605 : vector<8x32xf32>
    %607 = math.exp %606 : vector<8x32xf32>
    %cst_241 = arith.constant 1.000000e+00 : f32
    %608 = vector.broadcast %cst_241 : f32 to vector<8x32xf32>
    %609 = arith.addf %608, %607 : vector<8x32xf32>
    %610 = arith.divf %608, %609 : vector<8x32xf32>
    %611 = vector.extract_strided_slice %589 {offsets = [0, 64], sizes = [8, 32], strides = [1, 1]} : vector<8x96xf32> to vector<8x32xf32>
    %612 = vector.extract_strided_slice %594 {offsets = [0, 64], sizes = [8, 32], strides = [1, 1]} : vector<8x96xf32> to vector<8x32xf32>
    %613 = arith.mulf %602, %612 : vector<8x32xf32>
    %614 = arith.addf %611, %613 : vector<8x32xf32>
    %615 = math.tanh %614 : vector<8x32xf32>
    %cst_242 = arith.constant 1.000000e+00 : f32
    %616 = vector.broadcast %cst_242 : f32 to vector<8x32xf32>
    %617 = arith.subf %616, %610 : vector<8x32xf32>
    %618 = arith.mulf %617, %615 : vector<8x32xf32>
    %619 = arith.mulf %610, %557 : vector<8x32xf32>
    %620 = arith.addf %618, %619 : vector<8x32xf32>
    %c24_243 = arith.constant 24 : index
    %c0_244 = arith.constant 0 : index
    %621 = vector.load %arg8[%c24_243, %c0_244] : memref<64x32xf32, #tpu.memory_space<vmem>>, vector<8x32xf32>
    tpu.vector_store %arg8[%c24_243, %c0_244], %620 {strides = array<i32>} : memref<64x32xf32, #tpu.memory_space<vmem>>, vector<8x32xf32>,
    %c32_245 = arith.constant 32 : index
    %c0_246 = arith.constant 0 : index
    %622 = vector.load %arg6[%c32_245, %c0_246] : memref<64x8xf32, #tpu.memory_space<vmem>>, vector<8x8xf32>
    %c32_247 = arith.constant 32 : index
    %c0_248 = arith.constant 0 : index
    %623 = vector.load %arg7[%c32_247, %c0_248] : memref<64x32xf32, #tpu.memory_space<vmem>>, vector<8x32xf32>
    %c168_249 = arith.constant 168 : index
    %c0_250 = arith.constant 0 : index
    %624 = vector.load %arg2[%c168_249, %c0_250] : memref<376x128xf32, #tpu.memory_space<vmem>>, vector<32x8xf32>
    %cst_251 = arith.constant dense<0.000000e+00> : vector<8x8xf32>
    %625 = tpu.matmul %620, %624, %cst_251 {dimension_numbers = #tpu.dot_dimension_numbers<[1], [0], [0], [1], [0, 0, 1, 1], [], []>} : vector<8x32xf32>, vector<32x8xf32>, vector<8x8xf32> -> vector<8x8xf32>
    %626 = arith.addf %622, %625 : vector<8x8xf32>
    %cst_252 = arith.constant dense<0xFF800000> : vector<8xf32>
    %627 = vector.multi_reduction <maximumf>, %626, %cst_252 [1] : vector<8x8xf32> to vector<8xf32>
    %628 = vector.shape_cast %627 : vector<8xf32> to vector<8x1xf32>
    %629 = vector.broadcast %628 : vector<8x1xf32> to vector<8x8xf32>
    %630 = arith.subf %626, %629 : vector<8x8xf32>
    %631 = math.exp %630 : vector<8x8xf32>
    %cst_253 = arith.constant dense<0.000000e+00> : vector<8xf32>
    %632 = vector.multi_reduction <add>, %631, %cst_253 [1] : vector<8x8xf32> to vector<8xf32>
    %633 = vector.shape_cast %632 : vector<8xf32> to vector<8x1xf32>
    %634 = tpu.reciprocal %633 {approx = true} : vector<8x1xf32> -> vector<8x1xf32>
    %635 = vector.broadcast %634 : vector<8x1xf32> to vector<8x8xf32>
    %636 = arith.mulf %631, %635 : vector<8x8xf32>
    %c360_254 = arith.constant 360 : index
    %c0_255 = arith.constant 0 : index
    %637 = vector.load %arg2[%c360_254, %c0_255] : memref<376x128xf32, #tpu.memory_space<vmem>>, vector<8x64xf32>
    %cst_256 = arith.constant dense<0.000000e+00> : vector<8x64xf32>
    %638 = tpu.matmul %636, %637, %cst_256 {dimension_numbers = #tpu.dot_dimension_numbers<[1], [0], [0], [1], [0, 0, 1, 1], [], []>} : vector<8x8xf32>, vector<8x64xf32>, vector<8x64xf32> -> vector<8x64xf32>
    %c368_257 = arith.constant 368 : index
    %c0_258 = arith.constant 0 : index
    %639 = vector.load %arg2[%c368_257, %c0_258] : memref<376x128xf32, #tpu.memory_space<vmem>>, vector<8x64xf32>
    %640 = arith.mulf %638, %639 : vector<8x64xf32>
    %c0_259 = arith.constant 0 : index
    %c0_260 = arith.constant 0 : index
    %641 = vector.load %arg5[%c0_259, %c0_260] : memref<64x32xf32, #tpu.memory_space<vmem>>, vector<64x32xf32>
    %cst_261 = arith.constant dense<0.000000e+00> : vector<8x32xf32>
    %642 = tpu.matmul %640, %641, %cst_261 {dimension_numbers = #tpu.dot_dimension_numbers<[1], [0], [0], [1], [0, 0, 1, 1], [], []>} : vector<8x64xf32>, vector<64x32xf32>, vector<8x32xf32> -> vector<8x32xf32>
    %c232_262 = arith.constant 232 : index
    %c0_263 = arith.constant 0 : index
    %643 = vector.load %arg2[%c232_262, %c0_263] : memref<376x128xf32, #tpu.memory_space<vmem>>, vector<32x32xf32>
    %cst_264 = arith.constant dense<0.000000e+00> : vector<8x32xf32>
    %644 = tpu.matmul %642, %643, %cst_264 {dimension_numbers = #tpu.dot_dimension_numbers<[1], [0], [0], [1], [0, 0, 1, 1], [], []>} : vector<8x32xf32>, vector<32x32xf32>, vector<8x32xf32> -> vector<8x32xf32>
    %645 = arith.addf %623, %644 : vector<8x32xf32>
    %cst_265 = arith.constant 0.000000e+00 : f32
    %646 = vector.broadcast %cst_265 : f32 to vector<8x32xf32>
    %647 = arith.maximumf %645, %646 : vector<8x32xf32>
    %c64_266 = arith.constant 64 : index
    %c0_267 = arith.constant 0 : index
    %648 = vector.load %arg2[%c64_266, %c0_267] : memref<376x128xf32, #tpu.memory_space<vmem>>, vector<32x96xf32>
    %cst_268 = arith.constant dense<0.000000e+00> : vector<8x96xf32>
    %649 = tpu.matmul %647, %648, %cst_268 {dimension_numbers = #tpu.dot_dimension_numbers<[1], [0], [0], [1], [0, 0, 1, 1], [], []>} : vector<8x32xf32>, vector<32x96xf32>, vector<8x96xf32> -> vector<8x96xf32>
    %c129_269 = arith.constant 129 : index
    %c0_270 = arith.constant 0 : index
    %650 = vector.load %arg2[%c129_269, %c0_270] : memref<376x128xf32, #tpu.memory_space<vmem>>, vector<1x96xf32>
    %651 = vector.broadcast %650 : vector<1x96xf32> to vector<8x96xf32>
    %652 = arith.addf %649, %651 : vector<8x96xf32>
    %c96_271 = arith.constant 96 : index
    %c0_272 = arith.constant 0 : index
    %653 = vector.load %arg2[%c96_271, %c0_272] : memref<376x128xf32, #tpu.memory_space<vmem>>, vector<32x96xf32>
    %cst_273 = arith.constant dense<0.000000e+00> : vector<8x96xf32>
    %654 = tpu.matmul %620, %653, %cst_273 {dimension_numbers = #tpu.dot_dimension_numbers<[1], [0], [0], [1], [0, 0, 1, 1], [], []>} : vector<8x32xf32>, vector<32x96xf32>, vector<8x96xf32> -> vector<8x96xf32>
    %c130_274 = arith.constant 130 : index
    %c0_275 = arith.constant 0 : index
    %655 = vector.load %arg2[%c130_274, %c0_275] : memref<376x128xf32, #tpu.memory_space<vmem>>, vector<1x96xf32>
    %656 = vector.broadcast %655 : vector<1x96xf32> to vector<8x96xf32>
    %657 = arith.addf %654, %656 : vector<8x96xf32>
    %658 = vector.extract_strided_slice %652 {offsets = [0, 0], sizes = [8, 32], strides = [1, 1]} : vector<8x96xf32> to vector<8x32xf32>
    %659 = vector.extract_strided_slice %657 {offsets = [0, 0], sizes = [8, 32], strides = [1, 1]} : vector<8x96xf32> to vector<8x32xf32>
    %660 = arith.addf %658, %659 : vector<8x32xf32>
    %661 = arith.negf %660 : vector<8x32xf32>
    %662 = math.exp %661 : vector<8x32xf32>
    %cst_276 = arith.constant 1.000000e+00 : f32
    %663 = vector.broadcast %cst_276 : f32 to vector<8x32xf32>
    %664 = arith.addf %663, %662 : vector<8x32xf32>
    %665 = arith.divf %663, %664 : vector<8x32xf32>
    %666 = vector.extract_strided_slice %652 {offsets = [0, 32], sizes = [8, 32], strides = [1, 1]} : vector<8x96xf32> to vector<8x32xf32>
    %667 = vector.extract_strided_slice %657 {offsets = [0, 32], sizes = [8, 32], strides = [1, 1]} : vector<8x96xf32> to vector<8x32xf32>
    %668 = arith.addf %666, %667 : vector<8x32xf32>
    %669 = arith.negf %668 : vector<8x32xf32>
    %670 = math.exp %669 : vector<8x32xf32>
    %cst_277 = arith.constant 1.000000e+00 : f32
    %671 = vector.broadcast %cst_277 : f32 to vector<8x32xf32>
    %672 = arith.addf %671, %670 : vector<8x32xf32>
    %673 = arith.divf %671, %672 : vector<8x32xf32>
    %674 = vector.extract_strided_slice %652 {offsets = [0, 64], sizes = [8, 32], strides = [1, 1]} : vector<8x96xf32> to vector<8x32xf32>
    %675 = vector.extract_strided_slice %657 {offsets = [0, 64], sizes = [8, 32], strides = [1, 1]} : vector<8x96xf32> to vector<8x32xf32>
    %676 = arith.mulf %665, %675 : vector<8x32xf32>
    %677 = arith.addf %674, %676 : vector<8x32xf32>
    %678 = math.tanh %677 : vector<8x32xf32>
    %cst_278 = arith.constant 1.000000e+00 : f32
    %679 = vector.broadcast %cst_278 : f32 to vector<8x32xf32>
    %680 = arith.subf %679, %673 : vector<8x32xf32>
    %681 = arith.mulf %680, %678 : vector<8x32xf32>
    %682 = arith.mulf %673, %620 : vector<8x32xf32>
    %683 = arith.addf %681, %682 : vector<8x32xf32>
    %c32_279 = arith.constant 32 : index
    %c0_280 = arith.constant 0 : index
    %684 = vector.load %arg8[%c32_279, %c0_280] : memref<64x32xf32, #tpu.memory_space<vmem>>, vector<8x32xf32>
    tpu.vector_store %arg8[%c32_279, %c0_280], %683 {strides = array<i32>} : memref<64x32xf32, #tpu.memory_space<vmem>>, vector<8x32xf32>,
    %c40_281 = arith.constant 40 : index
    %c0_282 = arith.constant 0 : index
    %685 = vector.load %arg6[%c40_281, %c0_282] : memref<64x8xf32, #tpu.memory_space<vmem>>, vector<8x8xf32>
    %c40_283 = arith.constant 40 : index
    %c0_284 = arith.constant 0 : index
    %686 = vector.load %arg7[%c40_283, %c0_284] : memref<64x32xf32, #tpu.memory_space<vmem>>, vector<8x32xf32>
    %c168_285 = arith.constant 168 : index
    %c0_286 = arith.constant 0 : index
    %687 = vector.load %arg2[%c168_285, %c0_286] : memref<376x128xf32, #tpu.memory_space<vmem>>, vector<32x8xf32>
    %cst_287 = arith.constant dense<0.000000e+00> : vector<8x8xf32>
    %688 = tpu.matmul %683, %687, %cst_287 {dimension_numbers = #tpu.dot_dimension_numbers<[1], [0], [0], [1], [0, 0, 1, 1], [], []>} : vector<8x32xf32>, vector<32x8xf32>, vector<8x8xf32> -> vector<8x8xf32>
    %689 = arith.addf %685, %688 : vector<8x8xf32>
    %cst_288 = arith.constant dense<0xFF800000> : vector<8xf32>
    %690 = vector.multi_reduction <maximumf>, %689, %cst_288 [1] : vector<8x8xf32> to vector<8xf32>
    %691 = vector.shape_cast %690 : vector<8xf32> to vector<8x1xf32>
    %692 = vector.broadcast %691 : vector<8x1xf32> to vector<8x8xf32>
    %693 = arith.subf %689, %692 : vector<8x8xf32>
    %694 = math.exp %693 : vector<8x8xf32>
    %cst_289 = arith.constant dense<0.000000e+00> : vector<8xf32>
    %695 = vector.multi_reduction <add>, %694, %cst_289 [1] : vector<8x8xf32> to vector<8xf32>
    %696 = vector.shape_cast %695 : vector<8xf32> to vector<8x1xf32>
    %697 = tpu.reciprocal %696 {approx = true} : vector<8x1xf32> -> vector<8x1xf32>
    %698 = vector.broadcast %697 : vector<8x1xf32> to vector<8x8xf32>
    %699 = arith.mulf %694, %698 : vector<8x8xf32>
    %c360_290 = arith.constant 360 : index
    %c0_291 = arith.constant 0 : index
    %700 = vector.load %arg2[%c360_290, %c0_291] : memref<376x128xf32, #tpu.memory_space<vmem>>, vector<8x64xf32>
    %cst_292 = arith.constant dense<0.000000e+00> : vector<8x64xf32>
    %701 = tpu.matmul %699, %700, %cst_292 {dimension_numbers = #tpu.dot_dimension_numbers<[1], [0], [0], [1], [0, 0, 1, 1], [], []>} : vector<8x8xf32>, vector<8x64xf32>, vector<8x64xf32> -> vector<8x64xf32>
    %c368_293 = arith.constant 368 : index
    %c0_294 = arith.constant 0 : index
    %702 = vector.load %arg2[%c368_293, %c0_294] : memref<376x128xf32, #tpu.memory_space<vmem>>, vector<8x64xf32>
    %703 = arith.mulf %701, %702 : vector<8x64xf32>
    %c0_295 = arith.constant 0 : index
    %c0_296 = arith.constant 0 : index
    %704 = vector.load %arg5[%c0_295, %c0_296] : memref<64x32xf32, #tpu.memory_space<vmem>>, vector<64x32xf32>
    %cst_297 = arith.constant dense<0.000000e+00> : vector<8x32xf32>
    %705 = tpu.matmul %703, %704, %cst_297 {dimension_numbers = #tpu.dot_dimension_numbers<[1], [0], [0], [1], [0, 0, 1, 1], [], []>} : vector<8x64xf32>, vector<64x32xf32>, vector<8x32xf32> -> vector<8x32xf32>
    %c232_298 = arith.constant 232 : index
    %c0_299 = arith.constant 0 : index
    %706 = vector.load %arg2[%c232_298, %c0_299] : memref<376x128xf32, #tpu.memory_space<vmem>>, vector<32x32xf32>
    %cst_300 = arith.constant dense<0.000000e+00> : vector<8x32xf32>
    %707 = tpu.matmul %705, %706, %cst_300 {dimension_numbers = #tpu.dot_dimension_numbers<[1], [0], [0], [1], [0, 0, 1, 1], [], []>} : vector<8x32xf32>, vector<32x32xf32>, vector<8x32xf32> -> vector<8x32xf32>
    %708 = arith.addf %686, %707 : vector<8x32xf32>
    %cst_301 = arith.constant 0.000000e+00 : f32
    %709 = vector.broadcast %cst_301 : f32 to vector<8x32xf32>
    %710 = arith.maximumf %708, %709 : vector<8x32xf32>
    %c64_302 = arith.constant 64 : index
    %c0_303 = arith.constant 0 : index
    %711 = vector.load %arg2[%c64_302, %c0_303] : memref<376x128xf32, #tpu.memory_space<vmem>>, vector<32x96xf32>
    %cst_304 = arith.constant dense<0.000000e+00> : vector<8x96xf32>
    %712 = tpu.matmul %710, %711, %cst_304 {dimension_numbers = #tpu.dot_dimension_numbers<[1], [0], [0], [1], [0, 0, 1, 1], [], []>} : vector<8x32xf32>, vector<32x96xf32>, vector<8x96xf32> -> vector<8x96xf32>
    %c129_305 = arith.constant 129 : index
    %c0_306 = arith.constant 0 : index
    %713 = vector.load %arg2[%c129_305, %c0_306] : memref<376x128xf32, #tpu.memory_space<vmem>>, vector<1x96xf32>
    %714 = vector.broadcast %713 : vector<1x96xf32> to vector<8x96xf32>
    %715 = arith.addf %712, %714 : vector<8x96xf32>
    %c96_307 = arith.constant 96 : index
    %c0_308 = arith.constant 0 : index
    %716 = vector.load %arg2[%c96_307, %c0_308] : memref<376x128xf32, #tpu.memory_space<vmem>>, vector<32x96xf32>
    %cst_309 = arith.constant dense<0.000000e+00> : vector<8x96xf32>
    %717 = tpu.matmul %683, %716, %cst_309 {dimension_numbers = #tpu.dot_dimension_numbers<[1], [0], [0], [1], [0, 0, 1, 1], [], []>} : vector<8x32xf32>, vector<32x96xf32>, vector<8x96xf32> -> vector<8x96xf32>
    %c130_310 = arith.constant 130 : index
    %c0_311 = arith.constant 0 : index
    %718 = vector.load %arg2[%c130_310, %c0_311] : memref<376x128xf32, #tpu.memory_space<vmem>>, vector<1x96xf32>
    %719 = vector.broadcast %718 : vector<1x96xf32> to vector<8x96xf32>
    %720 = arith.addf %717, %719 : vector<8x96xf32>
    %721 = vector.extract_strided_slice %715 {offsets = [0, 0], sizes = [8, 32], strides = [1, 1]} : vector<8x96xf32> to vector<8x32xf32>
    %722 = vector.extract_strided_slice %720 {offsets = [0, 0], sizes = [8, 32], strides = [1, 1]} : vector<8x96xf32> to vector<8x32xf32>
    %723 = arith.addf %721, %722 : vector<8x32xf32>
    %724 = arith.negf %723 : vector<8x32xf32>
    %725 = math.exp %724 : vector<8x32xf32>
    %cst_312 = arith.constant 1.000000e+00 : f32
    %726 = vector.broadcast %cst_312 : f32 to vector<8x32xf32>
    %727 = arith.addf %726, %725 : vector<8x32xf32>
    %728 = arith.divf %726, %727 : vector<8x32xf32>
    %729 = vector.extract_strided_slice %715 {offsets = [0, 32], sizes = [8, 32], strides = [1, 1]} : vector<8x96xf32> to vector<8x32xf32>
    %730 = vector.extract_strided_slice %720 {offsets = [0, 32], sizes = [8, 32], strides = [1, 1]} : vector<8x96xf32> to vector<8x32xf32>
    %731 = arith.addf %729, %730 : vector<8x32xf32>
    %732 = arith.negf %731 : vector<8x32xf32>
    %733 = math.exp %732 : vector<8x32xf32>
    %cst_313 = arith.constant 1.000000e+00 : f32
    %734 = vector.broadcast %cst_313 : f32 to vector<8x32xf32>
    %735 = arith.addf %734, %733 : vector<8x32xf32>
    %736 = arith.divf %734, %735 : vector<8x32xf32>
    %737 = vector.extract_strided_slice %715 {offsets = [0, 64], sizes = [8, 32], strides = [1, 1]} : vector<8x96xf32> to vector<8x32xf32>
    %738 = vector.extract_strided_slice %720 {offsets = [0, 64], sizes = [8, 32], strides = [1, 1]} : vector<8x96xf32> to vector<8x32xf32>
    %739 = arith.mulf %728, %738 : vector<8x32xf32>
    %740 = arith.addf %737, %739 : vector<8x32xf32>
    %741 = math.tanh %740 : vector<8x32xf32>
    %cst_314 = arith.constant 1.000000e+00 : f32
    %742 = vector.broadcast %cst_314 : f32 to vector<8x32xf32>
    %743 = arith.subf %742, %736 : vector<8x32xf32>
    %744 = arith.mulf %743, %741 : vector<8x32xf32>
    %745 = arith.mulf %736, %683 : vector<8x32xf32>
    %746 = arith.addf %744, %745 : vector<8x32xf32>
    %c40_315 = arith.constant 40 : index
    %c0_316 = arith.constant 0 : index
    %747 = vector.load %arg8[%c40_315, %c0_316] : memref<64x32xf32, #tpu.memory_space<vmem>>, vector<8x32xf32>
    tpu.vector_store %arg8[%c40_315, %c0_316], %746 {strides = array<i32>} : memref<64x32xf32, #tpu.memory_space<vmem>>, vector<8x32xf32>,
    %c48_317 = arith.constant 48 : index
    %c0_318 = arith.constant 0 : index
    %748 = vector.load %arg6[%c48_317, %c0_318] : memref<64x8xf32, #tpu.memory_space<vmem>>, vector<8x8xf32>
    %c48_319 = arith.constant 48 : index
    %c0_320 = arith.constant 0 : index
    %749 = vector.load %arg7[%c48_319, %c0_320] : memref<64x32xf32, #tpu.memory_space<vmem>>, vector<8x32xf32>
    %c168_321 = arith.constant 168 : index
    %c0_322 = arith.constant 0 : index
    %750 = vector.load %arg2[%c168_321, %c0_322] : memref<376x128xf32, #tpu.memory_space<vmem>>, vector<32x8xf32>
    %cst_323 = arith.constant dense<0.000000e+00> : vector<8x8xf32>
    %751 = tpu.matmul %746, %750, %cst_323 {dimension_numbers = #tpu.dot_dimension_numbers<[1], [0], [0], [1], [0, 0, 1, 1], [], []>} : vector<8x32xf32>, vector<32x8xf32>, vector<8x8xf32> -> vector<8x8xf32>
    %752 = arith.addf %748, %751 : vector<8x8xf32>
    %cst_324 = arith.constant dense<0xFF800000> : vector<8xf32>
    %753 = vector.multi_reduction <maximumf>, %752, %cst_324 [1] : vector<8x8xf32> to vector<8xf32>
    %754 = vector.shape_cast %753 : vector<8xf32> to vector<8x1xf32>
    %755 = vector.broadcast %754 : vector<8x1xf32> to vector<8x8xf32>
    %756 = arith.subf %752, %755 : vector<8x8xf32>
    %757 = math.exp %756 : vector<8x8xf32>
    %cst_325 = arith.constant dense<0.000000e+00> : vector<8xf32>
    %758 = vector.multi_reduction <add>, %757, %cst_325 [1] : vector<8x8xf32> to vector<8xf32>
    %759 = vector.shape_cast %758 : vector<8xf32> to vector<8x1xf32>
    %760 = tpu.reciprocal %759 {approx = true} : vector<8x1xf32> -> vector<8x1xf32>
    %761 = vector.broadcast %760 : vector<8x1xf32> to vector<8x8xf32>
    %762 = arith.mulf %757, %761 : vector<8x8xf32>
    %c360_326 = arith.constant 360 : index
    %c0_327 = arith.constant 0 : index
    %763 = vector.load %arg2[%c360_326, %c0_327] : memref<376x128xf32, #tpu.memory_space<vmem>>, vector<8x64xf32>
    %cst_328 = arith.constant dense<0.000000e+00> : vector<8x64xf32>
    %764 = tpu.matmul %762, %763, %cst_328 {dimension_numbers = #tpu.dot_dimension_numbers<[1], [0], [0], [1], [0, 0, 1, 1], [], []>} : vector<8x8xf32>, vector<8x64xf32>, vector<8x64xf32> -> vector<8x64xf32>
    %c368_329 = arith.constant 368 : index
    %c0_330 = arith.constant 0 : index
    %765 = vector.load %arg2[%c368_329, %c0_330] : memref<376x128xf32, #tpu.memory_space<vmem>>, vector<8x64xf32>
    %766 = arith.mulf %764, %765 : vector<8x64xf32>
    %c0_331 = arith.constant 0 : index
    %c0_332 = arith.constant 0 : index
    %767 = vector.load %arg5[%c0_331, %c0_332] : memref<64x32xf32, #tpu.memory_space<vmem>>, vector<64x32xf32>
    %cst_333 = arith.constant dense<0.000000e+00> : vector<8x32xf32>
    %768 = tpu.matmul %766, %767, %cst_333 {dimension_numbers = #tpu.dot_dimension_numbers<[1], [0], [0], [1], [0, 0, 1, 1], [], []>} : vector<8x64xf32>, vector<64x32xf32>, vector<8x32xf32> -> vector<8x32xf32>
    %c232_334 = arith.constant 232 : index
    %c0_335 = arith.constant 0 : index
    %769 = vector.load %arg2[%c232_334, %c0_335] : memref<376x128xf32, #tpu.memory_space<vmem>>, vector<32x32xf32>
    %cst_336 = arith.constant dense<0.000000e+00> : vector<8x32xf32>
    %770 = tpu.matmul %768, %769, %cst_336 {dimension_numbers = #tpu.dot_dimension_numbers<[1], [0], [0], [1], [0, 0, 1, 1], [], []>} : vector<8x32xf32>, vector<32x32xf32>, vector<8x32xf32> -> vector<8x32xf32>
    %771 = arith.addf %749, %770 : vector<8x32xf32>
    %cst_337 = arith.constant 0.000000e+00 : f32
    %772 = vector.broadcast %cst_337 : f32 to vector<8x32xf32>
    %773 = arith.maximumf %771, %772 : vector<8x32xf32>
    %c64_338 = arith.constant 64 : index
    %c0_339 = arith.constant 0 : index
    %774 = vector.load %arg2[%c64_338, %c0_339] : memref<376x128xf32, #tpu.memory_space<vmem>>, vector<32x96xf32>
    %cst_340 = arith.constant dense<0.000000e+00> : vector<8x96xf32>
    %775 = tpu.matmul %773, %774, %cst_340 {dimension_numbers = #tpu.dot_dimension_numbers<[1], [0], [0], [1], [0, 0, 1, 1], [], []>} : vector<8x32xf32>, vector<32x96xf32>, vector<8x96xf32> -> vector<8x96xf32>
    %c129_341 = arith.constant 129 : index
    %c0_342 = arith.constant 0 : index
    %776 = vector.load %arg2[%c129_341, %c0_342] : memref<376x128xf32, #tpu.memory_space<vmem>>, vector<1x96xf32>
    %777 = vector.broadcast %776 : vector<1x96xf32> to vector<8x96xf32>
    %778 = arith.addf %775, %777 : vector<8x96xf32>
    %c96_343 = arith.constant 96 : index
    %c0_344 = arith.constant 0 : index
    %779 = vector.load %arg2[%c96_343, %c0_344] : memref<376x128xf32, #tpu.memory_space<vmem>>, vector<32x96xf32>
    %cst_345 = arith.constant dense<0.000000e+00> : vector<8x96xf32>
    %780 = tpu.matmul %746, %779, %cst_345 {dimension_numbers = #tpu.dot_dimension_numbers<[1], [0], [0], [1], [0, 0, 1, 1], [], []>} : vector<8x32xf32>, vector<32x96xf32>, vector<8x96xf32> -> vector<8x96xf32>
    %c130_346 = arith.constant 130 : index
    %c0_347 = arith.constant 0 : index
    %781 = vector.load %arg2[%c130_346, %c0_347] : memref<376x128xf32, #tpu.memory_space<vmem>>, vector<1x96xf32>
    %782 = vector.broadcast %781 : vector<1x96xf32> to vector<8x96xf32>
    %783 = arith.addf %780, %782 : vector<8x96xf32>
    %784 = vector.extract_strided_slice %778 {offsets = [0, 0], sizes = [8, 32], strides = [1, 1]} : vector<8x96xf32> to vector<8x32xf32>
    %785 = vector.extract_strided_slice %783 {offsets = [0, 0], sizes = [8, 32], strides = [1, 1]} : vector<8x96xf32> to vector<8x32xf32>
    %786 = arith.addf %784, %785 : vector<8x32xf32>
    %787 = arith.negf %786 : vector<8x32xf32>
    %788 = math.exp %787 : vector<8x32xf32>
    %cst_348 = arith.constant 1.000000e+00 : f32
    %789 = vector.broadcast %cst_348 : f32 to vector<8x32xf32>
    %790 = arith.addf %789, %788 : vector<8x32xf32>
    %791 = arith.divf %789, %790 : vector<8x32xf32>
    %792 = vector.extract_strided_slice %778 {offsets = [0, 32], sizes = [8, 32], strides = [1, 1]} : vector<8x96xf32> to vector<8x32xf32>
    %793 = vector.extract_strided_slice %783 {offsets = [0, 32], sizes = [8, 32], strides = [1, 1]} : vector<8x96xf32> to vector<8x32xf32>
    %794 = arith.addf %792, %793 : vector<8x32xf32>
    %795 = arith.negf %794 : vector<8x32xf32>
    %796 = math.exp %795 : vector<8x32xf32>
    %cst_349 = arith.constant 1.000000e+00 : f32
    %797 = vector.broadcast %cst_349 : f32 to vector<8x32xf32>
    %798 = arith.addf %797, %796 : vector<8x32xf32>
    %799 = arith.divf %797, %798 : vector<8x32xf32>
    %800 = vector.extract_strided_slice %778 {offsets = [0, 64], sizes = [8, 32], strides = [1, 1]} : vector<8x96xf32> to vector<8x32xf32>
    %801 = vector.extract_strided_slice %783 {offsets = [0, 64], sizes = [8, 32], strides = [1, 1]} : vector<8x96xf32> to vector<8x32xf32>
    %802 = arith.mulf %791, %801 : vector<8x32xf32>
    %803 = arith.addf %800, %802 : vector<8x32xf32>
    %804 = math.tanh %803 : vector<8x32xf32>
    %cst_350 = arith.constant 1.000000e+00 : f32
    %805 = vector.broadcast %cst_350 : f32 to vector<8x32xf32>
    %806 = arith.subf %805, %799 : vector<8x32xf32>
    %807 = arith.mulf %806, %804 : vector<8x32xf32>
    %808 = arith.mulf %799, %746 : vector<8x32xf32>
    %809 = arith.addf %807, %808 : vector<8x32xf32>
    %c48_351 = arith.constant 48 : index
    %c0_352 = arith.constant 0 : index
    %810 = vector.load %arg8[%c48_351, %c0_352] : memref<64x32xf32, #tpu.memory_space<vmem>>, vector<8x32xf32>
    tpu.vector_store %arg8[%c48_351, %c0_352], %809 {strides = array<i32>} : memref<64x32xf32, #tpu.memory_space<vmem>>, vector<8x32xf32>,
    %c56_353 = arith.constant 56 : index
    %c0_354 = arith.constant 0 : index
    %811 = vector.load %arg6[%c56_353, %c0_354] : memref<64x8xf32, #tpu.memory_space<vmem>>, vector<8x8xf32>
    %c56_355 = arith.constant 56 : index
    %c0_356 = arith.constant 0 : index
    %812 = vector.load %arg7[%c56_355, %c0_356] : memref<64x32xf32, #tpu.memory_space<vmem>>, vector<8x32xf32>
    %c168_357 = arith.constant 168 : index
    %c0_358 = arith.constant 0 : index
    %813 = vector.load %arg2[%c168_357, %c0_358] : memref<376x128xf32, #tpu.memory_space<vmem>>, vector<32x8xf32>
    %cst_359 = arith.constant dense<0.000000e+00> : vector<8x8xf32>
    %814 = tpu.matmul %809, %813, %cst_359 {dimension_numbers = #tpu.dot_dimension_numbers<[1], [0], [0], [1], [0, 0, 1, 1], [], []>} : vector<8x32xf32>, vector<32x8xf32>, vector<8x8xf32> -> vector<8x8xf32>
    %815 = arith.addf %811, %814 : vector<8x8xf32>
    %cst_360 = arith.constant dense<0xFF800000> : vector<8xf32>
    %816 = vector.multi_reduction <maximumf>, %815, %cst_360 [1] : vector<8x8xf32> to vector<8xf32>
    %817 = vector.shape_cast %816 : vector<8xf32> to vector<8x1xf32>
    %818 = vector.broadcast %817 : vector<8x1xf32> to vector<8x8xf32>
    %819 = arith.subf %815, %818 : vector<8x8xf32>
    %820 = math.exp %819 : vector<8x8xf32>
    %cst_361 = arith.constant dense<0.000000e+00> : vector<8xf32>
    %821 = vector.multi_reduction <add>, %820, %cst_361 [1] : vector<8x8xf32> to vector<8xf32>
    %822 = vector.shape_cast %821 : vector<8xf32> to vector<8x1xf32>
    %823 = tpu.reciprocal %822 {approx = true} : vector<8x1xf32> -> vector<8x1xf32>
    %824 = vector.broadcast %823 : vector<8x1xf32> to vector<8x8xf32>
    %825 = arith.mulf %820, %824 : vector<8x8xf32>
    %c360_362 = arith.constant 360 : index
    %c0_363 = arith.constant 0 : index
    %826 = vector.load %arg2[%c360_362, %c0_363] : memref<376x128xf32, #tpu.memory_space<vmem>>, vector<8x64xf32>
    %cst_364 = arith.constant dense<0.000000e+00> : vector<8x64xf32>
    %827 = tpu.matmul %825, %826, %cst_364 {dimension_numbers = #tpu.dot_dimension_numbers<[1], [0], [0], [1], [0, 0, 1, 1], [], []>} : vector<8x8xf32>, vector<8x64xf32>, vector<8x64xf32> -> vector<8x64xf32>
    %c368_365 = arith.constant 368 : index
    %c0_366 = arith.constant 0 : index
    %828 = vector.load %arg2[%c368_365, %c0_366] : memref<376x128xf32, #tpu.memory_space<vmem>>, vector<8x64xf32>
    %829 = arith.mulf %827, %828 : vector<8x64xf32>
    %c0_367 = arith.constant 0 : index
    %c0_368 = arith.constant 0 : index
    %830 = vector.load %arg5[%c0_367, %c0_368] : memref<64x32xf32, #tpu.memory_space<vmem>>, vector<64x32xf32>
    %cst_369 = arith.constant dense<0.000000e+00> : vector<8x32xf32>
    %831 = tpu.matmul %829, %830, %cst_369 {dimension_numbers = #tpu.dot_dimension_numbers<[1], [0], [0], [1], [0, 0, 1, 1], [], []>} : vector<8x64xf32>, vector<64x32xf32>, vector<8x32xf32> -> vector<8x32xf32>
    %c232_370 = arith.constant 232 : index
    %c0_371 = arith.constant 0 : index
    %832 = vector.load %arg2[%c232_370, %c0_371] : memref<376x128xf32, #tpu.memory_space<vmem>>, vector<32x32xf32>
    %cst_372 = arith.constant dense<0.000000e+00> : vector<8x32xf32>
    %833 = tpu.matmul %831, %832, %cst_372 {dimension_numbers = #tpu.dot_dimension_numbers<[1], [0], [0], [1], [0, 0, 1, 1], [], []>} : vector<8x32xf32>, vector<32x32xf32>, vector<8x32xf32> -> vector<8x32xf32>
    %834 = arith.addf %812, %833 : vector<8x32xf32>
    %cst_373 = arith.constant 0.000000e+00 : f32
    %835 = vector.broadcast %cst_373 : f32 to vector<8x32xf32>
    %836 = arith.maximumf %834, %835 : vector<8x32xf32>
    %c64_374 = arith.constant 64 : index
    %c0_375 = arith.constant 0 : index
    %837 = vector.load %arg2[%c64_374, %c0_375] : memref<376x128xf32, #tpu.memory_space<vmem>>, vector<32x96xf32>
    %cst_376 = arith.constant dense<0.000000e+00> : vector<8x96xf32>
    %838 = tpu.matmul %836, %837, %cst_376 {dimension_numbers = #tpu.dot_dimension_numbers<[1], [0], [0], [1], [0, 0, 1, 1], [], []>} : vector<8x32xf32>, vector<32x96xf32>, vector<8x96xf32> -> vector<8x96xf32>
    %c129_377 = arith.constant 129 : index
    %c0_378 = arith.constant 0 : index
    %839 = vector.load %arg2[%c129_377, %c0_378] : memref<376x128xf32, #tpu.memory_space<vmem>>, vector<1x96xf32>
    %840 = vector.broadcast %839 : vector<1x96xf32> to vector<8x96xf32>
    %841 = arith.addf %838, %840 : vector<8x96xf32>
    %c96_379 = arith.constant 96 : index
    %c0_380 = arith.constant 0 : index
    %842 = vector.load %arg2[%c96_379, %c0_380] : memref<376x128xf32, #tpu.memory_space<vmem>>, vector<32x96xf32>
    %cst_381 = arith.constant dense<0.000000e+00> : vector<8x96xf32>
    %843 = tpu.matmul %809, %842, %cst_381 {dimension_numbers = #tpu.dot_dimension_numbers<[1], [0], [0], [1], [0, 0, 1, 1], [], []>} : vector<8x32xf32>, vector<32x96xf32>, vector<8x96xf32> -> vector<8x96xf32>
    %c130_382 = arith.constant 130 : index
    %c0_383 = arith.constant 0 : index
    %844 = vector.load %arg2[%c130_382, %c0_383] : memref<376x128xf32, #tpu.memory_space<vmem>>, vector<1x96xf32>
    %845 = vector.broadcast %844 : vector<1x96xf32> to vector<8x96xf32>
    %846 = arith.addf %843, %845 : vector<8x96xf32>
    %847 = vector.extract_strided_slice %841 {offsets = [0, 0], sizes = [8, 32], strides = [1, 1]} : vector<8x96xf32> to vector<8x32xf32>
    %848 = vector.extract_strided_slice %846 {offsets = [0, 0], sizes = [8, 32], strides = [1, 1]} : vector<8x96xf32> to vector<8x32xf32>
    %849 = arith.addf %847, %848 : vector<8x32xf32>
    %850 = arith.negf %849 : vector<8x32xf32>
    %851 = math.exp %850 : vector<8x32xf32>
    %cst_384 = arith.constant 1.000000e+00 : f32
    %852 = vector.broadcast %cst_384 : f32 to vector<8x32xf32>
    %853 = arith.addf %852, %851 : vector<8x32xf32>
    %854 = arith.divf %852, %853 : vector<8x32xf32>
    %855 = vector.extract_strided_slice %841 {offsets = [0, 32], sizes = [8, 32], strides = [1, 1]} : vector<8x96xf32> to vector<8x32xf32>
    %856 = vector.extract_strided_slice %846 {offsets = [0, 32], sizes = [8, 32], strides = [1, 1]} : vector<8x96xf32> to vector<8x32xf32>
    %857 = arith.addf %855, %856 : vector<8x32xf32>
    %858 = arith.negf %857 : vector<8x32xf32>
    %859 = math.exp %858 : vector<8x32xf32>
    %cst_385 = arith.constant 1.000000e+00 : f32
    %860 = vector.broadcast %cst_385 : f32 to vector<8x32xf32>
    %861 = arith.addf %860, %859 : vector<8x32xf32>
    %862 = arith.divf %860, %861 : vector<8x32xf32>
    %863 = vector.extract_strided_slice %841 {offsets = [0, 64], sizes = [8, 32], strides = [1, 1]} : vector<8x96xf32> to vector<8x32xf32>
    %864 = vector.extract_strided_slice %846 {offsets = [0, 64], sizes = [8, 32], strides = [1, 1]} : vector<8x96xf32> to vector<8x32xf32>
    %865 = arith.mulf %854, %864 : vector<8x32xf32>
    %866 = arith.addf %863, %865 : vector<8x32xf32>
    %867 = math.tanh %866 : vector<8x32xf32>
    %cst_386 = arith.constant 1.000000e+00 : f32
    %868 = vector.broadcast %cst_386 : f32 to vector<8x32xf32>
    %869 = arith.subf %868, %862 : vector<8x32xf32>
    %870 = arith.mulf %869, %867 : vector<8x32xf32>
    %871 = arith.mulf %862, %809 : vector<8x32xf32>
    %872 = arith.addf %870, %871 : vector<8x32xf32>
    %c56_387 = arith.constant 56 : index
    %c0_388 = arith.constant 0 : index
    %873 = vector.load %arg8[%c56_387, %c0_388] : memref<64x32xf32, #tpu.memory_space<vmem>>, vector<8x32xf32>
    tpu.vector_store %arg8[%c56_387, %c0_388], %872 {strides = array<i32>} : memref<64x32xf32, #tpu.memory_space<vmem>>, vector<8x32xf32>,
    %c0_389 = arith.constant 0 : index
    %c0_390 = arith.constant 0 : index
    %874 = vector.load %arg8[%c0_389, %c0_390] : memref<64x32xf32, #tpu.memory_space<vmem>>, vector<64x32xf32>
    %c264 = arith.constant 264 : index
    %c0_391 = arith.constant 0 : index
    %875 = vector.load %arg2[%c264, %c0_391] : memref<376x128xf32, #tpu.memory_space<vmem>>, vector<32x32xf32>
    %cst_392 = arith.constant dense<0.000000e+00> : vector<64x32xf32>
    %876 = tpu.matmul %874, %875, %cst_392 {dimension_numbers = #tpu.dot_dimension_numbers<[1], [0], [0], [1], [0, 0, 1, 1], [], []>} : vector<64x32xf32>, vector<32x32xf32>, vector<64x32xf32> -> vector<64x32xf32>
    %c131 = arith.constant 131 : index
    %c0_393 = arith.constant 0 : index
    %877 = vector.load %arg2[%c131, %c0_393] : memref<376x128xf32, #tpu.memory_space<vmem>>, vector<1x32xf32>
    %878 = vector.broadcast %877 : vector<1x32xf32> to vector<64x32xf32>
    %879 = arith.addf %876, %878 : vector<64x32xf32>
    %cst_394 = arith.constant dense<0xFF800000> : vector<64xf32>
    %880 = vector.multi_reduction <maximumf>, %879, %cst_394 [1] : vector<64x32xf32> to vector<64xf32>
    %881 = vector.shape_cast %880 : vector<64xf32> to vector<64x1xf32>
    %882 = vector.broadcast %881 : vector<64x1xf32> to vector<64x32xf32>
    %883 = arith.subf %879, %882 : vector<64x32xf32>
    %884 = math.exp %883 : vector<64x32xf32>
    %cst_395 = arith.constant dense<0.000000e+00> : vector<64xf32>
    %885 = vector.multi_reduction <add>, %884, %cst_395 [1] : vector<64x32xf32> to vector<64xf32>
    %886 = vector.shape_cast %885 : vector<64xf32> to vector<64x1xf32>
    %887 = math.log %886 : vector<64x1xf32>
    %888 = arith.addf %887, %881 : vector<64x1xf32>
    %889 = vector.broadcast %888 : vector<64x1xf32> to vector<64x32xf32>
    %890 = arith.subf %879, %889 : vector<64x32xf32>
    %891 = vector.extract_strided_slice %0 {offsets = [0, 2], sizes = [64, 1], strides = [1, 1]} : vector<64x3xi32> to vector<64x1xi32>
    %892 = vector.broadcast %891 : vector<64x1xi32> to vector<64x32xi32>
    %893 = arith.cmpi eq, %1, %892 : vector<64x32xi32>
    %894 = arith.extui %893 : vector<64x32xi1> to vector<64x32xi32>
    %895 = arith.sitofp %894 : vector<64x32xi32> to vector<64x32xf32>
    %896 = arith.mulf %890, %895 : vector<64x32xf32>
    %897 = vector.shape_cast %896 : vector<64x32xf32> to vector<1x64x32xf32>
    %cst_396 = arith.constant dense<0.000000e+00> : vector<1xf32>
    %898 = vector.multi_reduction <add>, %897, %cst_396 [1, 2] : vector<1x64x32xf32> to vector<1xf32>
    %899 = vector.shape_cast %898 : vector<1xf32> to vector<1x1x1xf32>
    %900 = vector.extract %899[0, 0, 0] : f32 from vector<1x1x1xf32>
    %901 = vector.broadcast %900 : f32 to vector<1x1xf32>
    %cst_397 = arith.constant -5.000000e-01 : f32
    %902 = vector.broadcast %cst_397 : f32 to vector<1x1xf32>
    %903 = arith.mulf %901, %902 : vector<1x1xf32>
    %904 = vector.shape_cast %903 : vector<1x1xf32> to vector<1x1xf32>
    %905 = vector.broadcast %904 : vector<1x1xf32> to vector<8x128xf32>
    %c0_398 = arith.constant 0 : index
    %c0_399 = arith.constant 0 : index
    %906 = vector.load %arg3[%c0_398, %c0_399] : memref<8x128xf32, #tpu.memory_space<vmem>>, vector<8x128xf32>
    tpu.vector_store %arg3[%c0_398, %c0_399], %905 {strides = array<i32>} : memref<8x128xf32, #tpu.memory_space<vmem>>, vector<8x128xf32>,
    return
  }
}

</mosaic_0001>

<llo_original>
// kernel: seq2seq_forward.1
$region0: #{seq2seq_forward.1}
  #allocation0 [shape = 'u32[]', space=smem, size = 0x4, offset = 0x4, fixed_abs, tag = 'smem constant byte address 0x4 - core index']
  #allocation1 [shape = 'u32[72,128]{1,0:T(1,128)}', space=vmem, size = 0x9000, scoped, tag = 'internal scratch']
  #allocation2 [shape = 'f32[64,96]{1,0:T(8,128)}', space=vmem, size = 0x8000, scoped, tag = 'scratch operand']
  #allocation3 [shape = 'f32[64,32]{1,0:T(8,128)}', space=vmem, size = 0x8000, scoped, tag = 'scratch operand']
  #allocation4 [shape = 'f32[64,8]{1,0:T(8,128)}', space=vmem, size = 0x8000, scoped, tag = 'scratch operand']
  #allocation5 [shape = 'f32[64,32]{1,0:T(8,128)}', space=vmem, size = 0x8000, scoped, tag = 'scratch operand']
  #allocation6 [shape = 'f32[64,32]{1,0:T(8,128)}', space=vmem, size = 0x8000, scoped, tag = 'scratch operand']
  %s0 = inlined_call_operand.vmem [shape: s32[64,3], index: 0, kind: input, shape index: {}]
  %s1 = inlined_call_operand.vmem [shape: s32[8,1], index: 1, kind: input, shape index: {}]
  %s2 = inlined_call_operand.hbm [shape: f32[376,128], index: 2, kind: input, shape index: {}]
  %s3 = inlined_call_operand.vmem [shape: f32[8,128], index: 3, kind: output, shape index: {}]
  %s4 = sld [smem:[#allocation0]]
  $region26: #{seq2seq_forward.1} parent=0
    _
  %s6 = ssub.s32 1, %s4
  %s7 = scalar_select 0, %s6, %s4
  $region1: #{seq2seq_forward.1} parent=0
    #allocation7 [shape = 'u8[192512]{0}', space=vmem, size = 0x2f000, scoped, tag = 'input window, operand 2, single buffered']
    #allocation8 [shape = 's32[1]{0}', space=sflag, size = 0x4, scoped, tag = 'scoped memory for seq2seq_forward.1']
    %8 = vsyncpa [#allocation8], 0
    // Predicated region
    $region2: #{seq2seq_forward.1} parent=1 // pred_check
      _
    $region3: #{seq2seq_forward.1} parent=1 // pred_check_branch
      %10 = sbr.rel (0) target = $region5
    $region4: #{seq2seq_forward.1} parent=1 // pred_region
      _
    $region5: #{seq2seq_forward.1} parent=1 // pred_fallthru
      _
    // Predicated region
    $region6: #{seq2seq_forward.1} parent=1 // pred_check
      _
    $region7: #{seq2seq_forward.1} parent=1 // pred_check_branch
      %12 = sbr.rel (0) target = $region9
    $region8: #{seq2seq_forward.1} parent=1 // pred_region
      _
    $region9: #{seq2seq_forward.1} parent=1 // pred_fallthru
      _
    // Predicated region
    $region10: #{seq2seq_forward.1} parent=1 // pred_check
      _
    $region11: #{seq2seq_forward.1} parent=1 // pred_check_branch
      %14 = sbr.rel (0) target = $region13
    $region12: #{seq2seq_forward.1} parent=1 // pred_region
      %16 = vsyncadd [#allocation8], 0
      %s17 = sshll.u32 %s2, 4
      %s18 = int_to_ptr.hbm [resolvable:$true] %s17
      %s19 = sshll.u32 [#allocation7], 4
      %s20 = int_to_ptr.vmem [resolvable:$true] %s19
      %25 = dma.hbm_to_vmem [thread:$0]  %s18, 6016, %s20, [#allocation8], 128, 128, 8
    $region13: #{seq2seq_forward.1} parent=1 // pred_fallthru
      _
    // Predicated region
    $region14: #{seq2seq_forward.1} parent=1 // pred_check
      _
    $region15: #{seq2seq_forward.1} parent=1 // pred_check_branch
      %27 = sbr.rel (0) target = $region17
    $region16: #{seq2seq_forward.1} parent=1 // pred_region
      %29 = dma.done [#allocation8], 6016
    $region17: #{seq2seq_forward.1} parent=1 // pred_fallthru
      _
    %v30 = vld [vmem:[%s0] sm:$0xff]
    %v31 = vld [vmem:[%s0 + $0x8] sm:$0xff]
    %v32 = vld [vmem:[%s0 + $0x10] sm:$0xff]
    %v33 = vld [vmem:[%s0 + $0x18] sm:$0xff]
    %v34 = vld [vmem:[%s0 + $0x20] sm:$0xff]
    %v35 = vld [vmem:[%s0 + $0x28] sm:$0xff]
    %v36 = vld [vmem:[%s0 + $0x30] sm:$0xff]
    %v37 = vld [vmem:[%s0 + $0x38] sm:$0xff]
    %v38 = vlaneseq
    %v39 = vand.u32 %v38, 127
    %40 = vset.pattern.permute.xlu0 0
    %41 = vperm.xlu0 %40, %v30
    %v42 = vpop.permute.xlu0 %41
    %43 = vset.pattern.permute.xlu0 0
    %44 = vperm.xlu0 %43, %v31
    %v45 = vpop.permute.xlu0 %44
    %46 = vset.pattern.permute.xlu0 0
    %47 = vperm.xlu0 %46, %v32
    %v48 = vpop.permute.xlu0 %47
    %49 = vset.pattern.permute.xlu0 0
    %50 = vperm.xlu0 %49, %v33
    %v51 = vpop.permute.xlu0 %50
    %52 = vset.pattern.permute.xlu0 0
    %53 = vperm.xlu0 %52, %v34
    %v54 = vpop.permute.xlu0 %53
    %55 = vset.pattern.permute.xlu0 0
    %56 = vperm.xlu0 %55, %v35
    %v57 = vpop.permute.xlu0 %56
    %58 = vset.pattern.permute.xlu0 0
    %59 = vperm.xlu0 %58, %v36
    %v60 = vpop.permute.xlu0 %59
    %61 = vset.pattern.permute.xlu0 0
    %62 = vperm.xlu0 %61, %v37
    %v63 = vpop.permute.xlu0 %62
    %vm64 = vcmp.eq.s32.totalorder %v39, %v42
    %vm65 = vcmp.eq.s32.totalorder %v39, %v45
    %vm66 = vcmp.eq.s32.totalorder %v39, %v48
    %vm67 = vcmp.eq.s32.totalorder %v39, %v51
    %vm68 = vcmp.eq.s32.totalorder %v39, %v54
    %vm69 = vcmp.eq.s32.totalorder %v39, %v57
    %vm70 = vcmp.eq.s32.totalorder %v39, %v60
    %vm71 = vcmp.eq.s32.totalorder %v39, %v63
    %v72 = vsel %vm64, 1, 0
    %v73 = vsel %vm65, 1, 0
    %v74 = vsel %vm66, 1, 0
    %v75 = vsel %vm67, 1, 0
    %v76 = vsel %vm68, 1, 0
    %v77 = vsel %vm69, 1, 0
    %v78 = vsel %vm70, 1, 0
    %v79 = vsel %vm71, 1, 0
    %v80 = vcvt.s32.f32 %v72
    %v81 = vcvt.s32.f32 %v73
    %v82 = vcvt.s32.f32 %v74
    %v83 = vcvt.s32.f32 %v75
    %v84 = vcvt.s32.f32 %v76
    %v85 = vcvt.s32.f32 %v77
    %v86 = vcvt.s32.f32 %v78
    %v87 = vcvt.s32.f32 %v79
    %v88 = vld [vmem:[#allocation7] sm:$0xff]
    %v89 = vld [vmem:[#allocation7 + $0x8] sm:$0xff]
    %v90 = vld [vmem:[#allocation7 + $0x10] sm:$0xff]
    %v91 = vld [vmem:[#allocation7 + $0x18] sm:$0xff]
    %vm92 = vcmask 261120
    %v94 = vsel %vm92, %v80, 0
    %v97 = vsel %vm92, %v81, 0
    %v100 = vsel %vm92, %v82, 0
    %v103 = vsel %vm92, %v83, 0
    %v106 = vsel %vm92, %v84, 0
    %v109 = vsel %vm92, %v85, 0
    %v112 = vsel %vm92, %v86, 0
    %v115 = vsel %vm92, %v87, 0
    %117 = vmatpush.msra.mxu0 0.0
    %118 = vmatpush.msra.mxu0 0.0
    %119 = vmatpush.msra.mxu0 0.0
    %120 = vmatpush.msra.mxu0 0.0
    %121 = vmatpush.msra.mxu0 0.0
    %122 = vmatpush.msra.mxu0 0.0
    %123 = vmatpush.msra.mxu0 0.0
    %124 = vmatpush.msra.mxu0 0.0
    %125 = vmatpush.msra.mxu0 0.0
    %126 = vmatpush.msra.mxu0 0.0
    %127 = vmatpush.msra.mxu0 0.0
    %128 = vmatpush.msra.mxu0 0.0
    %129 = vmatpush.msra.mxu0 %v91
    %130 = vmatpush.msra.mxu0 %v90
    %131 = vmatpush.msra.mxu0 %v89
    %132 = vmatpush.msra.mxu0 %v88
    %133 = vmatmul.f32.gmra.mxu0 %v94
    %v134 = vpop.f32.mrf.mxu0
    %v135 = vadd.f32 0.0, %v134
    %136 = vmatmul.f32.gmra.mxu0 %v97
    %v137 = vpop.f32.mrf.mxu0
    %v138 = vadd.f32 0.0, %v137
    %139 = vmatmul.f32.gmra.mxu0 %v100
    %v140 = vpop.f32.mrf.mxu0
    %v141 = vadd.f32 0.0, %v140
    %142 = vmatmul.f32.gmra.mxu0 %v103
    %v143 = vpop.f32.mrf.mxu0
    %v144 = vadd.f32 0.0, %v143
    %145 = vmatmul.f32.gmra.mxu0 %v106
    %v146 = vpop.f32.mrf.mxu0
    %v147 = vadd.f32 0.0, %v146
    %148 = vmatmul.f32.gmra.mxu0 %v109
    %v149 = vpop.f32.mrf.mxu0
    %v150 = vadd.f32 0.0, %v149
    %151 = vmatmul.f32.gmra.mxu0 %v112
    %v152 = vpop.f32.mrf.mxu0
    %v153 = vadd.f32 0.0, %v152
    %154 = vmatmul.f32.gmra.mxu0 %v115
    %v155 = vpop.f32.mrf.mxu0
    %v156 = vadd.f32 0.0, %v155
    %157 = vdwg.mxu0
    %vm158 = vcmask 785408
    %159 = vst.msk [vmem:[#allocation2] sm:$0xff] %vm158, %v135
    %160 = vst.msk [vmem:[#allocation2 + $0x8] sm:$0xff] %vm158, %v138
    %161 = vst.msk [vmem:[#allocation2 + $0x10] sm:$0xff] %vm158, %v141
    %162 = vst.msk [vmem:[#allocation2 + $0x18] sm:$0xff] %vm158, %v144
    %163 = vst.msk [vmem:[#allocation2 + $0x20] sm:$0xff] %vm158, %v147
    %164 = vst.msk [vmem:[#allocation2 + $0x28] sm:$0xff] %vm158, %v150
    %165 = vst.msk [vmem:[#allocation2 + $0x30] sm:$0xff] %vm158, %v153
    %166 = vst.msk [vmem:[#allocation2 + $0x38] sm:$0xff] %vm158, %v156
    %167 = vset.pattern.permute.xlu0 1
    %168 = vperm.xlu0 %167, %v30
    %v169 = vpop.permute.xlu0 %168
    %170 = vset.pattern.permute.xlu0 1
    %171 = vperm.xlu0 %170, %v31
    %v172 = vpop.permute.xlu0 %171
    %173 = vset.pattern.permute.xlu0 1
    %174 = vperm.xlu0 %173, %v32
    %v175 = vpop.permute.xlu0 %174
    %176 = vset.pattern.permute.xlu0 1
    %177 = vperm.xlu0 %176, %v33
    %v178 = vpop.permute.xlu0 %177
    %179 = vset.pattern.permute.xlu0 1
    %180 = vperm.xlu0 %179, %v34
    %v181 = vpop.permute.xlu0 %180
    %182 = vset.pattern.permute.xlu0 1
    %183 = vperm.xlu0 %182, %v35
    %v184 = vpop.permute.xlu0 %183
    %185 = vset.pattern.permute.xlu0 1
    %186 = vperm.xlu0 %185, %v36
    %v187 = vpop.permute.xlu0 %186
    %188 = vset.pattern.permute.xlu0 1
    %189 = vperm.xlu0 %188, %v37
    %v190 = vpop.permute.xlu0 %189
    %vm191 = vcmp.eq.s32.totalorder %v39, %v169
    %vm192 = vcmp.eq.s32.totalorder %v39, %v172
    %vm193 = vcmp.eq.s32.totalorder %v39, %v175
    %vm194 = vcmp.eq.s32.totalorder %v39, %v178
    %vm195 = vcmp.eq.s32.totalorder %v39, %v181
    %vm196 = vcmp.eq.s32.totalorder %v39, %v184
    %vm197 = vcmp.eq.s32.totalorder %v39, %v187
    %vm198 = vcmp.eq.s32.totalorder %v39, %v190
    %v199 = vsel %vm191, 1, 0
    %v200 = vsel %vm192, 1, 0
    %v201 = vsel %vm193, 1, 0
    %v202 = vsel %vm194, 1, 0
    %v203 = vsel %vm195, 1, 0
    %v204 = vsel %vm196, 1, 0
    %v205 = vsel %vm197, 1, 0
    %v206 = vsel %vm198, 1, 0
    %v207 = vcvt.s32.f32 %v199
    %v208 = vcvt.s32.f32 %v200
    %v209 = vcvt.s32.f32 %v201
    %v210 = vcvt.s32.f32 %v202
    %v211 = vcvt.s32.f32 %v203
    %v212 = vcvt.s32.f32 %v204
    %v213 = vcvt.s32.f32 %v205
    %v214 = vcvt.s32.f32 %v206
    %v215 = vld [vmem:[#allocation7 + $0x88] sm:$0xff]
    %v216 = vld [vmem:[#allocation7 + $0x90] sm:$0xff]
    %v217 = vld [vmem:[#allocation7 + $0x98] sm:$0xff]
    %v218 = vld [vmem:[#allocation7 + $0xa0] sm:$0xff]
    %v219 = vld [vmem:[#allocation7 + $0x128] sm:$0xff]
    %v220 = vld [vmem:[#allocation7 + $0x130] sm:$0xff]
    %v221 = vld [vmem:[#allocation7 + $0x138] sm:$0xff]
    %v222 = vld [vmem:[#allocation7 + $0x140] sm:$0xff]
    %v223 = vld [vmem:[#allocation7 + $0x148] sm:$0xff]
    %v224 = vld [vmem:[#allocation7 + $0x150] sm:$0xff]
    %v225 = vld [vmem:[#allocation7 + $0x158] sm:$0xff]
    %v226 = vld [vmem:[#allocation7 + $0x160] sm:$0xff]
    %v228 = vsel %vm92, %v207, 0
    %v231 = vsel %vm92, %v208, 0
    %v234 = vsel %vm92, %v209, 0
    %v237 = vsel %vm92, %v210, 0
    %v240 = vsel %vm92, %v211, 0
    %v243 = vsel %vm92, %v212, 0
    %v246 = vsel %vm92, %v213, 0
    %v249 = vsel %vm92, %v214, 0
    %251 = vmatpush.msra.mxu0 0.0
    %252 = vmatpush.msra.mxu0 0.0
    %253 = vmatpush.msra.mxu0 0.0
    %254 = vmatpush.msra.mxu0 0.0
    %255 = vmatpush.msra.mxu0 0.0
    %256 = vmatpush.msra.mxu0 0.0
    %257 = vmatpush.msra.mxu0 0.0
    %258 = vmatpush.msra.mxu0 0.0
    %259 = vmatpush.msra.mxu0 0.0
    %260 = vmatpush.msra.mxu0 0.0
    %261 = vmatpush.msra.mxu0 0.0
    %262 = vmatpush.msra.mxu0 0.0
    %263 = vmatpush.msra.mxu0 %v218
    %264 = vmatpush.msra.mxu0 %v217
    %265 = vmatpush.msra.mxu0 %v216
    %266 = vmatpush.msra.mxu0 %v215
    %267 = vmatmul.f32.gmra.mxu0 %v228
    %v268 = vpop.f32.mrf.mxu0
    %v269 = vadd.f32 %v219, %v268
    %270 = vmatmul.f32.gmra.mxu0 %v231
    %v271 = vpop.f32.mrf.mxu0
    %v272 = vadd.f32 %v220, %v271
    %273 = vmatmul.f32.gmra.mxu0 %v234
    %v274 = vpop.f32.mrf.mxu0
    %v275 = vadd.f32 %v221, %v274
    %276 = vmatmul.f32.gmra.mxu0 %v237
    %v277 = vpop.f32.mrf.mxu0
    %v278 = vadd.f32 %v222, %v277
    %279 = vmatmul.f32.gmra.mxu0 %v240
    %v280 = vpop.f32.mrf.mxu0
    %v281 = vadd.f32 %v223, %v280
    %282 = vmatmul.f32.gmra.mxu0 %v243
    %v283 = vpop.f32.mrf.mxu0
    %v284 = vadd.f32 %v224, %v283
    %285 = vmatmul.f32.gmra.mxu0 %v246
    %v286 = vpop.f32.mrf.mxu0
    %v287 = vadd.f32 %v225, %v286
    %288 = vmatmul.f32.gmra.mxu0 %v249
    %v289 = vpop.f32.mrf.mxu0
    %v290 = vadd.f32 %v226, %v289
    %291 = vdwg.mxu0
    %vm292 = vcmask 64512
    %293 = vst.msk [vmem:[#allocation4] sm:$0xff] %vm292, %v269
    %294 = vst.msk [vmem:[#allocation4 + $0x8] sm:$0xff] %vm292, %v272
    %295 = vst.msk [vmem:[#allocation4 + $0x10] sm:$0xff] %vm292, %v275
    %296 = vst.msk [vmem:[#allocation4 + $0x18] sm:$0xff] %vm292, %v278
    %297 = vst.msk [vmem:[#allocation4 + $0x20] sm:$0xff] %vm292, %v281
    %298 = vst.msk [vmem:[#allocation4 + $0x28] sm:$0xff] %vm292, %v284
    %299 = vst.msk [vmem:[#allocation4 + $0x30] sm:$0xff] %vm292, %v287
    %300 = vst.msk [vmem:[#allocation4 + $0x38] sm:$0xff] %vm292, %v290
    %v301 = vld [vmem:[#allocation7 + $0xc8] sm:$0xff]
    %v302 = vld [vmem:[#allocation7 + $0xd0] sm:$0xff]
    %v303 = vld [vmem:[#allocation7 + $0xd8] sm:$0xff]
    %v304 = vld [vmem:[#allocation7 + $0xe0] sm:$0xff]
    %305 = vmatpush.msra.mxu0 0.0
    %306 = vmatpush.msra.mxu0 0.0
    %307 = vmatpush.msra.mxu0 0.0
    %308 = vmatpush.msra.mxu0 0.0
    %309 = vmatpush.msra.mxu0 0.0
    %310 = vmatpush.msra.mxu0 0.0
    %311 = vmatpush.msra.mxu0 0.0
    %312 = vmatpush.msra.mxu0 0.0
    %313 = vmatpush.msra.mxu0 0.0
    %314 = vmatpush.msra.mxu0 0.0
    %315 = vmatpush.msra.mxu0 0.0
    %316 = vmatpush.msra.mxu0 0.0
    %317 = vmatpush.msra.mxu0 %v304
    %318 = vmatpush.msra.mxu0 %v303
    %319 = vmatpush.msra.mxu0 %v302
    %320 = vmatpush.msra.mxu0 %v301
    %321 = vmatmul.f32.gmra.mxu0 %v228
    %v322 = vpop.f32.mrf.mxu0
    %v323 = vadd.f32 0.0, %v322
    %324 = vmatmul.f32.gmra.mxu0 %v231
    %v325 = vpop.f32.mrf.mxu0
    %v326 = vadd.f32 0.0, %v325
    %327 = vmatmul.f32.gmra.mxu0 %v234
    %v328 = vpop.f32.mrf.mxu0
    %v329 = vadd.f32 0.0, %v328
    %330 = vmatmul.f32.gmra.mxu0 %v237
    %v331 = vpop.f32.mrf.mxu0
    %v332 = vadd.f32 0.0, %v331
    %333 = vmatmul.f32.gmra.mxu0 %v240
    %v334 = vpop.f32.mrf.mxu0
    %v335 = vadd.f32 0.0, %v334
    %336 = vmatmul.f32.gmra.mxu0 %v243
    %v337 = vpop.f32.mrf.mxu0
    %v338 = vadd.f32 0.0, %v337
    %339 = vmatmul.f32.gmra.mxu0 %v246
    %v340 = vpop.f32.mrf.mxu0
    %v341 = vadd.f32 0.0, %v340
    %342 = vmatmul.f32.gmra.mxu0 %v249
    %v343 = vpop.f32.mrf.mxu0
    %v344 = vadd.f32 0.0, %v343
    %345 = vdwg.mxu0
    %346 = vst.msk [vmem:[#allocation5] sm:$0xff] %vm92, %v323
    %347 = vst.msk [vmem:[#allocation5 + $0x8] sm:$0xff] %vm92, %v326
    %348 = vst.msk [vmem:[#allocation5 + $0x10] sm:$0xff] %vm92, %v329
    %349 = vst.msk [vmem:[#allocation5 + $0x18] sm:$0xff] %vm92, %v332
    %350 = vst.msk [vmem:[#allocation5 + $0x20] sm:$0xff] %vm92, %v335
    %351 = vst.msk [vmem:[#allocation5 + $0x28] sm:$0xff] %vm92, %v338
    %352 = vst.msk [vmem:[#allocation5 + $0x30] sm:$0xff] %vm92, %v341
    %353 = vst.msk [vmem:[#allocation5 + $0x38] sm:$0xff] %vm92, %v344
    %v354 = vld [vmem:[%s1] sm:$0xff]
    %v355 = vld [vmem:[#allocation7 + $0x80] sm:$0x1]
    %v356 = vld [vmem:[#allocation2] sm:$0xff]
    %v357 = vperm.slane %v355, 0
    %v358 = vadd.f32 %v356, %v357
    %v359 = vxor.u32 %v358, 2147483648
    %v360 = vmul.f32 %v359, 1.442695
    %v361 = vpow.pop %v360
    %v362 = vadd.f32 %v361, 1.0
    %v363 = vrcp.pop %v362
    %v364 = vmul.f32 %v362, %v363
    %v365 = vsub.f32 1.0, %v364
    %v366 = vmul.f32 %v363, %v365
    %v367 = vadd.f32 %v363, %v366
    %vm368 = vweird.f32 %v362
    %vm369 = vweird.f32 %v363
    %vm370 = vmor %vm368, %vm369
    %v371 = vsel %vm370, %v363, %v367
    %v372 = vand.u32 2147483647, %v362
    %vm373 = vcmp.eq.f32.partialorder %v372, 8.507059e+37
    %v374 = vand.u32 %v362, 2147483648
    %v375 = vor.u32 1.1754944e-38, %v374
    %v376 = vsel %vm373, %v375, %v371
    %v377 = vmul.f32 1.0, %v376
    %379 = vrot.lane.b32.xlu0 %v357, 64
    %v380 = vpop.permute.xlu0 %379
    %v382 = vmul.f32 %v377, %v380
    %384 = vrot.lane.b32.xlu0 %v382, 64
    %v385 = vpop.permute.xlu0 %384
    %v387 = vadd.f32 %v356, %v385
    %v388 = vtanh.pop %v387
    %v389 = vsub.f32 1.0, %v377
    %391 = vrot.lane.b32.xlu0 %v388, 96
    %v392 = vpop.permute.xlu0 %391
    %v394 = vmul.f32 %v389, %v392
    %v395 = vmul.f32 %v377, 0.0
    %v396 = vadd.f32 %v394, %v395
    %vm397 = vcmp.gt.s32.totalorder %v354, 0
    %v398 = vsel %vm397, 1, 0
    %v399 = vcvt.s32.f32 %v398
    %401 = vset.pattern.permute.xlu0 0
    %402 = vperm.xlu0 %401, %v399
    %v403 = vpop.permute.xlu0 %402
    %v405 = vmul.f32 %v403, %v396
    %407 = vrot.lane.b32.xlu0 %v405, 96
    %v408 = vpop.permute.xlu0 %407
    %410 = vst.msk [vmem:[#allocation3] sm:$0xff] %vm92, %v408
    %v411 = vld [vmem:[#allocation7 + $0x20] sm:$0xff]
    %v412 = vld [vmem:[#allocation7 + $0x28] sm:$0xff]
    %v413 = vld [vmem:[#allocation7 + $0x30] sm:$0xff]
    %v414 = vld [vmem:[#allocation7 + $0x38] sm:$0xff]
    %v415 = vld [vmem:[#allocation7 + $0x80] sm:$0x1]
    %v416 = vperm.slane %v415, 0
    %v417 = vsel %vm92, %v408, 0
    %419 = vmatpush.msra.mxu0 0.0
    %420 = vmatpush.msra.mxu0 0.0
    %421 = vmatpush.msra.mxu0 0.0
    %422 = vmatpush.msra.mxu0 0.0
    %423 = vmatpush.msra.mxu0 0.0
    %424 = vmatpush.msra.mxu0 0.0
    %425 = vmatpush.msra.mxu0 0.0
    %426 = vmatpush.msra.mxu0 0.0
    %427 = vmatpush.msra.mxu0 0.0
    %428 = vmatpush.msra.mxu0 0.0
    %429 = vmatpush.msra.mxu0 0.0
    %430 = vmatpush.msra.mxu0 0.0
    %431 = vmatpush.msra.mxu0 %v414
    %432 = vmatpush.msra.mxu0 %v413
    %433 = vmatpush.msra.mxu0 %v412
    %434 = vmatpush.msra.mxu0 %v411
    %435 = vmatmul.f32.gmra.mxu0 %v417
    %v436 = vpop.f32.mrf.mxu0
    %v437 = vadd.f32 %v416, %v436
    %438 = vdwg.mxu0
    %v439 = vld [vmem:[#allocation2 + $0x8] sm:$0xff]
    %v440 = vadd.f32 %v439, %v437
    %v441 = vxor.u32 %v440, 2147483648
    %v442 = vmul.f32 %v441, 1.442695
    %v443 = vpow.pop %v442
    %v444 = vadd.f32 %v443, 1.0
    %v445 = vrcp.pop %v444
    %v446 = vmul.f32 %v444, %v445
    %v447 = vsub.f32 1.0, %v446
    %v448 = vmul.f32 %v445, %v447
    %v449 = vadd.f32 %v445, %v448
    %vm450 = vweird.f32 %v444
    %vm451 = vweird.f32 %v445
    %vm452 = vmor %vm450, %vm451
    %v453 = vsel %vm452, %v445, %v449
    %v454 = vand.u32 2147483647, %v444
    %vm455 = vcmp.eq.f32.partialorder %v454, 8.507059e+37
    %v456 = vand.u32 %v444, 2147483648
    %v457 = vor.u32 1.1754944e-38, %v456
    %v458 = vsel %vm455, %v457, %v453
    %v459 = vmul.f32 1.0, %v458
    %461 = vrot.lane.b32.xlu0 %v437, 64
    %v462 = vpop.permute.xlu0 %461
    %v464 = vmul.f32 %v459, %v462
    %466 = vrot.lane.b32.xlu0 %v464, 64
    %v467 = vpop.permute.xlu0 %466
    %v469 = vadd.f32 %v439, %v467
    %v470 = vtanh.pop %v469
    %v471 = vsub.f32 1.0, %v459
    %473 = vrot.lane.b32.xlu0 %v470, 96
    %v474 = vpop.permute.xlu0 %473
    %v476 = vmul.f32 %v471, %v474
    %v477 = vmul.f32 %v459, %v405
    %v478 = vadd.f32 %v476, %v477
    %vm479 = vcmp.gt.s32.totalorder %v354, 1
    %v480 = vsel %vm479, 1, 0
    %v481 = vcvt.s32.f32 %v480
    %483 = vset.pattern.permute.xlu0 0
    %484 = vperm.xlu0 %483, %v481
    %v485 = vpop.permute.xlu0 %484
    %v487 = vmul.f32 %v485, %v478
    %v488 = vsub.f32 1.0, %v481
    %490 = vset.pattern.permute.xlu0 0
    %491 = vperm.xlu0 %490, %v488
    %v492 = vpop.permute.xlu0 %491
    %v494 = vmul.f32 %v492, %v405
    %v495 = vadd.f32 %v487, %v494
    %497 = vrot.lane.b32.xlu0 %v487, 96
    %v498 = vpop.permute.xlu0 %497
    %500 = vst.msk [vmem:[#allocation3 + $0x8] sm:$0xff] %vm92, %v498
    %v501 = vld [vmem:[#allocation7 + $0x20] sm:$0xff]
    %v502 = vld [vmem:[#allocation7 + $0x28] sm:$0xff]
    %v503 = vld [vmem:[#allocation7 + $0x30] sm:$0xff]
    %v504 = vld [vmem:[#allocation7 + $0x38] sm:$0xff]
    %v505 = vld [vmem:[#allocation7 + $0x80] sm:$0x1]
    %v506 = vperm.slane %v505, 0
    %508 = vrot.lane.b32.xlu0 %v495, 96
    %v509 = vpop.permute.xlu0 %508
    %v510 = vsel %vm92, %v509, 0
    %512 = vmatpush.msra.mxu0 0.0
    %513 = vmatpush.msra.mxu0 0.0
    %514 = vmatpush.msra.mxu0 0.0
    %515 = vmatpush.msra.mxu0 0.0
    %516 = vmatpush.msra.mxu0 0.0
    %517 = vmatpush.msra.mxu0 0.0
    %518 = vmatpush.msra.mxu0 0.0
    %519 = vmatpush.msra.mxu0 0.0
    %520 = vmatpush.msra.mxu0 0.0
    %521 = vmatpush.msra.mxu0 0.0
    %522 = vmatpush.msra.mxu0 0.0
    %523 = vmatpush.msra.mxu0 0.0
    %524 = vmatpush.msra.mxu0 %v504
    %525 = vmatpush.msra.mxu0 %v503
    %526 = vmatpush.msra.mxu0 %v502
    %527 = vmatpush.msra.mxu0 %v501
    %528 = vmatmul.f32.gmra.mxu0 %v510
    %v529 = vpop.f32.mrf.mxu0
    %v530 = vadd.f32 %v506, %v529
    %531 = vdwg.mxu0
    %v532 = vld [vmem:[#allocation2 + $0x10] sm:$0xff]
    %v533 = vadd.f32 %v532, %v530
    %v534 = vxor.u32 %v533, 2147483648
    %v535 = vmul.f32 %v534, 1.442695
    %v536 = vpow.pop %v535
    %v537 = vadd.f32 %v536, 1.0
    %v538 = vrcp.pop %v537
    %v539 = vmul.f32 %v537, %v538
    %v540 = vsub.f32 1.0, %v539
    %v541 = vmul.f32 %v538, %v540
    %v542 = vadd.f32 %v538, %v541
    %vm543 = vweird.f32 %v537
    %vm544 = vweird.f32 %v538
    %vm545 = vmor %vm543, %vm544
    %v546 = vsel %vm545, %v538, %v542
    %v547 = vand.u32 2147483647, %v537
    %vm548 = vcmp.eq.f32.partialorder %v547, 8.507059e+37
    %v549 = vand.u32 %v537, 2147483648
    %v550 = vor.u32 1.1754944e-38, %v549
    %v551 = vsel %vm548, %v550, %v546
    %v552 = vmul.f32 1.0, %v551
    %554 = vrot.lane.b32.xlu0 %v530, 64
    %v555 = vpop.permute.xlu0 %554
    %v557 = vmul.f32 %v552, %v555
    %559 = vrot.lane.b32.xlu0 %v557, 64
    %v560 = vpop.permute.xlu0 %559
    %v562 = vadd.f32 %v532, %v560
    %v563 = vtanh.pop %v562
    %v564 = vsub.f32 1.0, %v552
    %566 = vrot.lane.b32.xlu0 %v563, 96
    %v567 = vpop.permute.xlu0 %566
    %v569 = vmul.f32 %v564, %v567
    %v570 = vmul.f32 %v552, %v495
    %v571 = vadd.f32 %v569, %v570
    %vm572 = vcmp.gt.s32.totalorder %v354, 2
    %v573 = vsel %vm572, 1, 0
    %v574 = vcvt.s32.f32 %v573
    %576 = vset.pattern.permute.xlu0 0
    %577 = vperm.xlu0 %576, %v574
    %v578 = vpop.permute.xlu0 %577
    %v580 = vmul.f32 %v578, %v571
    %v581 = vsub.f32 1.0, %v574
    %583 = vset.pattern.permute.xlu0 0
    %584 = vperm.xlu0 %583, %v581
    %v585 = vpop.permute.xlu0 %584
    %v587 = vmul.f32 %v585, %v495
    %v588 = vadd.f32 %v580, %v587
    %590 = vrot.lane.b32.xlu0 %v580, 96
    %v591 = vpop.permute.xlu0 %590
    %593 = vst.msk [vmem:[#allocation3 + $0x10] sm:$0xff] %vm92, %v591
    %v594 = vld [vmem:[#allocation7 + $0x20] sm:$0xff]
    %v595 = vld [vmem:[#allocation7 + $0x28] sm:$0xff]
    %v596 = vld [vmem:[#allocation7 + $0x30] sm:$0xff]
    %v597 = vld [vmem:[#allocation7 + $0x38] sm:$0xff]
    %v598 = vld [vmem:[#allocation7 + $0x80] sm:$0x1]
    %v599 = vperm.slane %v598, 0
    %601 = vrot.lane.b32.xlu0 %v588, 96
    %v602 = vpop.permute.xlu0 %601
    %v603 = vsel %vm92, %v602, 0
    %605 = vmatpush.msra.mxu0 0.0
    %606 = vmatpush.msra.mxu0 0.0
    %607 = vmatpush.msra.mxu0 0.0
    %608 = vmatpush.msra.mxu0 0.0
    %609 = vmatpush.msra.mxu0 0.0
    %610 = vmatpush.msra.mxu0 0.0
    %611 = vmatpush.msra.mxu0 0.0
    %612 = vmatpush.msra.mxu0 0.0
    %613 = vmatpush.msra.mxu0 0.0
    %614 = vmatpush.msra.mxu0 0.0
    %615 = vmatpush.msra.mxu0 0.0
    %616 = vmatpush.msra.mxu0 0.0
    %617 = vmatpush.msra.mxu0 %v597
    %618 = vmatpush.msra.mxu0 %v596
    %619 = vmatpush.msra.mxu0 %v595
    %620 = vmatpush.msra.mxu0 %v594
    %621 = vmatmul.f32.gmra.mxu0 %v603
    %v622 = vpop.f32.mrf.mxu0
    %v623 = vadd.f32 %v599, %v622
    %624 = vdwg.mxu0
    %v625 = vld [vmem:[#allocation2 + $0x18] sm:$0xff]
    %v626 = vadd.f32 %v625, %v623
    %v627 = vxor.u32 %v626, 2147483648
    %v628 = vmul.f32 %v627, 1.442695
    %v629 = vpow.pop %v628
    %v630 = vadd.f32 %v629, 1.0
    %v631 = vrcp.pop %v630
    %v632 = vmul.f32 %v630, %v631
    %v633 = vsub.f32 1.0, %v632
    %v634 = vmul.f32 %v631, %v633
    %v635 = vadd.f32 %v631, %v634
    %vm636 = vweird.f32 %v630
    %vm637 = vweird.f32 %v631
    %vm638 = vmor %vm636, %vm637
    %v639 = vsel %vm638, %v631, %v635
    %v640 = vand.u32 2147483647, %v630
    %vm641 = vcmp.eq.f32.partialorder %v640, 8.507059e+37
    %v642 = vand.u32 %v630, 2147483648
    %v643 = vor.u32 1.1754944e-38, %v642
    %v644 = vsel %vm641, %v643, %v639
    %v645 = vmul.f32 1.0, %v644
    %647 = vrot.lane.b32.xlu0 %v623, 64
    %v648 = vpop.permute.xlu0 %647
    %v650 = vmul.f32 %v645, %v648
    %652 = vrot.lane.b32.xlu0 %v650, 64
    %v653 = vpop.permute.xlu0 %652
    %v655 = vadd.f32 %v625, %v653
    %v656 = vtanh.pop %v655
    %v657 = vsub.f32 1.0, %v645
    %659 = vrot.lane.b32.xlu0 %v656, 96
    %v660 = vpop.permute.xlu0 %659
    %v662 = vmul.f32 %v657, %v660
    %v663 = vmul.f32 %v645, %v588
    %v664 = vadd.f32 %v662, %v663
    %vm665 = vcmp.gt.s32.totalorder %v354, 3
    %v666 = vsel %vm665, 1, 0
    %v667 = vcvt.s32.f32 %v666
    %669 = vset.pattern.permute.xlu0 0
    %670 = vperm.xlu0 %669, %v667
    %v671 = vpop.permute.xlu0 %670
    %v673 = vmul.f32 %v671, %v664
    %v674 = vsub.f32 1.0, %v667
    %676 = vset.pattern.permute.xlu0 0
    %677 = vperm.xlu0 %676, %v674
    %v678 = vpop.permute.xlu0 %677
    %v680 = vmul.f32 %v678, %v588
    %v681 = vadd.f32 %v673, %v680
    %683 = vrot.lane.b32.xlu0 %v673, 96
    %v684 = vpop.permute.xlu0 %683
    %686 = vst.msk [vmem:[#allocation3 + $0x18] sm:$0xff] %vm92, %v684
    %v687 = vld [vmem:[#allocation7 + $0x20] sm:$0xff]
    %v688 = vld [vmem:[#allocation7 + $0x28] sm:$0xff]
    %v689 = vld [vmem:[#allocation7 + $0x30] sm:$0xff]
    %v690 = vld [vmem:[#allocation7 + $0x38] sm:$0xff]
    %v691 = vld [vmem:[#allocation7 + $0x80] sm:$0x1]
    %v692 = vperm.slane %v691, 0
    %694 = vrot.lane.b32.xlu0 %v681, 96
    %v695 = vpop.permute.xlu0 %694
    %v696 = vsel %vm92, %v695, 0
    %698 = vmatpush.msra.mxu0 0.0
    %699 = vmatpush.msra.mxu0 0.0
    %700 = vmatpush.msra.mxu0 0.0
    %701 = vmatpush.msra.mxu0 0.0
    %702 = vmatpush.msra.mxu0 0.0
    %703 = vmatpush.msra.mxu0 0.0
    %704 = vmatpush.msra.mxu0 0.0
    %705 = vmatpush.msra.mxu0 0.0
    %706 = vmatpush.msra.mxu0 0.0
    %707 = vmatpush.msra.mxu0 0.0
    %708 = vmatpush.msra.mxu0 0.0
    %709 = vmatpush.msra.mxu0 0.0
    %710 = vmatpush.msra.mxu0 %v690
    %711 = vmatpush.msra.mxu0 %v689
    %712 = vmatpush.msra.mxu0 %v688
    %713 = vmatpush.msra.mxu0 %v687
    %714 = vmatmul.f32.gmra.mxu0 %v696
    %v715 = vpop.f32.mrf.mxu0
    %v716 = vadd.f32 %v692, %v715
    %717 = vdwg.mxu0
    %v718 = vld [vmem:[#allocation2 + $0x20] sm:$0xff]
    %v719 = vadd.f32 %v718, %v716
    %v720 = vxor.u32 %v719, 2147483648
    %v721 = vmul.f32 %v720, 1.442695
    %v722 = vpow.pop %v721
    %v723 = vadd.f32 %v722, 1.0
    %v724 = vrcp.pop %v723
    %v725 = vmul.f32 %v723, %v724
    %v726 = vsub.f32 1.0, %v725
    %v727 = vmul.f32 %v724, %v726
    %v728 = vadd.f32 %v724, %v727
    %vm729 = vweird.f32 %v723
    %vm730 = vweird.f32 %v724
    %vm731 = vmor %vm729, %vm730
    %v732 = vsel %vm731, %v724, %v728
    %v733 = vand.u32 2147483647, %v723
    %vm734 = vcmp.eq.f32.partialorder %v733, 8.507059e+37
    %v735 = vand.u32 %v723, 2147483648
    %v736 = vor.u32 1.1754944e-38, %v735
    %v737 = vsel %vm734, %v736, %v732
    %v738 = vmul.f32 1.0, %v737
    %740 = vrot.lane.b32.xlu0 %v716, 64
    %v741 = vpop.permute.xlu0 %740
    %v743 = vmul.f32 %v738, %v741
    %745 = vrot.lane.b32.xlu0 %v743, 64
    %v746 = vpop.permute.xlu0 %745
    %v748 = vadd.f32 %v718, %v746
    %v749 = vtanh.pop %v748
    %v750 = vsub.f32 1.0, %v738
    %752 = vrot.lane.b32.xlu0 %v749, 96
    %v753 = vpop.permute.xlu0 %752
    %v755 = vmul.f32 %v750, %v753
    %v756 = vmul.f32 %v738, %v681
    %v757 = vadd.f32 %v755, %v756
    %vm758 = vcmp.gt.s32.totalorder %v354, 4
    %v759 = vsel %vm758, 1, 0
    %v760 = vcvt.s32.f32 %v759
    %762 = vset.pattern.permute.xlu0 0
    %763 = vperm.xlu0 %762, %v760
    %v764 = vpop.permute.xlu0 %763
    %v766 = vmul.f32 %v764, %v757
    %v767 = vsub.f32 1.0, %v760
    %769 = vset.pattern.permute.xlu0 0
    %770 = vperm.xlu0 %769, %v767
    %v771 = vpop.permute.xlu0 %770
    %v773 = vmul.f32 %v771, %v681
    %v774 = vadd.f32 %v766, %v773
    %776 = vrot.lane.b32.xlu0 %v766, 96
    %v777 = vpop.permute.xlu0 %776
    %779 = vst.msk [vmem:[#allocation3 + $0x20] sm:$0xff] %vm92, %v777
    %v780 = vld [vmem:[#allocation7 + $0x20] sm:$0xff]
    %v781 = vld [vmem:[#allocation7 + $0x28] sm:$0xff]
    %v782 = vld [vmem:[#allocation7 + $0x30] sm:$0xff]
    %v783 = vld [vmem:[#allocation7 + $0x38] sm:$0xff]
    %v784 = vld [vmem:[#allocation7 + $0x80] sm:$0x1]
    %v785 = vperm.slane %v784, 0
    %787 = vrot.lane.b32.xlu0 %v774, 96
    %v788 = vpop.permute.xlu0 %787
    %v789 = vsel %vm92, %v788, 0
    %791 = vmatpush.msra.mxu0 0.0
    %792 = vmatpush.msra.mxu0 0.0
    %793 = vmatpush.msra.mxu0 0.0
    %794 = vmatpush.msra.mxu0 0.0
    %795 = vmatpush.msra.mxu0 0.0
    %796 = vmatpush.msra.mxu0 0.0
    %797 = vmatpush.msra.mxu0 0.0
    %798 = vmatpush.msra.mxu0 0.0
    %799 = vmatpush.msra.mxu0 0.0
    %800 = vmatpush.msra.mxu0 0.0
    %801 = vmatpush.msra.mxu0 0.0
    %802 = vmatpush.msra.mxu0 0.0
    %803 = vmatpush.msra.mxu0 %v783
    %804 = vmatpush.msra.mxu0 %v782
    %805 = vmatpush.msra.mxu0 %v781
    %806 = vmatpush.msra.mxu0 %v780
    %807 = vmatmul.f32.gmra.mxu0 %v789
    %v808 = vpop.f32.mrf.mxu0
    %v809 = vadd.f32 %v785, %v808
    %810 = vdwg.mxu0
    %v811 = vld [vmem:[#allocation2 + $0x28] sm:$0xff]
    %v812 = vadd.f32 %v811, %v809
    %v813 = vxor.u32 %v812, 2147483648
    %v814 = vmul.f32 %v813, 1.442695
    %v815 = vpow.pop %v814
    %v816 = vadd.f32 %v815, 1.0
    %v817 = vrcp.pop %v816
    %v818 = vmul.f32 %v816, %v817
    %v819 = vsub.f32 1.0, %v818
    %v820 = vmul.f32 %v817, %v819
    %v821 = vadd.f32 %v817, %v820
    %vm822 = vweird.f32 %v816
    %vm823 = vweird.f32 %v817
    %vm824 = vmor %vm822, %vm823
    %v825 = vsel %vm824, %v817, %v821
    %v826 = vand.u32 2147483647, %v816
    %vm827 = vcmp.eq.f32.partialorder %v826, 8.507059e+37
    %v828 = vand.u32 %v816, 2147483648
    %v829 = vor.u32 1.1754944e-38, %v828
    %v830 = vsel %vm827, %v829, %v825
    %v831 = vmul.f32 1.0, %v830
    %833 = vrot.lane.b32.xlu0 %v809, 64
    %v834 = vpop.permute.xlu0 %833
    %v836 = vmul.f32 %v831, %v834
    %838 = vrot.lane.b32.xlu0 %v836, 64
    %v839 = vpop.permute.xlu0 %838
    %v841 = vadd.f32 %v811, %v839
    %v842 = vtanh.pop %v841
    %v843 = vsub.f32 1.0, %v831
    %845 = vrot.lane.b32.xlu0 %v842, 96
    %v846 = vpop.permute.xlu0 %845
    %v848 = vmul.f32 %v843, %v846
    %v849 = vmul.f32 %v831, %v774
    %v850 = vadd.f32 %v848, %v849
    %vm851 = vcmp.gt.s32.totalorder %v354, 5
    %v852 = vsel %vm851, 1, 0
    %v853 = vcvt.s32.f32 %v852
    %855 = vset.pattern.permute.xlu0 0
    %856 = vperm.xlu0 %855, %v853
    %v857 = vpop.permute.xlu0 %856
    %v859 = vmul.f32 %v857, %v850
    %v860 = vsub.f32 1.0, %v853
    %862 = vset.pattern.permute.xlu0 0
    %863 = vperm.xlu0 %862, %v860
    %v864 = vpop.permute.xlu0 %863
    %v866 = vmul.f32 %v864, %v774
    %v867 = vadd.f32 %v859, %v866
    %869 = vrot.lane.b32.xlu0 %v859, 96
    %v870 = vpop.permute.xlu0 %869
    %872 = vst.msk [vmem:[#allocation3 + $0x28] sm:$0xff] %vm92, %v870
    %v873 = vld [vmem:[#allocation7 + $0x20] sm:$0xff]
    %v874 = vld [vmem:[#allocation7 + $0x28] sm:$0xff]
    %v875 = vld [vmem:[#allocation7 + $0x30] sm:$0xff]
    %v876 = vld [vmem:[#allocation7 + $0x38] sm:$0xff]
    %v877 = vld [vmem:[#allocation7 + $0x80] sm:$0x1]
    %v878 = vperm.slane %v877, 0
    %880 = vrot.lane.b32.xlu0 %v867, 96
    %v881 = vpop.permute.xlu0 %880
    %v882 = vsel %vm92, %v881, 0
    %884 = vmatpush.msra.mxu0 0.0
    %885 = vmatpush.msra.mxu0 0.0
    %886 = vmatpush.msra.mxu0 0.0
    %887 = vmatpush.msra.mxu0 0.0
    %888 = vmatpush.msra.mxu0 0.0
    %889 = vmatpush.msra.mxu0 0.0
    %890 = vmatpush.msra.mxu0 0.0
    %891 = vmatpush.msra.mxu0 0.0
    %892 = vmatpush.msra.mxu0 0.0
    %893 = vmatpush.msra.mxu0 0.0
    %894 = vmatpush.msra.mxu0 0.0
    %895 = vmatpush.msra.mxu0 0.0
    %896 = vmatpush.msra.mxu0 %v876
    %897 = vmatpush.msra.mxu0 %v875
    %898 = vmatpush.msra.mxu0 %v874
    %899 = vmatpush.msra.mxu0 %v873
    %900 = vmatmul.f32.gmra.mxu0 %v882
    %v901 = vpop.f32.mrf.mxu0
    %v902 = vadd.f32 %v878, %v901
    %903 = vdwg.mxu0
    %v904 = vld [vmem:[#allocation2 + $0x30] sm:$0xff]
    %v905 = vadd.f32 %v904, %v902
    %v906 = vxor.u32 %v905, 2147483648
    %v907 = vmul.f32 %v906, 1.442695
    %v908 = vpow.pop %v907
    %v909 = vadd.f32 %v908, 1.0
    %v910 = vrcp.pop %v909
    %v911 = vmul.f32 %v909, %v910
    %v912 = vsub.f32 1.0, %v911
    %v913 = vmul.f32 %v910, %v912
    %v914 = vadd.f32 %v910, %v913
    %vm915 = vweird.f32 %v909
    %vm916 = vweird.f32 %v910
    %vm917 = vmor %vm915, %vm916
    %v918 = vsel %vm917, %v910, %v914
    %v919 = vand.u32 2147483647, %v909
    %vm920 = vcmp.eq.f32.partialorder %v919, 8.507059e+37
    %v921 = vand.u32 %v909, 2147483648
    %v922 = vor.u32 1.1754944e-38, %v921
    %v923 = vsel %vm920, %v922, %v918
    %v924 = vmul.f32 1.0, %v923
    %926 = vrot.lane.b32.xlu0 %v902, 64
    %v927 = vpop.permute.xlu0 %926
    %v929 = vmul.f32 %v924, %v927
    %931 = vrot.lane.b32.xlu0 %v929, 64
    %v932 = vpop.permute.xlu0 %931
    %v934 = vadd.f32 %v904, %v932
    %v935 = vtanh.pop %v934
    %v936 = vsub.f32 1.0, %v924
    %938 = vrot.lane.b32.xlu0 %v935, 96
    %v939 = vpop.permute.xlu0 %938
    %v941 = vmul.f32 %v936, %v939
    %v942 = vmul.f32 %v924, %v867
    %v943 = vadd.f32 %v941, %v942
    %vm944 = vcmp.gt.s32.totalorder %v354, 6
    %v945 = vsel %vm944, 1, 0
    %v946 = vcvt.s32.f32 %v945
    %948 = vset.pattern.permute.xlu0 0
    %949 = vperm.xlu0 %948, %v946
    %v950 = vpop.permute.xlu0 %949
    %v952 = vmul.f32 %v950, %v943
    %v953 = vsub.f32 1.0, %v946
    %955 = vset.pattern.permute.xlu0 0
    %956 = vperm.xlu0 %955, %v953
    %v957 = vpop.permute.xlu0 %956
    %v959 = vmul.f32 %v957, %v867
    %v960 = vadd.f32 %v952, %v959
    %962 = vrot.lane.b32.xlu0 %v952, 96
    %v963 = vpop.permute.xlu0 %962
    %965 = vst.msk [vmem:[#allocation3 + $0x30] sm:$0xff] %vm92, %v963
    %v966 = vld [vmem:[#allocation7 + $0x20] sm:$0xff]
    %v967 = vld [vmem:[#allocation7 + $0x28] sm:$0xff]
    %v968 = vld [vmem:[#allocation7 + $0x30] sm:$0xff]
    %v969 = vld [vmem:[#allocation7 + $0x38] sm:$0xff]
    %v970 = vld [vmem:[#allocation7 + $0x80] sm:$0x1]
    %v971 = vperm.slane %v970, 0
    %973 = vrot.lane.b32.xlu0 %v960, 96
    %v974 = vpop.permute.xlu0 %973
    %v975 = vsel %vm92, %v974, 0
    %977 = vmatpush.msra.mxu0 0.0
    %978 = vmatpush.msra.mxu0 0.0
    %979 = vmatpush.msra.mxu0 0.0
    %980 = vmatpush.msra.mxu0 0.0
    %981 = vmatpush.msra.mxu0 0.0
    %982 = vmatpush.msra.mxu0 0.0
    %983 = vmatpush.msra.mxu0 0.0
    %984 = vmatpush.msra.mxu0 0.0
    %985 = vmatpush.msra.mxu0 0.0
    %986 = vmatpush.msra.mxu0 0.0
    %987 = vmatpush.msra.mxu0 0.0
    %988 = vmatpush.msra.mxu0 0.0
    %989 = vmatpush.msra.mxu0 %v969
    %990 = vmatpush.msra.mxu0 %v968
    %991 = vmatpush.msra.mxu0 %v967
    %992 = vmatpush.msra.mxu0 %v966
    %993 = vmatmul.f32.gmra.mxu0 %v975
    %v994 = vpop.f32.mrf.mxu0
    %v995 = vadd.f32 %v971, %v994
    %996 = vdwg.mxu0
    %v997 = vld [vmem:[#allocation2 + $0x38] sm:$0xff]
    %v998 = vadd.f32 %v997, %v995
    %v999 = vxor.u32 %v998, 2147483648
    %v1000 = vmul.f32 %v999, 1.442695
    %v1001 = vpow.pop %v1000
    %v1002 = vadd.f32 %v1001, 1.0
    %v1003 = vrcp.pop %v1002
    %v1004 = vmul.f32 %v1002, %v1003
    %v1005 = vsub.f32 1.0, %v1004
    %v1006 = vmul.f32 %v1003, %v1005
    %v1007 = vadd.f32 %v1003, %v1006
    %vm1008 = vweird.f32 %v1002
    %vm1009 = vweird.f32 %v1003
    %vm1010 = vmor %vm1008, %vm1009
    %v1011 = vsel %vm1010, %v1003, %v1007
    %v1012 = vand.u32 2147483647, %v1002
    %vm1013 = vcmp.eq.f32.partialorder %v1012, 8.507059e+37
    %v1014 = vand.u32 %v1002, 2147483648
    %v1015 = vor.u32 1.1754944e-38, %v1014
    %v1016 = vsel %vm1013, %v1015, %v1011
    %v1017 = vmul.f32 1.0, %v1016
    %1019 = vrot.lane.b32.xlu0 %v995, 64
    %v1020 = vpop.permute.xlu0 %1019
    %v1022 = vmul.f32 %v1017, %v1020
    %1024 = vrot.lane.b32.xlu0 %v1022, 64
    %v1025 = vpop.permute.xlu0 %1024
    %v1027 = vadd.f32 %v997, %v1025
    %v1028 = vtanh.pop %v1027
    %v1029 = vsub.f32 1.0, %v1017
    %1031 = vrot.lane.b32.xlu0 %v1028, 96
    %v1032 = vpop.permute.xlu0 %1031
    %v1034 = vmul.f32 %v1029, %v1032
    %v1035 = vmul.f32 %v1017, %v960
    %v1036 = vadd.f32 %v1034, %v1035
    %vm1037 = vcmp.gt.s32.totalorder %v354, 7
    %v1038 = vsel %vm1037, 1, 0
    %v1039 = vcvt.s32.f32 %v1038
    %1041 = vset.pattern.permute.xlu0 0
    %1042 = vperm.xlu0 %1041, %v1039
    %v1043 = vpop.permute.xlu0 %1042
    %v1045 = vmul.f32 %v1043, %v1036
    %v1046 = vsub.f32 1.0, %v1039
    %1048 = vset.pattern.permute.xlu0 0
    %1049 = vperm.xlu0 %1048, %v1046
    %v1050 = vpop.permute.xlu0 %1049
    %v1052 = vmul.f32 %v1050, %v960
    %v1053 = vadd.f32 %v1045, %v1052
    %1055 = vrot.lane.b32.xlu0 %v1045, 96
    %v1056 = vpop.permute.xlu0 %1055
    %1058 = vst.msk [vmem:[#allocation3 + $0x38] sm:$0xff] %vm92, %v1056
    %v1059 = vld [vmem:[#allocation4] sm:$0xff]
    %v1060 = vld [vmem:[#allocation5] sm:$0xff]
    %v1061 = vld [vmem:[#allocation7 + $0xa8] sm:$0xff]
    %v1062 = vld [vmem:[#allocation7 + $0xb0] sm:$0xff]
    %v1063 = vld [vmem:[#allocation7 + $0xb8] sm:$0xff]
    %v1064 = vld [vmem:[#allocation7 + $0xc0] sm:$0xff]
    %1066 = vrot.lane.b32.xlu0 %v1053, 96
    %v1067 = vpop.permute.xlu0 %1066
    %v1068 = vsel %vm92, %v1067, 0
    %1070 = vmatpush.msra.mxu0 0.0
    %1071 = vmatpush.msra.mxu0 0.0
    %1072 = vmatpush.msra.mxu0 0.0
    %1073 = vmatpush.msra.mxu0 0.0
    %1074 = vmatpush.msra.mxu0 0.0
    %1075 = vmatpush.msra.mxu0 0.0
    %1076 = vmatpush.msra.mxu0 0.0
    %1077 = vmatpush.msra.mxu0 0.0
    %1078 = vmatpush.msra.mxu0 0.0
    %1079 = vmatpush.msra.mxu0 0.0
    %1080 = vmatpush.msra.mxu0 0.0
    %1081 = vmatpush.msra.mxu0 0.0
    %1082 = vmatpush.msra.mxu0 %v1064
    %1083 = vmatpush.msra.mxu0 %v1063
    %1084 = vmatpush.msra.mxu0 %v1062
    %1085 = vmatpush.msra.mxu0 %v1061
    %1086 = vmatmul.f32.gmra.mxu0 %v1068
    %v1087 = vpop.f32.mrf.mxu0
    %v1088 = vadd.f32 0.0, %v1087
    %1089 = vdwg.mxu0
    %v1090 = vadd.f32 %v1059, %v1088
    %v1091 = vsel %vm292, %v1090, -inf
    %1092 = vmax.xlane.f32.xlu0 %v1091
    %v1093 = vpop.xlane.xlu0 %1092
    %v1094 = vsub.f32 %v1090, %v1093
    %v1095 = vmul.f32 %v1094, 1.442695
    %v1096 = vpow.pop %v1095
    %v1097 = vsel %vm292, %v1096, 0.0
    %1098 = vadd.xlane.f32.xlu0 %v1097
    %v1099 = vpop.xlane.xlu0 %1098
    %v1100 = vrcp.pop %v1099
    %v1101 = vmul.f32 %v1096, %v1100
    %v1102 = vld [vmem:[#allocation7 + $0x168] sm:$0xff]
    %v1104 = vsel %vm292, %v1101, 0
    %1106 = vmatpush.msra.mxu0 0.0
    %1107 = vmatpush.msra.mxu0 0.0
    %1108 = vmatpush.msra.mxu0 0.0
    %1109 = vmatpush.msra.mxu0 0.0
    %1110 = vmatpush.msra.mxu0 0.0
    %1111 = vmatpush.msra.mxu0 0.0
    %1112 = vmatpush.msra.mxu0 0.0
    %1113 = vmatpush.msra.mxu0 0.0
    %1114 = vmatpush.msra.mxu0 0.0
    %1115 = vmatpush.msra.mxu0 0.0
    %1116 = vmatpush.msra.mxu0 0.0
    %1117 = vmatpush.msra.mxu0 0.0
    %1118 = vmatpush.msra.mxu0 0.0
    %1119 = vmatpush.msra.mxu0 0.0
    %1120 = vmatpush.msra.mxu0 0.0
    %1121 = vmatpush.msra.mxu0 %v1102
    %1122 = vmatmul.f32.gmra.mxu0 %v1104
    %v1123 = vpop.f32.mrf.mxu0
    %v1124 = vadd.f32 0.0, %v1123
    %1125 = vdwg.mxu0
    %v1126 = vld [vmem:[#allocation7 + $0x170] sm:$0xff]
    %v1127 = vmul.f32 %v1124, %v1126
    %v1128 = vld [vmem:[#allocation3] sm:$0xff]
    %v1129 = vld [vmem:[#allocation3 + $0x8] sm:$0xff]
    %v1130 = vld [vmem:[#allocation3 + $0x10] sm:$0xff]
    %v1131 = vld [vmem:[#allocation3 + $0x18] sm:$0xff]
    %v1132 = vld [vmem:[#allocation3 + $0x20] sm:$0xff]
    %v1133 = vld [vmem:[#allocation3 + $0x28] sm:$0xff]
    %v1134 = vld [vmem:[#allocation3 + $0x30] sm:$0xff]
    %v1135 = vld [vmem:[#allocation3 + $0x38] sm:$0xff]
    %vm1136 = vcmask 523264
    %v1138 = vsel %vm1136, %v1127, 0
    %1140 = vmatpush.msra.mxu0 0.0
    %1141 = vmatpush.msra.mxu0 0.0
    %1142 = vmatpush.msra.mxu0 0.0
    %1143 = vmatpush.msra.mxu0 0.0
    %1144 = vmatpush.msra.mxu0 0.0
    %1145 = vmatpush.msra.mxu0 0.0
    %1146 = vmatpush.msra.mxu0 0.0
    %1147 = vmatpush.msra.mxu0 0.0
    %1148 = vmatpush.msra.mxu0 %v1135
    %1149 = vmatpush.msra.mxu0 %v1134
    %1150 = vmatpush.msra.mxu0 %v1133
    %1151 = vmatpush.msra.mxu0 %v1132
    %1152 = vmatpush.msra.mxu0 %v1131
    %1153 = vmatpush.msra.mxu0 %v1130
    %1154 = vmatpush.msra.mxu0 %v1129
    %1155 = vmatpush.msra.mxu0 %v1128
    %1156 = vmatmul.f32.gmra.mxu0 %v1138
    %v1157 = vpop.f32.mrf.mxu0
    %v1158 = vadd.f32 0.0, %v1157
    %1159 = vdwg.mxu0
    %v1160 = vld [vmem:[#allocation7 + $0xe8] sm:$0xff]
    %v1161 = vld [vmem:[#allocation7 + $0xf0] sm:$0xff]
    %v1162 = vld [vmem:[#allocation7 + $0xf8] sm:$0xff]
    %v1163 = vld [vmem:[#allocation7 + $0x100] sm:$0xff]
    %v1165 = vsel %vm92, %v1158, 0
    %1167 = vmatpush.msra.mxu0 0.0
    %1168 = vmatpush.msra.mxu0 0.0
    %1169 = vmatpush.msra.mxu0 0.0
    %1170 = vmatpush.msra.mxu0 0.0
    %1171 = vmatpush.msra.mxu0 0.0
    %1172 = vmatpush.msra.mxu0 0.0
    %1173 = vmatpush.msra.mxu0 0.0
    %1174 = vmatpush.msra.mxu0 0.0
    %1175 = vmatpush.msra.mxu0 0.0
    %1176 = vmatpush.msra.mxu0 0.0
    %1177 = vmatpush.msra.mxu0 0.0
    %1178 = vmatpush.msra.mxu0 0.0
    %1179 = vmatpush.msra.mxu0 %v1163
    %1180 = vmatpush.msra.mxu0 %v1162
    %1181 = vmatpush.msra.mxu0 %v1161
    %1182 = vmatpush.msra.mxu0 %v1160
    %1183 = vmatmul.f32.gmra.mxu0 %v1165
    %v1184 = vpop.f32.mrf.mxu0
    %v1185 = vadd.f32 0.0, %v1184
    %1186 = vdwg.mxu0
    %v1187 = vadd.f32 %v1060, %v1185
    %v1188 = vmax.f32 %v1187, 0.0
    %v1189 = vld [vmem:[#allocation7 + $0x40] sm:$0xff]
    %v1190 = vld [vmem:[#allocation7 + $0x48] sm:$0xff]
    %v1191 = vld [vmem:[#allocation7 + $0x50] sm:$0xff]
    %v1192 = vld [vmem:[#allocation7 + $0x58] sm:$0xff]
    %v1193 = vld [vmem:[#allocation7 + $0x81] sm:$0x1]
    %v1194 = vperm.slane %v1193, 0
    %v1196 = vsel %vm92, %v1188, 0
    %1198 = vmatpush.msra.mxu0 0.0
    %1199 = vmatpush.msra.mxu0 0.0
    %1200 = vmatpush.msra.mxu0 0.0
    %1201 = vmatpush.msra.mxu0 0.0
    %1202 = vmatpush.msra.mxu0 0.0
    %1203 = vmatpush.msra.mxu0 0.0
    %1204 = vmatpush.msra.mxu0 0.0
    %1205 = vmatpush.msra.mxu0 0.0
    %1206 = vmatpush.msra.mxu0 0.0
    %1207 = vmatpush.msra.mxu0 0.0
    %1208 = vmatpush.msra.mxu0 0.0
    %1209 = vmatpush.msra.mxu0 0.0
    %1210 = vmatpush.msra.mxu0 %v1192
    %1211 = vmatpush.msra.mxu0 %v1191
    %1212 = vmatpush.msra.mxu0 %v1190
    %1213 = vmatpush.msra.mxu0 %v1189
    %1214 = vmatmul.f32.gmra.mxu0 %v1196
    %v1215 = vpop.f32.mrf.mxu0
    %v1216 = vadd.f32 %v1194, %v1215
    %1217 = vdwg.mxu0
    %v1218 = vld [vmem:[#allocation7 + $0x60] sm:$0xff]
    %v1219 = vld [vmem:[#allocation7 + $0x68] sm:$0xff]
    %v1220 = vld [vmem:[#allocation7 + $0x70] sm:$0xff]
    %v1221 = vld [vmem:[#allocation7 + $0x78] sm:$0xff]
    %v1222 = vld [vmem:[#allocation7 + $0x82] sm:$0x1]
    %v1223 = vperm.slane %v1222, 0
    %1224 = vmatpush.msra.mxu0 0.0
    %1225 = vmatpush.msra.mxu0 0.0
    %1226 = vmatpush.msra.mxu0 0.0
    %1227 = vmatpush.msra.mxu0 0.0
    %1228 = vmatpush.msra.mxu0 0.0
    %1229 = vmatpush.msra.mxu0 0.0
    %1230 = vmatpush.msra.mxu0 0.0
    %1231 = vmatpush.msra.mxu0 0.0
    %1232 = vmatpush.msra.mxu0 0.0
    %1233 = vmatpush.msra.mxu0 0.0
    %1234 = vmatpush.msra.mxu0 0.0
    %1235 = vmatpush.msra.mxu0 0.0
    %1236 = vmatpush.msra.mxu0 %v1221
    %1237 = vmatpush.msra.mxu0 %v1220
    %1238 = vmatpush.msra.mxu0 %v1219
    %1239 = vmatpush.msra.mxu0 %v1218
    %1240 = vmatmul.f32.gmra.mxu0 %v1068
    %v1241 = vpop.f32.mrf.mxu0
    %v1242 = vadd.f32 %v1223, %v1241
    %1243 = vdwg.mxu0
    %v1244 = vadd.f32 %v1216, %v1242
    %v1245 = vxor.u32 %v1244, 2147483648
    %v1246 = vmul.f32 %v1245, 1.442695
    %v1247 = vpow.pop %v1246
    %v1248 = vadd.f32 %v1247, 1.0
    %v1249 = vrcp.pop %v1248
    %v1250 = vmul.f32 %v1248, %v1249
    %v1251 = vsub.f32 1.0, %v1250
    %v1252 = vmul.f32 %v1249, %v1251
    %v1253 = vadd.f32 %v1249, %v1252
    %vm1254 = vweird.f32 %v1248
    %vm1255 = vweird.f32 %v1249
    %vm1256 = vmor %vm1254, %vm1255
    %v1257 = vsel %vm1256, %v1249, %v1253
    %v1258 = vand.u32 2147483647, %v1248
    %vm1259 = vcmp.eq.f32.partialorder %v1258, 8.507059e+37
    %v1260 = vand.u32 %v1248, 2147483648
    %v1261 = vor.u32 1.1754944e-38, %v1260
    %v1262 = vsel %vm1259, %v1261, %v1257
    %v1263 = vmul.f32 1.0, %v1262
    %1265 = vrot.lane.b32.xlu0 %v1242, 64
    %v1266 = vpop.permute.xlu0 %1265
    %v1268 = vmul.f32 %v1263, %v1266
    %1270 = vrot.lane.b32.xlu0 %v1268, 64
    %v1271 = vpop.permute.xlu0 %1270
    %v1273 = vadd.f32 %v1216, %v1271
    %v1274 = vtanh.pop %v1273
    %v1275 = vsub.f32 1.0, %v1263
    %1277 = vrot.lane.b32.xlu0 %v1274, 96
    %v1278 = vpop.permute.xlu0 %1277
    %v1280 = vmul.f32 %v1275, %v1278
    %v1281 = vmul.f32 %v1263, %v1053
    %v1282 = vadd.f32 %v1280, %v1281
    %1284 = vrot.lane.b32.xlu0 %v1282, 96
    %v1285 = vpop.permute.xlu0 %1284
    %1287 = vst.msk [vmem:[#allocation6] sm:$0xff] %vm92, %v1285
    %v1288 = vld [vmem:[#allocation4 + $0x8] sm:$0xff]
    %v1289 = vld [vmem:[#allocation5 + $0x8] sm:$0xff]
    %v1290 = vld [vmem:[#allocation7 + $0xa8] sm:$0xff]
    %v1291 = vld [vmem:[#allocation7 + $0xb0] sm:$0xff]
    %v1292 = vld [vmem:[#allocation7 + $0xb8] sm:$0xff]
    %v1293 = vld [vmem:[#allocation7 + $0xc0] sm:$0xff]
    %v1294 = vsel %vm92, %v1285, 0
    %1296 = vmatpush.msra.mxu0 0.0
    %1297 = vmatpush.msra.mxu0 0.0
    %1298 = vmatpush.msra.mxu0 0.0
    %1299 = vmatpush.msra.mxu0 0.0
    %1300 = vmatpush.msra.mxu0 0.0
    %1301 = vmatpush.msra.mxu0 0.0
    %1302 = vmatpush.msra.mxu0 0.0
    %1303 = vmatpush.msra.mxu0 0.0
    %1304 = vmatpush.msra.mxu0 0.0
    %1305 = vmatpush.msra.mxu0 0.0
    %1306 = vmatpush.msra.mxu0 0.0
    %1307 = vmatpush.msra.mxu0 0.0
    %1308 = vmatpush.msra.mxu0 %v1293
    %1309 = vmatpush.msra.mxu0 %v1292
    %1310 = vmatpush.msra.mxu0 %v1291
    %1311 = vmatpush.msra.mxu0 %v1290
    %1312 = vmatmul.f32.gmra.mxu0 %v1294
    %v1313 = vpop.f32.mrf.mxu0
    %v1314 = vadd.f32 0.0, %v1313
    %1315 = vdwg.mxu0
    %v1316 = vadd.f32 %v1288, %v1314
    %v1317 = vsel %vm292, %v1316, -inf
    %1318 = vmax.xlane.f32.xlu0 %v1317
    %v1319 = vpop.xlane.xlu0 %1318
    %v1320 = vsub.f32 %v1316, %v1319
    %v1321 = vmul.f32 %v1320, 1.442695
    %v1322 = vpow.pop %v1321
    %v1323 = vsel %vm292, %v1322, 0.0
    %1324 = vadd.xlane.f32.xlu0 %v1323
    %v1325 = vpop.xlane.xlu0 %1324
    %v1326 = vrcp.pop %v1325
    %v1327 = vmul.f32 %v1322, %v1326
    %v1328 = vld [vmem:[#allocation7 + $0x168] sm:$0xff]
    %v1330 = vsel %vm292, %v1327, 0
    %1332 = vmatpush.msra.mxu0 0.0
    %1333 = vmatpush.msra.mxu0 0.0
    %1334 = vmatpush.msra.mxu0 0.0
    %1335 = vmatpush.msra.mxu0 0.0
    %1336 = vmatpush.msra.mxu0 0.0
    %1337 = vmatpush.msra.mxu0 0.0
    %1338 = vmatpush.msra.mxu0 0.0
    %1339 = vmatpush.msra.mxu0 0.0
    %1340 = vmatpush.msra.mxu0 0.0
    %1341 = vmatpush.msra.mxu0 0.0
    %1342 = vmatpush.msra.mxu0 0.0
    %1343 = vmatpush.msra.mxu0 0.0
    %1344 = vmatpush.msra.mxu0 0.0
    %1345 = vmatpush.msra.mxu0 0.0
    %1346 = vmatpush.msra.mxu0 0.0
    %1347 = vmatpush.msra.mxu0 %v1328
    %1348 = vmatmul.f32.gmra.mxu0 %v1330
    %v1349 = vpop.f32.mrf.mxu0
    %v1350 = vadd.f32 0.0, %v1349
    %1351 = vdwg.mxu0
    %v1352 = vld [vmem:[#allocation7 + $0x170] sm:$0xff]
    %v1353 = vmul.f32 %v1350, %v1352
    %v1354 = vld [vmem:[#allocation3] sm:$0xff]
    %v1355 = vld [vmem:[#allocation3 + $0x8] sm:$0xff]
    %v1356 = vld [vmem:[#allocation3 + $0x10] sm:$0xff]
    %v1357 = vld [vmem:[#allocation3 + $0x18] sm:$0xff]
    %v1358 = vld [vmem:[#allocation3 + $0x20] sm:$0xff]
    %v1359 = vld [vmem:[#allocation3 + $0x28] sm:$0xff]
    %v1360 = vld [vmem:[#allocation3 + $0x30] sm:$0xff]
    %v1361 = vld [vmem:[#allocation3 + $0x38] sm:$0xff]
    %v1363 = vsel %vm1136, %v1353, 0
    %1365 = vmatpush.msra.mxu0 0.0
    %1366 = vmatpush.msra.mxu0 0.0
    %1367 = vmatpush.msra.mxu0 0.0
    %1368 = vmatpush.msra.mxu0 0.0
    %1369 = vmatpush.msra.mxu0 0.0
    %1370 = vmatpush.msra.mxu0 0.0
    %1371 = vmatpush.msra.mxu0 0.0
    %1372 = vmatpush.msra.mxu0 0.0
    %1373 = vmatpush.msra.mxu0 %v1361
    %1374 = vmatpush.msra.mxu0 %v1360
    %1375 = vmatpush.msra.mxu0 %v1359
    %1376 = vmatpush.msra.mxu0 %v1358
    %1377 = vmatpush.msra.mxu0 %v1357
    %1378 = vmatpush.msra.mxu0 %v1356
    %1379 = vmatpush.msra.mxu0 %v1355
    %1380 = vmatpush.msra.mxu0 %v1354
    %1381 = vmatmul.f32.gmra.mxu0 %v1363
    %v1382 = vpop.f32.mrf.mxu0
    %v1383 = vadd.f32 0.0, %v1382
    %1384 = vdwg.mxu0
    %v1385 = vld [vmem:[#allocation7 + $0xe8] sm:$0xff]
    %v1386 = vld [vmem:[#allocation7 + $0xf0] sm:$0xff]
    %v1387 = vld [vmem:[#allocation7 + $0xf8] sm:$0xff]
    %v1388 = vld [vmem:[#allocation7 + $0x100] sm:$0xff]
    %v1390 = vsel %vm92, %v1383, 0
    %1392 = vmatpush.msra.mxu0 0.0
    %1393 = vmatpush.msra.mxu0 0.0
    %1394 = vmatpush.msra.mxu0 0.0
    %1395 = vmatpush.msra.mxu0 0.0
    %1396 = vmatpush.msra.mxu0 0.0
    %1397 = vmatpush.msra.mxu0 0.0
    %1398 = vmatpush.msra.mxu0 0.0
    %1399 = vmatpush.msra.mxu0 0.0
    %1400 = vmatpush.msra.mxu0 0.0
    %1401 = vmatpush.msra.mxu0 0.0
    %1402 = vmatpush.msra.mxu0 0.0
    %1403 = vmatpush.msra.mxu0 0.0
    %1404 = vmatpush.msra.mxu0 %v1388
    %1405 = vmatpush.msra.mxu0 %v1387
    %1406 = vmatpush.msra.mxu0 %v1386
    %1407 = vmatpush.msra.mxu0 %v1385
    %1408 = vmatmul.f32.gmra.mxu0 %v1390
    %v1409 = vpop.f32.mrf.mxu0
    %v1410 = vadd.f32 0.0, %v1409
    %1411 = vdwg.mxu0
    %v1412 = vadd.f32 %v1289, %v1410
    %v1413 = vmax.f32 %v1412, 0.0
    %v1414 = vld [vmem:[#allocation7 + $0x40] sm:$0xff]
    %v1415 = vld [vmem:[#allocation7 + $0x48] sm:$0xff]
    %v1416 = vld [vmem:[#allocation7 + $0x50] sm:$0xff]
    %v1417 = vld [vmem:[#allocation7 + $0x58] sm:$0xff]
    %v1418 = vld [vmem:[#allocation7 + $0x81] sm:$0x1]
    %v1419 = vperm.slane %v1418, 0
    %v1421 = vsel %vm92, %v1413, 0
    %1423 = vmatpush.msra.mxu0 0.0
    %1424 = vmatpush.msra.mxu0 0.0
    %1425 = vmatpush.msra.mxu0 0.0
    %1426 = vmatpush.msra.mxu0 0.0
    %1427 = vmatpush.msra.mxu0 0.0
    %1428 = vmatpush.msra.mxu0 0.0
    %1429 = vmatpush.msra.mxu0 0.0
    %1430 = vmatpush.msra.mxu0 0.0
    %1431 = vmatpush.msra.mxu0 0.0
    %1432 = vmatpush.msra.mxu0 0.0
    %1433 = vmatpush.msra.mxu0 0.0
    %1434 = vmatpush.msra.mxu0 0.0
    %1435 = vmatpush.msra.mxu0 %v1417
    %1436 = vmatpush.msra.mxu0 %v1416
    %1437 = vmatpush.msra.mxu0 %v1415
    %1438 = vmatpush.msra.mxu0 %v1414
    %1439 = vmatmul.f32.gmra.mxu0 %v1421
    %v1440 = vpop.f32.mrf.mxu0
    %v1441 = vadd.f32 %v1419, %v1440
    %1442 = vdwg.mxu0
    %v1443 = vld [vmem:[#allocation7 + $0x60] sm:$0xff]
    %v1444 = vld [vmem:[#allocation7 + $0x68] sm:$0xff]
    %v1445 = vld [vmem:[#allocation7 + $0x70] sm:$0xff]
    %v1446 = vld [vmem:[#allocation7 + $0x78] sm:$0xff]
    %v1447 = vld [vmem:[#allocation7 + $0x82] sm:$0x1]
    %v1448 = vperm.slane %v1447, 0
    %1449 = vmatpush.msra.mxu0 0.0
    %1450 = vmatpush.msra.mxu0 0.0
    %1451 = vmatpush.msra.mxu0 0.0
    %1452 = vmatpush.msra.mxu0 0.0
    %1453 = vmatpush.msra.mxu0 0.0
    %1454 = vmatpush.msra.mxu0 0.0
    %1455 = vmatpush.msra.mxu0 0.0
    %1456 = vmatpush.msra.mxu0 0.0
    %1457 = vmatpush.msra.mxu0 0.0
    %1458 = vmatpush.msra.mxu0 0.0
    %1459 = vmatpush.msra.mxu0 0.0
    %1460 = vmatpush.msra.mxu0 0.0
    %1461 = vmatpush.msra.mxu0 %v1446
    %1462 = vmatpush.msra.mxu0 %v1445
    %1463 = vmatpush.msra.mxu0 %v1444
    %1464 = vmatpush.msra.mxu0 %v1443
    %1465 = vmatmul.f32.gmra.mxu0 %v1294
    %v1466 = vpop.f32.mrf.mxu0
    %v1467 = vadd.f32 %v1448, %v1466
    %1468 = vdwg.mxu0
    %v1469 = vadd.f32 %v1441, %v1467
    %v1470 = vxor.u32 %v1469, 2147483648
    %v1471 = vmul.f32 %v1470, 1.442695
    %v1472 = vpow.pop %v1471
    %v1473 = vadd.f32 %v1472, 1.0
    %v1474 = vrcp.pop %v1473
    %v1475 = vmul.f32 %v1473, %v1474
    %v1476 = vsub.f32 1.0, %v1475
    %v1477 = vmul.f32 %v1474, %v1476
    %v1478 = vadd.f32 %v1474, %v1477
    %vm1479 = vweird.f32 %v1473
    %vm1480 = vweird.f32 %v1474
    %vm1481 = vmor %vm1479, %vm1480
    %v1482 = vsel %vm1481, %v1474, %v1478
    %v1483 = vand.u32 2147483647, %v1473
    %vm1484 = vcmp.eq.f32.partialorder %v1483, 8.507059e+37
    %v1485 = vand.u32 %v1473, 2147483648
    %v1486 = vor.u32 1.1754944e-38, %v1485
    %v1487 = vsel %vm1484, %v1486, %v1482
    %v1488 = vmul.f32 1.0, %v1487
    %1490 = vrot.lane.b32.xlu0 %v1467, 64
    %v1491 = vpop.permute.xlu0 %1490
    %v1493 = vmul.f32 %v1488, %v1491
    %1495 = vrot.lane.b32.xlu0 %v1493, 64
    %v1496 = vpop.permute.xlu0 %1495
    %v1498 = vadd.f32 %v1441, %v1496
    %v1499 = vtanh.pop %v1498
    %v1500 = vsub.f32 1.0, %v1488
    %1502 = vrot.lane.b32.xlu0 %v1499, 96
    %v1503 = vpop.permute.xlu0 %1502
    %v1505 = vmul.f32 %v1500, %v1503
    %v1506 = vmul.f32 %v1488, %v1282
    %v1507 = vadd.f32 %v1505, %v1506
    %1509 = vrot.lane.b32.xlu0 %v1507, 96
    %v1510 = vpop.permute.xlu0 %1509
    %1512 = vst.msk [vmem:[#allocation6 + $0x8] sm:$0xff] %vm92, %v1510
    %v1513 = vld [vmem:[#allocation4 + $0x10] sm:$0xff]
    %v1514 = vld [vmem:[#allocation5 + $0x10] sm:$0xff]
    %v1515 = vld [vmem:[#allocation7 + $0xa8] sm:$0xff]
    %v1516 = vld [vmem:[#allocation7 + $0xb0] sm:$0xff]
    %v1517 = vld [vmem:[#allocation7 + $0xb8] sm:$0xff]
    %v1518 = vld [vmem:[#allocation7 + $0xc0] sm:$0xff]
    %v1519 = vsel %vm92, %v1510, 0
    %1521 = vmatpush.msra.mxu0 0.0
    %1522 = vmatpush.msra.mxu0 0.0
    %1523 = vmatpush.msra.mxu0 0.0
    %1524 = vmatpush.msra.mxu0 0.0
    %1525 = vmatpush.msra.mxu0 0.0
    %1526 = vmatpush.msra.mxu0 0.0
    %1527 = vmatpush.msra.mxu0 0.0
    %1528 = vmatpush.msra.mxu0 0.0
    %1529 = vmatpush.msra.mxu0 0.0
    %1530 = vmatpush.msra.mxu0 0.0
    %1531 = vmatpush.msra.mxu0 0.0
    %1532 = vmatpush.msra.mxu0 0.0
    %1533 = vmatpush.msra.mxu0 %v1518
    %1534 = vmatpush.msra.mxu0 %v1517
    %1535 = vmatpush.msra.mxu0 %v1516
    %1536 = vmatpush.msra.mxu0 %v1515
    %1537 = vmatmul.f32.gmra.mxu0 %v1519
    %v1538 = vpop.f32.mrf.mxu0
    %v1539 = vadd.f32 0.0, %v1538
    %1540 = vdwg.mxu0
    %v1541 = vadd.f32 %v1513, %v1539
    %v1542 = vsel %vm292, %v1541, -inf
    %1543 = vmax.xlane.f32.xlu0 %v1542
    %v1544 = vpop.xlane.xlu0 %1543
    %v1545 = vsub.f32 %v1541, %v1544
    %v1546 = vmul.f32 %v1545, 1.442695
    %v1547 = vpow.pop %v1546
    %v1548 = vsel %vm292, %v1547, 0.0
    %1549 = vadd.xlane.f32.xlu0 %v1548
    %v1550 = vpop.xlane.xlu0 %1549
    %v1551 = vrcp.pop %v1550
    %v1552 = vmul.f32 %v1547, %v1551
    %v1553 = vld [vmem:[#allocation7 + $0x168] sm:$0xff]
    %v1555 = vsel %vm292, %v1552, 0
    %1557 = vmatpush.msra.mxu0 0.0
    %1558 = vmatpush.msra.mxu0 0.0
    %1559 = vmatpush.msra.mxu0 0.0
    %1560 = vmatpush.msra.mxu0 0.0
    %1561 = vmatpush.msra.mxu0 0.0
    %1562 = vmatpush.msra.mxu0 0.0
    %1563 = vmatpush.msra.mxu0 0.0
    %1564 = vmatpush.msra.mxu0 0.0
    %1565 = vmatpush.msra.mxu0 0.0
    %1566 = vmatpush.msra.mxu0 0.0
    %1567 = vmatpush.msra.mxu0 0.0
    %1568 = vmatpush.msra.mxu0 0.0
    %1569 = vmatpush.msra.mxu0 0.0
    %1570 = vmatpush.msra.mxu0 0.0
    %1571 = vmatpush.msra.mxu0 0.0
    %1572 = vmatpush.msra.mxu0 %v1553
    %1573 = vmatmul.f32.gmra.mxu0 %v1555
    %v1574 = vpop.f32.mrf.mxu0
    %v1575 = vadd.f32 0.0, %v1574
    %1576 = vdwg.mxu0
    %v1577 = vld [vmem:[#allocation7 + $0x170] sm:$0xff]
    %v1578 = vmul.f32 %v1575, %v1577
    %v1579 = vld [vmem:[#allocation3] sm:$0xff]
    %v1580 = vld [vmem:[#allocation3 + $0x8] sm:$0xff]
    %v1581 = vld [vmem:[#allocation3 + $0x10] sm:$0xff]
    %v1582 = vld [vmem:[#allocation3 + $0x18] sm:$0xff]
    %v1583 = vld [vmem:[#allocation3 + $0x20] sm:$0xff]
    %v1584 = vld [vmem:[#allocation3 + $0x28] sm:$0xff]
    %v1585 = vld [vmem:[#allocation3 + $0x30] sm:$0xff]
    %v1586 = vld [vmem:[#allocation3 + $0x38] sm:$0xff]
    %v1588 = vsel %vm1136, %v1578, 0
    %1590 = vmatpush.msra.mxu0 0.0
    %1591 = vmatpush.msra.mxu0 0.0
    %1592 = vmatpush.msra.mxu0 0.0
    %1593 = vmatpush.msra.mxu0 0.0
    %1594 = vmatpush.msra.mxu0 0.0
    %1595 = vmatpush.msra.mxu0 0.0
    %1596 = vmatpush.msra.mxu0 0.0
    %1597 = vmatpush.msra.mxu0 0.0
    %1598 = vmatpush.msra.mxu0 %v1586
    %1599 = vmatpush.msra.mxu0 %v1585
    %1600 = vmatpush.msra.mxu0 %v1584
    %1601 = vmatpush.msra.mxu0 %v1583
    %1602 = vmatpush.msra.mxu0 %v1582
    %1603 = vmatpush.msra.mxu0 %v1581
    %1604 = vmatpush.msra.mxu0 %v1580
    %1605 = vmatpush.msra.mxu0 %v1579
    %1606 = vmatmul.f32.gmra.mxu0 %v1588
    %v1607 = vpop.f32.mrf.mxu0
    %v1608 = vadd.f32 0.0, %v1607
    %1609 = vdwg.mxu0
    %v1610 = vld [vmem:[#allocation7 + $0xe8] sm:$0xff]
    %v1611 = vld [vmem:[#allocation7 + $0xf0] sm:$0xff]
    %v1612 = vld [vmem:[#allocation7 + $0xf8] sm:$0xff]
    %v1613 = vld [vmem:[#allocation7 + $0x100] sm:$0xff]
    %v1615 = vsel %vm92, %v1608, 0
    %1617 = vmatpush.msra.mxu0 0.0
    %1618 = vmatpush.msra.mxu0 0.0
    %1619 = vmatpush.msra.mxu0 0.0
    %1620 = vmatpush.msra.mxu0 0.0
    %1621 = vmatpush.msra.mxu0 0.0
    %1622 = vmatpush.msra.mxu0 0.0
    %1623 = vmatpush.msra.mxu0 0.0
    %1624 = vmatpush.msra.mxu0 0.0
    %1625 = vmatpush.msra.mxu0 0.0
    %1626 = vmatpush.msra.mxu0 0.0
    %1627 = vmatpush.msra.mxu0 0.0
    %1628 = vmatpush.msra.mxu0 0.0
    %1629 = vmatpush.msra.mxu0 %v1613
    %1630 = vmatpush.msra.mxu0 %v1612
    %1631 = vmatpush.msra.mxu0 %v1611
    %1632 = vmatpush.msra.mxu0 %v1610
    %1633 = vmatmul.f32.gmra.mxu0 %v1615
    %v1634 = vpop.f32.mrf.mxu0
    %v1635 = vadd.f32 0.0, %v1634
    %1636 = vdwg.mxu0
    %v1637 = vadd.f32 %v1514, %v1635
    %v1638 = vmax.f32 %v1637, 0.0
    %v1639 = vld [vmem:[#allocation7 + $0x40] sm:$0xff]
    %v1640 = vld [vmem:[#allocation7 + $0x48] sm:$0xff]
    %v1641 = vld [vmem:[#allocation7 + $0x50] sm:$0xff]
    %v1642 = vld [vmem:[#allocation7 + $0x58] sm:$0xff]
    %v1643 = vld [vmem:[#allocation7 + $0x81] sm:$0x1]
    %v1644 = vperm.slane %v1643, 0
    %v1646 = vsel %vm92, %v1638, 0
    %1648 = vmatpush.msra.mxu0 0.0
    %1649 = vmatpush.msra.mxu0 0.0
    %1650 = vmatpush.msra.mxu0 0.0
    %1651 = vmatpush.msra.mxu0 0.0
    %1652 = vmatpush.msra.mxu0 0.0
    %1653 = vmatpush.msra.mxu0 0.0
    %1654 = vmatpush.msra.mxu0 0.0
    %1655 = vmatpush.msra.mxu0 0.0
    %1656 = vmatpush.msra.mxu0 0.0
    %1657 = vmatpush.msra.mxu0 0.0
    %1658 = vmatpush.msra.mxu0 0.0
    %1659 = vmatpush.msra.mxu0 0.0
    %1660 = vmatpush.msra.mxu0 %v1642
    %1661 = vmatpush.msra.mxu0 %v1641
    %1662 = vmatpush.msra.mxu0 %v1640
    %1663 = vmatpush.msra.mxu0 %v1639
    %1664 = vmatmul.f32.gmra.mxu0 %v1646
    %v1665 = vpop.f32.mrf.mxu0
    %v1666 = vadd.f32 %v1644, %v1665
    %1667 = vdwg.mxu0
    %v1668 = vld [vmem:[#allocation7 + $0x60] sm:$0xff]
    %v1669 = vld [vmem:[#allocation7 + $0x68] sm:$0xff]
    %v1670 = vld [vmem:[#allocation7 + $0x70] sm:$0xff]
    %v1671 = vld [vmem:[#allocation7 + $0x78] sm:$0xff]
    %v1672 = vld [vmem:[#allocation7 + $0x82] sm:$0x1]
    %v1673 = vperm.slane %v1672, 0
    %1674 = vmatpush.msra.mxu0 0.0
    %1675 = vmatpush.msra.mxu0 0.0
    %1676 = vmatpush.msra.mxu0 0.0
    %1677 = vmatpush.msra.mxu0 0.0
    %1678 = vmatpush.msra.mxu0 0.0
    %1679 = vmatpush.msra.mxu0 0.0
    %1680 = vmatpush.msra.mxu0 0.0
    %1681 = vmatpush.msra.mxu0 0.0
    %1682 = vmatpush.msra.mxu0 0.0
    %1683 = vmatpush.msra.mxu0 0.0
    %1684 = vmatpush.msra.mxu0 0.0
    %1685 = vmatpush.msra.mxu0 0.0
    %1686 = vmatpush.msra.mxu0 %v1671
    %1687 = vmatpush.msra.mxu0 %v1670
    %1688 = vmatpush.msra.mxu0 %v1669
    %1689 = vmatpush.msra.mxu0 %v1668
    %1690 = vmatmul.f32.gmra.mxu0 %v1519
    %v1691 = vpop.f32.mrf.mxu0
    %v1692 = vadd.f32 %v1673, %v1691
    %1693 = vdwg.mxu0
    %v1694 = vadd.f32 %v1666, %v1692
    %v1695 = vxor.u32 %v1694, 2147483648
    %v1696 = vmul.f32 %v1695, 1.442695
    %v1697 = vpow.pop %v1696
    %v1698 = vadd.f32 %v1697, 1.0
    %v1699 = vrcp.pop %v1698
    %v1700 = vmul.f32 %v1698, %v1699
    %v1701 = vsub.f32 1.0, %v1700
    %v1702 = vmul.f32 %v1699, %v1701
    %v1703 = vadd.f32 %v1699, %v1702
    %vm1704 = vweird.f32 %v1698
    %vm1705 = vweird.f32 %v1699
    %vm1706 = vmor %vm1704, %vm1705
    %v1707 = vsel %vm1706, %v1699, %v1703
    %v1708 = vand.u32 2147483647, %v1698
    %vm1709 = vcmp.eq.f32.partialorder %v1708, 8.507059e+37
    %v1710 = vand.u32 %v1698, 2147483648
    %v1711 = vor.u32 1.1754944e-38, %v1710
    %v1712 = vsel %vm1709, %v1711, %v1707
    %v1713 = vmul.f32 1.0, %v1712
    %1715 = vrot.lane.b32.xlu0 %v1692, 64
    %v1716 = vpop.permute.xlu0 %1715
    %v1718 = vmul.f32 %v1713, %v1716
    %1720 = vrot.lane.b32.xlu0 %v1718, 64
    %v1721 = vpop.permute.xlu0 %1720
    %v1723 = vadd.f32 %v1666, %v1721
    %v1724 = vtanh.pop %v1723
    %v1725 = vsub.f32 1.0, %v1713
    %1727 = vrot.lane.b32.xlu0 %v1724, 96
    %v1728 = vpop.permute.xlu0 %1727
    %v1730 = vmul.f32 %v1725, %v1728
    %v1731 = vmul.f32 %v1713, %v1507
    %v1732 = vadd.f32 %v1730, %v1731
    %1734 = vrot.lane.b32.xlu0 %v1732, 96
    %v1735 = vpop.permute.xlu0 %1734
    %1737 = vst.msk [vmem:[#allocation6 + $0x10] sm:$0xff] %vm92, %v1735
    %v1738 = vld [vmem:[#allocation4 + $0x18] sm:$0xff]
    %v1739 = vld [vmem:[#allocation5 + $0x18] sm:$0xff]
    %v1740 = vld [vmem:[#allocation7 + $0xa8] sm:$0xff]
    %v1741 = vld [vmem:[#allocation7 + $0xb0] sm:$0xff]
    %v1742 = vld [vmem:[#allocation7 + $0xb8] sm:$0xff]
    %v1743 = vld [vmem:[#allocation7 + $0xc0] sm:$0xff]
    %v1744 = vsel %vm92, %v1735, 0
    %1746 = vmatpush.msra.mxu0 0.0
    %1747 = vmatpush.msra.mxu0 0.0
    %1748 = vmatpush.msra.mxu0 0.0
    %1749 = vmatpush.msra.mxu0 0.0
    %1750 = vmatpush.msra.mxu0 0.0
    %1751 = vmatpush.msra.mxu0 0.0
    %1752 = vmatpush.msra.mxu0 0.0
    %1753 = vmatpush.msra.mxu0 0.0
    %1754 = vmatpush.msra.mxu0 0.0
    %1755 = vmatpush.msra.mxu0 0.0
    %1756 = vmatpush.msra.mxu0 0.0
    %1757 = vmatpush.msra.mxu0 0.0
    %1758 = vmatpush.msra.mxu0 %v1743
    %1759 = vmatpush.msra.mxu0 %v1742
    %1760 = vmatpush.msra.mxu0 %v1741
    %1761 = vmatpush.msra.mxu0 %v1740
    %1762 = vmatmul.f32.gmra.mxu0 %v1744
    %v1763 = vpop.f32.mrf.mxu0
    %v1764 = vadd.f32 0.0, %v1763
    %1765 = vdwg.mxu0
    %v1766 = vadd.f32 %v1738, %v1764
    %v1767 = vsel %vm292, %v1766, -inf
    %1768 = vmax.xlane.f32.xlu0 %v1767
    %v1769 = vpop.xlane.xlu0 %1768
    %v1770 = vsub.f32 %v1766, %v1769
    %v1771 = vmul.f32 %v1770, 1.442695
    %v1772 = vpow.pop %v1771
    %v1773 = vsel %vm292, %v1772, 0.0
    %1774 = vadd.xlane.f32.xlu0 %v1773
    %v1775 = vpop.xlane.xlu0 %1774
    %v1776 = vrcp.pop %v1775
    %v1777 = vmul.f32 %v1772, %v1776
    %v1778 = vld [vmem:[#allocation7 + $0x168] sm:$0xff]
    %v1780 = vsel %vm292, %v1777, 0
    %1782 = vmatpush.msra.mxu0 0.0
    %1783 = vmatpush.msra.mxu0 0.0
    %1784 = vmatpush.msra.mxu0 0.0
    %1785 = vmatpush.msra.mxu0 0.0
    %1786 = vmatpush.msra.mxu0 0.0
    %1787 = vmatpush.msra.mxu0 0.0
    %1788 = vmatpush.msra.mxu0 0.0
    %1789 = vmatpush.msra.mxu0 0.0
    %1790 = vmatpush.msra.mxu0 0.0
    %1791 = vmatpush.msra.mxu0 0.0
    %1792 = vmatpush.msra.mxu0 0.0
    %1793 = vmatpush.msra.mxu0 0.0
    %1794 = vmatpush.msra.mxu0 0.0
    %1795 = vmatpush.msra.mxu0 0.0
    %1796 = vmatpush.msra.mxu0 0.0
    %1797 = vmatpush.msra.mxu0 %v1778
    %1798 = vmatmul.f32.gmra.mxu0 %v1780
    %v1799 = vpop.f32.mrf.mxu0
    %v1800 = vadd.f32 0.0, %v1799
    %1801 = vdwg.mxu0
    %v1802 = vld [vmem:[#allocation7 + $0x170] sm:$0xff]
    %v1803 = vmul.f32 %v1800, %v1802
    %v1804 = vld [vmem:[#allocation3] sm:$0xff]
    %v1805 = vld [vmem:[#allocation3 + $0x8] sm:$0xff]
    %v1806 = vld [vmem:[#allocation3 + $0x10] sm:$0xff]
    %v1807 = vld [vmem:[#allocation3 + $0x18] sm:$0xff]
    %v1808 = vld [vmem:[#allocation3 + $0x20] sm:$0xff]
    %v1809 = vld [vmem:[#allocation3 + $0x28] sm:$0xff]
    %v1810 = vld [vmem:[#allocation3 + $0x30] sm:$0xff]
    %v1811 = vld [vmem:[#allocation3 + $0x38] sm:$0xff]
    %v1813 = vsel %vm1136, %v1803, 0
    %1815 = vmatpush.msra.mxu0 0.0
    %1816 = vmatpush.msra.mxu0 0.0
    %1817 = vmatpush.msra.mxu0 0.0
    %1818 = vmatpush.msra.mxu0 0.0
    %1819 = vmatpush.msra.mxu0 0.0
    %1820 = vmatpush.msra.mxu0 0.0
    %1821 = vmatpush.msra.mxu0 0.0
    %1822 = vmatpush.msra.mxu0 0.0
    %1823 = vmatpush.msra.mxu0 %v1811
    %1824 = vmatpush.msra.mxu0 %v1810
    %1825 = vmatpush.msra.mxu0 %v1809
    %1826 = vmatpush.msra.mxu0 %v1808
    %1827 = vmatpush.msra.mxu0 %v1807
    %1828 = vmatpush.msra.mxu0 %v1806
    %1829 = vmatpush.msra.mxu0 %v1805
    %1830 = vmatpush.msra.mxu0 %v1804
    %1831 = vmatmul.f32.gmra.mxu0 %v1813
    %v1832 = vpop.f32.mrf.mxu0
    %v1833 = vadd.f32 0.0, %v1832
    %1834 = vdwg.mxu0
    %v1835 = vld [vmem:[#allocation7 + $0xe8] sm:$0xff]
    %v1836 = vld [vmem:[#allocation7 + $0xf0] sm:$0xff]
    %v1837 = vld [vmem:[#allocation7 + $0xf8] sm:$0xff]
    %v1838 = vld [vmem:[#allocation7 + $0x100] sm:$0xff]
    %v1840 = vsel %vm92, %v1833, 0
    %1842 = vmatpush.msra.mxu0 0.0
    %1843 = vmatpush.msra.mxu0 0.0
    %1844 = vmatpush.msra.mxu0 0.0
    %1845 = vmatpush.msra.mxu0 0.0
    %1846 = vmatpush.msra.mxu0 0.0
    %1847 = vmatpush.msra.mxu0 0.0
    %1848 = vmatpush.msra.mxu0 0.0
    %1849 = vmatpush.msra.mxu0 0.0
    %1850 = vmatpush.msra.mxu0 0.0
    %1851 = vmatpush.msra.mxu0 0.0
    %1852 = vmatpush.msra.mxu0 0.0
    %1853 = vmatpush.msra.mxu0 0.0
    %1854 = vmatpush.msra.mxu0 %v1838
    %1855 = vmatpush.msra.mxu0 %v1837
    %1856 = vmatpush.msra.mxu0 %v1836
    %1857 = vmatpush.msra.mxu0 %v1835
    %1858 = vmatmul.f32.gmra.mxu0 %v1840
    %v1859 = vpop.f32.mrf.mxu0
    %v1860 = vadd.f32 0.0, %v1859
    %1861 = vdwg.mxu0
    %v1862 = vadd.f32 %v1739, %v1860
    %v1863 = vmax.f32 %v1862, 0.0
    %v1864 = vld [vmem:[#allocation7 + $0x40] sm:$0xff]
    %v1865 = vld [vmem:[#allocation7 + $0x48] sm:$0xff]
    %v1866 = vld [vmem:[#allocation7 + $0x50] sm:$0xff]
    %v1867 = vld [vmem:[#allocation7 + $0x58] sm:$0xff]
    %v1868 = vld [vmem:[#allocation7 + $0x81] sm:$0x1]
    %v1869 = vperm.slane %v1868, 0
    %v1871 = vsel %vm92, %v1863, 0
    %1873 = vmatpush.msra.mxu0 0.0
    %1874 = vmatpush.msra.mxu0 0.0
    %1875 = vmatpush.msra.mxu0 0.0
    %1876 = vmatpush.msra.mxu0 0.0
    %1877 = vmatpush.msra.mxu0 0.0
    %1878 = vmatpush.msra.mxu0 0.0
    %1879 = vmatpush.msra.mxu0 0.0
    %1880 = vmatpush.msra.mxu0 0.0
    %1881 = vmatpush.msra.mxu0 0.0
    %1882 = vmatpush.msra.mxu0 0.0
    %1883 = vmatpush.msra.mxu0 0.0
    %1884 = vmatpush.msra.mxu0 0.0
    %1885 = vmatpush.msra.mxu0 %v1867
    %1886 = vmatpush.msra.mxu0 %v1866
    %1887 = vmatpush.msra.mxu0 %v1865
    %1888 = vmatpush.msra.mxu0 %v1864
    %1889 = vmatmul.f32.gmra.mxu0 %v1871
    %v1890 = vpop.f32.mrf.mxu0
    %v1891 = vadd.f32 %v1869, %v1890
    %1892 = vdwg.mxu0
    %v1893 = vld [vmem:[#allocation7 + $0x60] sm:$0xff]
    %v1894 = vld [vmem:[#allocation7 + $0x68] sm:$0xff]
    %v1895 = vld [vmem:[#allocation7 + $0x70] sm:$0xff]
    %v1896 = vld [vmem:[#allocation7 + $0x78] sm:$0xff]
    %v1897 = vld [vmem:[#allocation7 + $0x82] sm:$0x1]
    %v1898 = vperm.slane %v1897, 0
    %1899 = vmatpush.msra.mxu0 0.0
    %1900 = vmatpush.msra.mxu0 0.0
    %1901 = vmatpush.msra.mxu0 0.0
    %1902 = vmatpush.msra.mxu0 0.0
    %1903 = vmatpush.msra.mxu0 0.0
    %1904 = vmatpush.msra.mxu0 0.0
    %1905 = vmatpush.msra.mxu0 0.0
    %1906 = vmatpush.msra.mxu0 0.0
    %1907 = vmatpush.msra.mxu0 0.0
    %1908 = vmatpush.msra.mxu0 0.0
    %1909 = vmatpush.msra.mxu0 0.0
    %1910 = vmatpush.msra.mxu0 0.0
    %1911 = vmatpush.msra.mxu0 %v1896
    %1912 = vmatpush.msra.mxu0 %v1895
    %1913 = vmatpush.msra.mxu0 %v1894
    %1914 = vmatpush.msra.mxu0 %v1893
    %1915 = vmatmul.f32.gmra.mxu0 %v1744
    %v1916 = vpop.f32.mrf.mxu0
    %v1917 = vadd.f32 %v1898, %v1916
    %1918 = vdwg.mxu0
    %v1919 = vadd.f32 %v1891, %v1917
    %v1920 = vxor.u32 %v1919, 2147483648
    %v1921 = vmul.f32 %v1920, 1.442695
    %v1922 = vpow.pop %v1921
    %v1923 = vadd.f32 %v1922, 1.0
    %v1924 = vrcp.pop %v1923
    %v1925 = vmul.f32 %v1923, %v1924
    %v1926 = vsub.f32 1.0, %v1925
    %v1927 = vmul.f32 %v1924, %v1926
    %v1928 = vadd.f32 %v1924, %v1927
    %vm1929 = vweird.f32 %v1923
    %vm1930 = vweird.f32 %v1924
    %vm1931 = vmor %vm1929, %vm1930
    %v1932 = vsel %vm1931, %v1924, %v1928
    %v1933 = vand.u32 2147483647, %v1923
    %vm1934 = vcmp.eq.f32.partialorder %v1933, 8.507059e+37
    %v1935 = vand.u32 %v1923, 2147483648
    %v1936 = vor.u32 1.1754944e-38, %v1935
    %v1937 = vsel %vm1934, %v1936, %v1932
    %v1938 = vmul.f32 1.0, %v1937
    %1940 = vrot.lane.b32.xlu0 %v1917, 64
    %v1941 = vpop.permute.xlu0 %1940
    %v1943 = vmul.f32 %v1938, %v1941
    %1945 = vrot.lane.b32.xlu0 %v1943, 64
    %v1946 = vpop.permute.xlu0 %1945
    %v1948 = vadd.f32 %v1891, %v1946
    %v1949 = vtanh.pop %v1948
    %v1950 = vsub.f32 1.0, %v1938
    %1952 = vrot.lane.b32.xlu0 %v1949, 96
    %v1953 = vpop.permute.xlu0 %1952
    %v1955 = vmul.f32 %v1950, %v1953
    %v1956 = vmul.f32 %v1938, %v1732
    %v1957 = vadd.f32 %v1955, %v1956
    %1959 = vrot.lane.b32.xlu0 %v1957, 96
    %v1960 = vpop.permute.xlu0 %1959
    %1962 = vst.msk [vmem:[#allocation6 + $0x18] sm:$0xff] %vm92, %v1960
    %v1963 = vld [vmem:[#allocation4 + $0x20] sm:$0xff]
    %v1964 = vld [vmem:[#allocation5 + $0x20] sm:$0xff]
    %v1965 = vld [vmem:[#allocation7 + $0xa8] sm:$0xff]
    %v1966 = vld [vmem:[#allocation7 + $0xb0] sm:$0xff]
    %v1967 = vld [vmem:[#allocation7 + $0xb8] sm:$0xff]
    %v1968 = vld [vmem:[#allocation7 + $0xc0] sm:$0xff]
    %v1969 = vsel %vm92, %v1960, 0
    %1971 = vmatpush.msra.mxu0 0.0
    %1972 = vmatpush.msra.mxu0 0.0
    %1973 = vmatpush.msra.mxu0 0.0
    %1974 = vmatpush.msra.mxu0 0.0
    %1975 = vmatpush.msra.mxu0 0.0
    %1976 = vmatpush.msra.mxu0 0.0
    %1977 = vmatpush.msra.mxu0 0.0
    %1978 = vmatpush.msra.mxu0 0.0
    %1979 = vmatpush.msra.mxu0 0.0
    %1980 = vmatpush.msra.mxu0 0.0
    %1981 = vmatpush.msra.mxu0 0.0
    %1982 = vmatpush.msra.mxu0 0.0
    %1983 = vmatpush.msra.mxu0 %v1968
    %1984 = vmatpush.msra.mxu0 %v1967
    %1985 = vmatpush.msra.mxu0 %v1966
    %1986 = vmatpush.msra.mxu0 %v1965
    %1987 = vmatmul.f32.gmra.mxu0 %v1969
    %v1988 = vpop.f32.mrf.mxu0
    %v1989 = vadd.f32 0.0, %v1988
    %1990 = vdwg.mxu0
    %v1991 = vadd.f32 %v1963, %v1989
    %v1992 = vsel %vm292, %v1991, -inf
    %1993 = vmax.xlane.f32.xlu0 %v1992
    %v1994 = vpop.xlane.xlu0 %1993
    %v1995 = vsub.f32 %v1991, %v1994
    %v1996 = vmul.f32 %v1995, 1.442695
    %v1997 = vpow.pop %v1996
    %v1998 = vsel %vm292, %v1997, 0.0
    %1999 = vadd.xlane.f32.xlu0 %v1998
    %v2000 = vpop.xlane.xlu0 %1999
    %v2001 = vrcp.pop %v2000
    %v2002 = vmul.f32 %v1997, %v2001
    %v2003 = vld [vmem:[#allocation7 + $0x168] sm:$0xff]
    %v2005 = vsel %vm292, %v2002, 0
    %2007 = vmatpush.msra.mxu0 0.0
    %2008 = vmatpush.msra.mxu0 0.0
    %2009 = vmatpush.msra.mxu0 0.0
    %2010 = vmatpush.msra.mxu0 0.0
    %2011 = vmatpush.msra.mxu0 0.0
    %2012 = vmatpush.msra.mxu0 0.0
    %2013 = vmatpush.msra.mxu0 0.0
    %2014 = vmatpush.msra.mxu0 0.0
    %2015 = vmatpush.msra.mxu0 0.0
    %2016 = vmatpush.msra.mxu0 0.0
    %2017 = vmatpush.msra.mxu0 0.0
    %2018 = vmatpush.msra.mxu0 0.0
    %2019 = vmatpush.msra.mxu0 0.0
    %2020 = vmatpush.msra.mxu0 0.0
    %2021 = vmatpush.msra.mxu0 0.0
    %2022 = vmatpush.msra.mxu0 %v2003
    %2023 = vmatmul.f32.gmra.mxu0 %v2005
    %v2024 = vpop.f32.mrf.mxu0
    %v2025 = vadd.f32 0.0, %v2024
    %2026 = vdwg.mxu0
    %v2027 = vld [vmem:[#allocation7 + $0x170] sm:$0xff]
    %v2028 = vmul.f32 %v2025, %v2027
    %v2029 = vld [vmem:[#allocation3] sm:$0xff]
    %v2030 = vld [vmem:[#allocation3 + $0x8] sm:$0xff]
    %v2031 = vld [vmem:[#allocation3 + $0x10] sm:$0xff]
    %v2032 = vld [vmem:[#allocation3 + $0x18] sm:$0xff]
    %v2033 = vld [vmem:[#allocation3 + $0x20] sm:$0xff]
    %v2034 = vld [vmem:[#allocation3 + $0x28] sm:$0xff]
    %v2035 = vld [vmem:[#allocation3 + $0x30] sm:$0xff]
    %v2036 = vld [vmem:[#allocation3 + $0x38] sm:$0xff]
    %v2038 = vsel %vm1136, %v2028, 0
    %2040 = vmatpush.msra.mxu0 0.0
    %2041 = vmatpush.msra.mxu0 0.0
    %2042 = vmatpush.msra.mxu0 0.0
    %2043 = vmatpush.msra.mxu0 0.0
    %2044 = vmatpush.msra.mxu0 0.0
    %2045 = vmatpush.msra.mxu0 0.0
    %2046 = vmatpush.msra.mxu0 0.0
    %2047 = vmatpush.msra.mxu0 0.0
    %2048 = vmatpush.msra.mxu0 %v2036
    %2049 = vmatpush.msra.mxu0 %v2035
    %2050 = vmatpush.msra.mxu0 %v2034
    %2051 = vmatpush.msra.mxu0 %v2033
    %2052 = vmatpush.msra.mxu0 %v2032
    %2053 = vmatpush.msra.mxu0 %v2031
    %2054 = vmatpush.msra.mxu0 %v2030
    %2055 = vmatpush.msra.mxu0 %v2029
    %2056 = vmatmul.f32.gmra.mxu0 %v2038
    %v2057 = vpop.f32.mrf.mxu0
    %v2058 = vadd.f32 0.0, %v2057
    %2059 = vdwg.mxu0
    %v2060 = vld [vmem:[#allocation7 + $0xe8] sm:$0xff]
    %v2061 = vld [vmem:[#allocation7 + $0xf0] sm:$0xff]
    %v2062 = vld [vmem:[#allocation7 + $0xf8] sm:$0xff]
    %v2063 = vld [vmem:[#allocation7 + $0x100] sm:$0xff]
    %v2065 = vsel %vm92, %v2058, 0
    %2067 = vmatpush.msra.mxu0 0.0
    %2068 = vmatpush.msra.mxu0 0.0
    %2069 = vmatpush.msra.mxu0 0.0
    %2070 = vmatpush.msra.mxu0 0.0
    %2071 = vmatpush.msra.mxu0 0.0
    %2072 = vmatpush.msra.mxu0 0.0
    %2073 = vmatpush.msra.mxu0 0.0
    %2074 = vmatpush.msra.mxu0 0.0
    %2075 = vmatpush.msra.mxu0 0.0
    %2076 = vmatpush.msra.mxu0 0.0
    %2077 = vmatpush.msra.mxu0 0.0
    %2078 = vmatpush.msra.mxu0 0.0
    %2079 = vmatpush.msra.mxu0 %v2063
    %2080 = vmatpush.msra.mxu0 %v2062
    %2081 = vmatpush.msra.mxu0 %v2061
    %2082 = vmatpush.msra.mxu0 %v2060
    %2083 = vmatmul.f32.gmra.mxu0 %v2065
    %v2084 = vpop.f32.mrf.mxu0
    %v2085 = vadd.f32 0.0, %v2084
    %2086 = vdwg.mxu0
    %v2087 = vadd.f32 %v1964, %v2085
    %v2088 = vmax.f32 %v2087, 0.0
    %v2089 = vld [vmem:[#allocation7 + $0x40] sm:$0xff]
    %v2090 = vld [vmem:[#allocation7 + $0x48] sm:$0xff]
    %v2091 = vld [vmem:[#allocation7 + $0x50] sm:$0xff]
    %v2092 = vld [vmem:[#allocation7 + $0x58] sm:$0xff]
    %v2093 = vld [vmem:[#allocation7 + $0x81] sm:$0x1]
    %v2094 = vperm.slane %v2093, 0
    %v2096 = vsel %vm92, %v2088, 0
    %2098 = vmatpush.msra.mxu0 0.0
    %2099 = vmatpush.msra.mxu0 0.0
    %2100 = vmatpush.msra.mxu0 0.0
    %2101 = vmatpush.msra.mxu0 0.0
    %2102 = vmatpush.msra.mxu0 0.0
    %2103 = vmatpush.msra.mxu0 0.0
    %2104 = vmatpush.msra.mxu0 0.0
    %2105 = vmatpush.msra.mxu0 0.0
    %2106 = vmatpush.msra.mxu0 0.0
    %2107 = vmatpush.msra.mxu0 0.0
    %2108 = vmatpush.msra.mxu0 0.0
    %2109 = vmatpush.msra.mxu0 0.0
    %2110 = vmatpush.msra.mxu0 %v2092
    %2111 = vmatpush.msra.mxu0 %v2091
    %2112 = vmatpush.msra.mxu0 %v2090
    %2113 = vmatpush.msra.mxu0 %v2089
    %2114 = vmatmul.f32.gmra.mxu0 %v2096
    %v2115 = vpop.f32.mrf.mxu0
    %v2116 = vadd.f32 %v2094, %v2115
    %2117 = vdwg.mxu0
    %v2118 = vld [vmem:[#allocation7 + $0x60] sm:$0xff]
    %v2119 = vld [vmem:[#allocation7 + $0x68] sm:$0xff]
    %v2120 = vld [vmem:[#allocation7 + $0x70] sm:$0xff]
    %v2121 = vld [vmem:[#allocation7 + $0x78] sm:$0xff]
    %v2122 = vld [vmem:[#allocation7 + $0x82] sm:$0x1]
    %v2123 = vperm.slane %v2122, 0
    %2124 = vmatpush.msra.mxu0 0.0
    %2125 = vmatpush.msra.mxu0 0.0
    %2126 = vmatpush.msra.mxu0 0.0
    %2127 = vmatpush.msra.mxu0 0.0
    %2128 = vmatpush.msra.mxu0 0.0
    %2129 = vmatpush.msra.mxu0 0.0
    %2130 = vmatpush.msra.mxu0 0.0
    %2131 = vmatpush.msra.mxu0 0.0
    %2132 = vmatpush.msra.mxu0 0.0
    %2133 = vmatpush.msra.mxu0 0.0
    %2134 = vmatpush.msra.mxu0 0.0
    %2135 = vmatpush.msra.mxu0 0.0
    %2136 = vmatpush.msra.mxu0 %v2121
    %2137 = vmatpush.msra.mxu0 %v2120
    %2138 = vmatpush.msra.mxu0 %v2119
    %2139 = vmatpush.msra.mxu0 %v2118
    %2140 = vmatmul.f32.gmra.mxu0 %v1969
    %v2141 = vpop.f32.mrf.mxu0
    %v2142 = vadd.f32 %v2123, %v2141
    %2143 = vdwg.mxu0
    %v2144 = vadd.f32 %v2116, %v2142
    %v2145 = vxor.u32 %v2144, 2147483648
    %v2146 = vmul.f32 %v2145, 1.442695
    %v2147 = vpow.pop %v2146
    %v2148 = vadd.f32 %v2147, 1.0
    %v2149 = vrcp.pop %v2148
    %v2150 = vmul.f32 %v2148, %v2149
    %v2151 = vsub.f32 1.0, %v2150
    %v2152 = vmul.f32 %v2149, %v2151
    %v2153 = vadd.f32 %v2149, %v2152
    %vm2154 = vweird.f32 %v2148
    %vm2155 = vweird.f32 %v2149
    %vm2156 = vmor %vm2154, %vm2155
    %v2157 = vsel %vm2156, %v2149, %v2153
    %v2158 = vand.u32 2147483647, %v2148
    %vm2159 = vcmp.eq.f32.partialorder %v2158, 8.507059e+37
    %v2160 = vand.u32 %v2148, 2147483648
    %v2161 = vor.u32 1.1754944e-38, %v2160
    %v2162 = vsel %vm2159, %v2161, %v2157
    %v2163 = vmul.f32 1.0, %v2162
    %2165 = vrot.lane.b32.xlu0 %v2142, 64
    %v2166 = vpop.permute.xlu0 %2165
    %v2168 = vmul.f32 %v2163, %v2166
    %2170 = vrot.lane.b32.xlu0 %v2168, 64
    %v2171 = vpop.permute.xlu0 %2170
    %v2173 = vadd.f32 %v2116, %v2171
    %v2174 = vtanh.pop %v2173
    %v2175 = vsub.f32 1.0, %v2163
    %2177 = vrot.lane.b32.xlu0 %v2174, 96
    %v2178 = vpop.permute.xlu0 %2177
    %v2180 = vmul.f32 %v2175, %v2178
    %v2181 = vmul.f32 %v2163, %v1957
    %v2182 = vadd.f32 %v2180, %v2181
    %2184 = vrot.lane.b32.xlu0 %v2182, 96
    %v2185 = vpop.permute.xlu0 %2184
    %2187 = vst.msk [vmem:[#allocation6 + $0x20] sm:$0xff] %vm92, %v2185
    %v2188 = vld [vmem:[#allocation4 + $0x28] sm:$0xff]
    %v2189 = vld [vmem:[#allocation5 + $0x28] sm:$0xff]
    %v2190 = vld [vmem:[#allocation7 + $0xa8] sm:$0xff]
    %v2191 = vld [vmem:[#allocation7 + $0xb0] sm:$0xff]
    %v2192 = vld [vmem:[#allocation7 + $0xb8] sm:$0xff]
    %v2193 = vld [vmem:[#allocation7 + $0xc0] sm:$0xff]
    %v2194 = vsel %vm92, %v2185, 0
    %2196 = vmatpush.msra.mxu0 0.0
    %2197 = vmatpush.msra.mxu0 0.0
    %2198 = vmatpush.msra.mxu0 0.0
    %2199 = vmatpush.msra.mxu0 0.0
    %2200 = vmatpush.msra.mxu0 0.0
    %2201 = vmatpush.msra.mxu0 0.0
    %2202 = vmatpush.msra.mxu0 0.0
    %2203 = vmatpush.msra.mxu0 0.0
    %2204 = vmatpush.msra.mxu0 0.0
    %2205 = vmatpush.msra.mxu0 0.0
    %2206 = vmatpush.msra.mxu0 0.0
    %2207 = vmatpush.msra.mxu0 0.0
    %2208 = vmatpush.msra.mxu0 %v2193
    %2209 = vmatpush.msra.mxu0 %v2192
    %2210 = vmatpush.msra.mxu0 %v2191
    %2211 = vmatpush.msra.mxu0 %v2190
    %2212 = vmatmul.f32.gmra.mxu0 %v2194
    %v2213 = vpop.f32.mrf.mxu0
    %v2214 = vadd.f32 0.0, %v2213
    %2215 = vdwg.mxu0
    %v2216 = vadd.f32 %v2188, %v2214
    %v2217 = vsel %vm292, %v2216, -inf
    %2218 = vmax.xlane.f32.xlu0 %v2217
    %v2219 = vpop.xlane.xlu0 %2218
    %v2220 = vsub.f32 %v2216, %v2219
    %v2221 = vmul.f32 %v2220, 1.442695
    %v2222 = vpow.pop %v2221
    %v2223 = vsel %vm292, %v2222, 0.0
    %2224 = vadd.xlane.f32.xlu0 %v2223
    %v2225 = vpop.xlane.xlu0 %2224
    %v2226 = vrcp.pop %v2225
    %v2227 = vmul.f32 %v2222, %v2226
    %v2228 = vld [vmem:[#allocation7 + $0x168] sm:$0xff]
    %v2230 = vsel %vm292, %v2227, 0
    %2232 = vmatpush.msra.mxu0 0.0
    %2233 = vmatpush.msra.mxu0 0.0
    %2234 = vmatpush.msra.mxu0 0.0
    %2235 = vmatpush.msra.mxu0 0.0
    %2236 = vmatpush.msra.mxu0 0.0
    %2237 = vmatpush.msra.mxu0 0.0
    %2238 = vmatpush.msra.mxu0 0.0
    %2239 = vmatpush.msra.mxu0 0.0
    %2240 = vmatpush.msra.mxu0 0.0
    %2241 = vmatpush.msra.mxu0 0.0
    %2242 = vmatpush.msra.mxu0 0.0
    %2243 = vmatpush.msra.mxu0 0.0
    %2244 = vmatpush.msra.mxu0 0.0
    %2245 = vmatpush.msra.mxu0 0.0
    %2246 = vmatpush.msra.mxu0 0.0
    %2247 = vmatpush.msra.mxu0 %v2228
    %2248 = vmatmul.f32.gmra.mxu0 %v2230
    %v2249 = vpop.f32.mrf.mxu0
    %v2250 = vadd.f32 0.0, %v2249
    %2251 = vdwg.mxu0
    %v2252 = vld [vmem:[#allocation7 + $0x170] sm:$0xff]
    %v2253 = vmul.f32 %v2250, %v2252
    %v2254 = vld [vmem:[#allocation3] sm:$0xff]
    %v2255 = vld [vmem:[#allocation3 + $0x8] sm:$0xff]
    %v2256 = vld [vmem:[#allocation3 + $0x10] sm:$0xff]
    %v2257 = vld [vmem:[#allocation3 + $0x18] sm:$0xff]
    %v2258 = vld [vmem:[#allocation3 + $0x20] sm:$0xff]
    %v2259 = vld [vmem:[#allocation3 + $0x28] sm:$0xff]
    %v2260 = vld [vmem:[#allocation3 + $0x30] sm:$0xff]
    %v2261 = vld [vmem:[#allocation3 + $0x38] sm:$0xff]
    %v2263 = vsel %vm1136, %v2253, 0
    %2265 = vmatpush.msra.mxu0 0.0
    %2266 = vmatpush.msra.mxu0 0.0
    %2267 = vmatpush.msra.mxu0 0.0
    %2268 = vmatpush.msra.mxu0 0.0
    %2269 = vmatpush.msra.mxu0 0.0
    %2270 = vmatpush.msra.mxu0 0.0
    %2271 = vmatpush.msra.mxu0 0.0
    %2272 = vmatpush.msra.mxu0 0.0
    %2273 = vmatpush.msra.mxu0 %v2261
    %2274 = vmatpush.msra.mxu0 %v2260
    %2275 = vmatpush.msra.mxu0 %v2259
    %2276 = vmatpush.msra.mxu0 %v2258
    %2277 = vmatpush.msra.mxu0 %v2257
    %2278 = vmatpush.msra.mxu0 %v2256
    %2279 = vmatpush.msra.mxu0 %v2255
    %2280 = vmatpush.msra.mxu0 %v2254
    %2281 = vmatmul.f32.gmra.mxu0 %v2263
    %v2282 = vpop.f32.mrf.mxu0
    %v2283 = vadd.f32 0.0, %v2282
    %2284 = vdwg.mxu0
    %v2285 = vld [vmem:[#allocation7 + $0xe8] sm:$0xff]
    %v2286 = vld [vmem:[#allocation7 + $0xf0] sm:$0xff]
    %v2287 = vld [vmem:[#allocation7 + $0xf8] sm:$0xff]
    %v2288 = vld [vmem:[#allocation7 + $0x100] sm:$0xff]
    %v2290 = vsel %vm92, %v2283, 0
    %2292 = vmatpush.msra.mxu0 0.0
    %2293 = vmatpush.msra.mxu0 0.0
    %2294 = vmatpush.msra.mxu0 0.0
    %2295 = vmatpush.msra.mxu0 0.0
    %2296 = vmatpush.msra.mxu0 0.0
    %2297 = vmatpush.msra.mxu0 0.0
    %2298 = vmatpush.msra.mxu0 0.0
    %2299 = vmatpush.msra.mxu0 0.0
    %2300 = vmatpush.msra.mxu0 0.0
    %2301 = vmatpush.msra.mxu0 0.0
    %2302 = vmatpush.msra.mxu0 0.0
    %2303 = vmatpush.msra.mxu0 0.0
    %2304 = vmatpush.msra.mxu0 %v2288
    %2305 = vmatpush.msra.mxu0 %v2287
    %2306 = vmatpush.msra.mxu0 %v2286
    %2307 = vmatpush.msra.mxu0 %v2285
    %2308 = vmatmul.f32.gmra.mxu0 %v2290
    %v2309 = vpop.f32.mrf.mxu0
    %v2310 = vadd.f32 0.0, %v2309
    %2311 = vdwg.mxu0
    %v2312 = vadd.f32 %v2189, %v2310
    %v2313 = vmax.f32 %v2312, 0.0
    %v2314 = vld [vmem:[#allocation7 + $0x40] sm:$0xff]
    %v2315 = vld [vmem:[#allocation7 + $0x48] sm:$0xff]
    %v2316 = vld [vmem:[#allocation7 + $0x50] sm:$0xff]
    %v2317 = vld [vmem:[#allocation7 + $0x58] sm:$0xff]
    %v2318 = vld [vmem:[#allocation7 + $0x81] sm:$0x1]
    %v2319 = vperm.slane %v2318, 0
    %v2321 = vsel %vm92, %v2313, 0
    %2323 = vmatpush.msra.mxu0 0.0
    %2324 = vmatpush.msra.mxu0 0.0
    %2325 = vmatpush.msra.mxu0 0.0
    %2326 = vmatpush.msra.mxu0 0.0
    %2327 = vmatpush.msra.mxu0 0.0
    %2328 = vmatpush.msra.mxu0 0.0
    %2329 = vmatpush.msra.mxu0 0.0
    %2330 = vmatpush.msra.mxu0 0.0
    %2331 = vmatpush.msra.mxu0 0.0
    %2332 = vmatpush.msra.mxu0 0.0
    %2333 = vmatpush.msra.mxu0 0.0
    %2334 = vmatpush.msra.mxu0 0.0
    %2335 = vmatpush.msra.mxu0 %v2317
    %2336 = vmatpush.msra.mxu0 %v2316
    %2337 = vmatpush.msra.mxu0 %v2315
    %2338 = vmatpush.msra.mxu0 %v2314
    %2339 = vmatmul.f32.gmra.mxu0 %v2321
    %v2340 = vpop.f32.mrf.mxu0
    %v2341 = vadd.f32 %v2319, %v2340
    %2342 = vdwg.mxu0
    %v2343 = vld [vmem:[#allocation7 + $0x60] sm:$0xff]
    %v2344 = vld [vmem:[#allocation7 + $0x68] sm:$0xff]
    %v2345 = vld [vmem:[#allocation7 + $0x70] sm:$0xff]
    %v2346 = vld [vmem:[#allocation7 + $0x78] sm:$0xff]
    %v2347 = vld [vmem:[#allocation7 + $0x82] sm:$0x1]
    %v2348 = vperm.slane %v2347, 0
    %2349 = vmatpush.msra.mxu0 0.0
    %2350 = vmatpush.msra.mxu0 0.0
    %2351 = vmatpush.msra.mxu0 0.0
    %2352 = vmatpush.msra.mxu0 0.0
    %2353 = vmatpush.msra.mxu0 0.0
    %2354 = vmatpush.msra.mxu0 0.0
    %2355 = vmatpush.msra.mxu0 0.0
    %2356 = vmatpush.msra.mxu0 0.0
    %2357 = vmatpush.msra.mxu0 0.0
    %2358 = vmatpush.msra.mxu0 0.0
    %2359 = vmatpush.msra.mxu0 0.0
    %2360 = vmatpush.msra.mxu0 0.0
    %2361 = vmatpush.msra.mxu0 %v2346
    %2362 = vmatpush.msra.mxu0 %v2345
    %2363 = vmatpush.msra.mxu0 %v2344
    %2364 = vmatpush.msra.mxu0 %v2343
    %2365 = vmatmul.f32.gmra.mxu0 %v2194
    %v2366 = vpop.f32.mrf.mxu0
    %v2367 = vadd.f32 %v2348, %v2366
    %2368 = vdwg.mxu0
    %v2369 = vadd.f32 %v2341, %v2367
    %v2370 = vxor.u32 %v2369, 2147483648
    %v2371 = vmul.f32 %v2370, 1.442695
    %v2372 = vpow.pop %v2371
    %v2373 = vadd.f32 %v2372, 1.0
    %v2374 = vrcp.pop %v2373
    %v2375 = vmul.f32 %v2373, %v2374
    %v2376 = vsub.f32 1.0, %v2375
    %v2377 = vmul.f32 %v2374, %v2376
    %v2378 = vadd.f32 %v2374, %v2377
    %vm2379 = vweird.f32 %v2373
    %vm2380 = vweird.f32 %v2374
    %vm2381 = vmor %vm2379, %vm2380
    %v2382 = vsel %vm2381, %v2374, %v2378
    %v2383 = vand.u32 2147483647, %v2373
    %vm2384 = vcmp.eq.f32.partialorder %v2383, 8.507059e+37
    %v2385 = vand.u32 %v2373, 2147483648
    %v2386 = vor.u32 1.1754944e-38, %v2385
    %v2387 = vsel %vm2384, %v2386, %v2382
    %v2388 = vmul.f32 1.0, %v2387
    %2390 = vrot.lane.b32.xlu0 %v2367, 64
    %v2391 = vpop.permute.xlu0 %2390
    %v2393 = vmul.f32 %v2388, %v2391
    %2395 = vrot.lane.b32.xlu0 %v2393, 64
    %v2396 = vpop.permute.xlu0 %2395
    %v2398 = vadd.f32 %v2341, %v2396
    %v2399 = vtanh.pop %v2398
    %v2400 = vsub.f32 1.0, %v2388
    %2402 = vrot.lane.b32.xlu0 %v2399, 96
    %v2403 = vpop.permute.xlu0 %2402
    %v2405 = vmul.f32 %v2400, %v2403
    %v2406 = vmul.f32 %v2388, %v2182
    %v2407 = vadd.f32 %v2405, %v2406
    %2409 = vrot.lane.b32.xlu0 %v2407, 96
    %v2410 = vpop.permute.xlu0 %2409
    %2412 = vst.msk [vmem:[#allocation6 + $0x28] sm:$0xff] %vm92, %v2410
    %v2413 = vld [vmem:[#allocation4 + $0x30] sm:$0xff]
    %v2414 = vld [vmem:[#allocation5 + $0x30] sm:$0xff]
    %v2415 = vld [vmem:[#allocation7 + $0xa8] sm:$0xff]
    %v2416 = vld [vmem:[#allocation7 + $0xb0] sm:$0xff]
    %v2417 = vld [vmem:[#allocation7 + $0xb8] sm:$0xff]
    %v2418 = vld [vmem:[#allocation7 + $0xc0] sm:$0xff]
    %v2419 = vsel %vm92, %v2410, 0
    %2421 = vmatpush.msra.mxu0 0.0
    %2422 = vmatpush.msra.mxu0 0.0
    %2423 = vmatpush.msra.mxu0 0.0
    %2424 = vmatpush.msra.mxu0 0.0
    %2425 = vmatpush.msra.mxu0 0.0
    %2426 = vmatpush.msra.mxu0 0.0
    %2427 = vmatpush.msra.mxu0 0.0
    %2428 = vmatpush.msra.mxu0 0.0
    %2429 = vmatpush.msra.mxu0 0.0
    %2430 = vmatpush.msra.mxu0 0.0
    %2431 = vmatpush.msra.mxu0 0.0
    %2432 = vmatpush.msra.mxu0 0.0
    %2433 = vmatpush.msra.mxu0 %v2418
    %2434 = vmatpush.msra.mxu0 %v2417
    %2435 = vmatpush.msra.mxu0 %v2416
    %2436 = vmatpush.msra.mxu0 %v2415
    %2437 = vmatmul.f32.gmra.mxu0 %v2419
    %v2438 = vpop.f32.mrf.mxu0
    %v2439 = vadd.f32 0.0, %v2438
    %2440 = vdwg.mxu0
    %v2441 = vadd.f32 %v2413, %v2439
    %v2442 = vsel %vm292, %v2441, -inf
    %2443 = vmax.xlane.f32.xlu0 %v2442
    %v2444 = vpop.xlane.xlu0 %2443
    %v2445 = vsub.f32 %v2441, %v2444
    %v2446 = vmul.f32 %v2445, 1.442695
    %v2447 = vpow.pop %v2446
    %v2448 = vsel %vm292, %v2447, 0.0
    %2449 = vadd.xlane.f32.xlu0 %v2448
    %v2450 = vpop.xlane.xlu0 %2449
    %v2451 = vrcp.pop %v2450
    %v2452 = vmul.f32 %v2447, %v2451
    %v2453 = vld [vmem:[#allocation7 + $0x168] sm:$0xff]
    %v2455 = vsel %vm292, %v2452, 0
    %2457 = vmatpush.msra.mxu0 0.0
    %2458 = vmatpush.msra.mxu0 0.0
    %2459 = vmatpush.msra.mxu0 0.0
    %2460 = vmatpush.msra.mxu0 0.0
    %2461 = vmatpush.msra.mxu0 0.0
    %2462 = vmatpush.msra.mxu0 0.0
    %2463 = vmatpush.msra.mxu0 0.0
    %2464 = vmatpush.msra.mxu0 0.0
    %2465 = vmatpush.msra.mxu0 0.0
    %2466 = vmatpush.msra.mxu0 0.0
    %2467 = vmatpush.msra.mxu0 0.0
    %2468 = vmatpush.msra.mxu0 0.0
    %2469 = vmatpush.msra.mxu0 0.0
    %2470 = vmatpush.msra.mxu0 0.0
    %2471 = vmatpush.msra.mxu0 0.0
    %2472 = vmatpush.msra.mxu0 %v2453
    %2473 = vmatmul.f32.gmra.mxu0 %v2455
    %v2474 = vpop.f32.mrf.mxu0
    %v2475 = vadd.f32 0.0, %v2474
    %2476 = vdwg.mxu0
    %v2477 = vld [vmem:[#allocation7 + $0x170] sm:$0xff]
    %v2478 = vmul.f32 %v2475, %v2477
    %v2479 = vld [vmem:[#allocation3] sm:$0xff]
    %v2480 = vld [vmem:[#allocation3 + $0x8] sm:$0xff]
    %v2481 = vld [vmem:[#allocation3 + $0x10] sm:$0xff]
    %v2482 = vld [vmem:[#allocation3 + $0x18] sm:$0xff]
    %v2483 = vld [vmem:[#allocation3 + $0x20] sm:$0xff]
    %v2484 = vld [vmem:[#allocation3 + $0x28] sm:$0xff]
    %v2485 = vld [vmem:[#allocation3 + $0x30] sm:$0xff]
    %v2486 = vld [vmem:[#allocation3 + $0x38] sm:$0xff]
    %v2488 = vsel %vm1136, %v2478, 0
    %2490 = vmatpush.msra.mxu0 0.0
    %2491 = vmatpush.msra.mxu0 0.0
    %2492 = vmatpush.msra.mxu0 0.0
    %2493 = vmatpush.msra.mxu0 0.0
    %2494 = vmatpush.msra.mxu0 0.0
    %2495 = vmatpush.msra.mxu0 0.0
    %2496 = vmatpush.msra.mxu0 0.0
    %2497 = vmatpush.msra.mxu0 0.0
    %2498 = vmatpush.msra.mxu0 %v2486
    %2499 = vmatpush.msra.mxu0 %v2485
    %2500 = vmatpush.msra.mxu0 %v2484
    %2501 = vmatpush.msra.mxu0 %v2483
    %2502 = vmatpush.msra.mxu0 %v2482
    %2503 = vmatpush.msra.mxu0 %v2481
    %2504 = vmatpush.msra.mxu0 %v2480
    %2505 = vmatpush.msra.mxu0 %v2479
    %2506 = vmatmul.f32.gmra.mxu0 %v2488
    %v2507 = vpop.f32.mrf.mxu0
    %v2508 = vadd.f32 0.0, %v2507
    %2509 = vdwg.mxu0
    %v2510 = vld [vmem:[#allocation7 + $0xe8] sm:$0xff]
    %v2511 = vld [vmem:[#allocation7 + $0xf0] sm:$0xff]
    %v2512 = vld [vmem:[#allocation7 + $0xf8] sm:$0xff]
    %v2513 = vld [vmem:[#allocation7 + $0x100] sm:$0xff]
    %v2515 = vsel %vm92, %v2508, 0
    %2517 = vmatpush.msra.mxu0 0.0
    %2518 = vmatpush.msra.mxu0 0.0
    %2519 = vmatpush.msra.mxu0 0.0
    %2520 = vmatpush.msra.mxu0 0.0
    %2521 = vmatpush.msra.mxu0 0.0
    %2522 = vmatpush.msra.mxu0 0.0
    %2523 = vmatpush.msra.mxu0 0.0
    %2524 = vmatpush.msra.mxu0 0.0
    %2525 = vmatpush.msra.mxu0 0.0
    %2526 = vmatpush.msra.mxu0 0.0
    %2527 = vmatpush.msra.mxu0 0.0
    %2528 = vmatpush.msra.mxu0 0.0
    %2529 = vmatpush.msra.mxu0 %v2513
    %2530 = vmatpush.msra.mxu0 %v2512
    %2531 = vmatpush.msra.mxu0 %v2511
    %2532 = vmatpush.msra.mxu0 %v2510
    %2533 = vmatmul.f32.gmra.mxu0 %v2515
    %v2534 = vpop.f32.mrf.mxu0
    %v2535 = vadd.f32 0.0, %v2534
    %2536 = vdwg.mxu0
    %v2537 = vadd.f32 %v2414, %v2535
    %v2538 = vmax.f32 %v2537, 0.0
    %v2539 = vld [vmem:[#allocation7 + $0x40] sm:$0xff]
    %v2540 = vld [vmem:[#allocation7 + $0x48] sm:$0xff]
    %v2541 = vld [vmem:[#allocation7 + $0x50] sm:$0xff]
    %v2542 = vld [vmem:[#allocation7 + $0x58] sm:$0xff]
    %v2543 = vld [vmem:[#allocation7 + $0x81] sm:$0x1]
    %v2544 = vperm.slane %v2543, 0
    %v2546 = vsel %vm92, %v2538, 0
    %2548 = vmatpush.msra.mxu0 0.0
    %2549 = vmatpush.msra.mxu0 0.0
    %2550 = vmatpush.msra.mxu0 0.0
    %2551 = vmatpush.msra.mxu0 0.0
    %2552 = vmatpush.msra.mxu0 0.0
    %2553 = vmatpush.msra.mxu0 0.0
    %2554 = vmatpush.msra.mxu0 0.0
    %2555 = vmatpush.msra.mxu0 0.0
    %2556 = vmatpush.msra.mxu0 0.0
    %2557 = vmatpush.msra.mxu0 0.0
    %2558 = vmatpush.msra.mxu0 0.0
    %2559 = vmatpush.msra.mxu0 0.0
    %2560 = vmatpush.msra.mxu0 %v2542
    %2561 = vmatpush.msra.mxu0 %v2541
    %2562 = vmatpush.msra.mxu0 %v2540
    %2563 = vmatpush.msra.mxu0 %v2539
    %2564 = vmatmul.f32.gmra.mxu0 %v2546
    %v2565 = vpop.f32.mrf.mxu0
    %v2566 = vadd.f32 %v2544, %v2565
    %2567 = vdwg.mxu0
    %v2568 = vld [vmem:[#allocation7 + $0x60] sm:$0xff]
    %v2569 = vld [vmem:[#allocation7 + $0x68] sm:$0xff]
    %v2570 = vld [vmem:[#allocation7 + $0x70] sm:$0xff]
    %v2571 = vld [vmem:[#allocation7 + $0x78] sm:$0xff]
    %v2572 = vld [vmem:[#allocation7 + $0x82] sm:$0x1]
    %v2573 = vperm.slane %v2572, 0
    %2574 = vmatpush.msra.mxu0 0.0
    %2575 = vmatpush.msra.mxu0 0.0
    %2576 = vmatpush.msra.mxu0 0.0
    %2577 = vmatpush.msra.mxu0 0.0
    %2578 = vmatpush.msra.mxu0 0.0
    %2579 = vmatpush.msra.mxu0 0.0
    %2580 = vmatpush.msra.mxu0 0.0
    %2581 = vmatpush.msra.mxu0 0.0
    %2582 = vmatpush.msra.mxu0 0.0
    %2583 = vmatpush.msra.mxu0 0.0
    %2584 = vmatpush.msra.mxu0 0.0
    %2585 = vmatpush.msra.mxu0 0.0
    %2586 = vmatpush.msra.mxu0 %v2571
    %2587 = vmatpush.msra.mxu0 %v2570
    %2588 = vmatpush.msra.mxu0 %v2569
    %2589 = vmatpush.msra.mxu0 %v2568
    %2590 = vmatmul.f32.gmra.mxu0 %v2419
    %v2591 = vpop.f32.mrf.mxu0
    %v2592 = vadd.f32 %v2573, %v2591
    %2593 = vdwg.mxu0
    %v2594 = vadd.f32 %v2566, %v2592
    %v2595 = vxor.u32 %v2594, 2147483648
    %v2596 = vmul.f32 %v2595, 1.442695
    %v2597 = vpow.pop %v2596
    %v2598 = vadd.f32 %v2597, 1.0
    %v2599 = vrcp.pop %v2598
    %v2600 = vmul.f32 %v2598, %v2599
    %v2601 = vsub.f32 1.0, %v2600
    %v2602 = vmul.f32 %v2599, %v2601
    %v2603 = vadd.f32 %v2599, %v2602
    %vm2604 = vweird.f32 %v2598
    %vm2605 = vweird.f32 %v2599
    %vm2606 = vmor %vm2604, %vm2605
    %v2607 = vsel %vm2606, %v2599, %v2603
    %v2608 = vand.u32 2147483647, %v2598
    %vm2609 = vcmp.eq.f32.partialorder %v2608, 8.507059e+37
    %v2610 = vand.u32 %v2598, 2147483648
    %v2611 = vor.u32 1.1754944e-38, %v2610
    %v2612 = vsel %vm2609, %v2611, %v2607
    %v2613 = vmul.f32 1.0, %v2612
    %2615 = vrot.lane.b32.xlu0 %v2592, 64
    %v2616 = vpop.permute.xlu0 %2615
    %v2618 = vmul.f32 %v2613, %v2616
    %2620 = vrot.lane.b32.xlu0 %v2618, 64
    %v2621 = vpop.permute.xlu0 %2620
    %v2623 = vadd.f32 %v2566, %v2621
    %v2624 = vtanh.pop %v2623
    %v2625 = vsub.f32 1.0, %v2613
    %2627 = vrot.lane.b32.xlu0 %v2624, 96
    %v2628 = vpop.permute.xlu0 %2627
    %v2630 = vmul.f32 %v2625, %v2628
    %v2631 = vmul.f32 %v2613, %v2407
    %v2632 = vadd.f32 %v2630, %v2631
    %2634 = vrot.lane.b32.xlu0 %v2632, 96
    %v2635 = vpop.permute.xlu0 %2634
    %2637 = vst.msk [vmem:[#allocation6 + $0x30] sm:$0xff] %vm92, %v2635
    %v2638 = vld [vmem:[#allocation4 + $0x38] sm:$0xff]
    %v2639 = vld [vmem:[#allocation5 + $0x38] sm:$0xff]
    %v2640 = vld [vmem:[#allocation7 + $0xa8] sm:$0xff]
    %v2641 = vld [vmem:[#allocation7 + $0xb0] sm:$0xff]
    %v2642 = vld [vmem:[#allocation7 + $0xb8] sm:$0xff]
    %v2643 = vld [vmem:[#allocation7 + $0xc0] sm:$0xff]
    %v2644 = vsel %vm92, %v2635, 0
    %2646 = vmatpush.msra.mxu0 0.0
    %2647 = vmatpush.msra.mxu0 0.0
    %2648 = vmatpush.msra.mxu0 0.0
    %2649 = vmatpush.msra.mxu0 0.0
    %2650 = vmatpush.msra.mxu0 0.0
    %2651 = vmatpush.msra.mxu0 0.0
    %2652 = vmatpush.msra.mxu0 0.0
    %2653 = vmatpush.msra.mxu0 0.0
    %2654 = vmatpush.msra.mxu0 0.0
    %2655 = vmatpush.msra.mxu0 0.0
    %2656 = vmatpush.msra.mxu0 0.0
    %2657 = vmatpush.msra.mxu0 0.0
    %2658 = vmatpush.msra.mxu0 %v2643
    %2659 = vmatpush.msra.mxu0 %v2642
    %2660 = vmatpush.msra.mxu0 %v2641
    %2661 = vmatpush.msra.mxu0 %v2640
    %2662 = vmatmul.f32.gmra.mxu0 %v2644
    %v2663 = vpop.f32.mrf.mxu0
    %v2664 = vadd.f32 0.0, %v2663
    %2665 = vdwg.mxu0
    %v2666 = vadd.f32 %v2638, %v2664
    %v2667 = vsel %vm292, %v2666, -inf
    %2668 = vmax.xlane.f32.xlu0 %v2667
    %v2669 = vpop.xlane.xlu0 %2668
    %v2670 = vsub.f32 %v2666, %v2669
    %v2671 = vmul.f32 %v2670, 1.442695
    %v2672 = vpow.pop %v2671
    %v2673 = vsel %vm292, %v2672, 0.0
    %2674 = vadd.xlane.f32.xlu0 %v2673
    %v2675 = vpop.xlane.xlu0 %2674
    %v2676 = vrcp.pop %v2675
    %v2677 = vmul.f32 %v2672, %v2676
    %v2678 = vld [vmem:[#allocation7 + $0x168] sm:$0xff]
    %v2680 = vsel %vm292, %v2677, 0
    %2682 = vmatpush.msra.mxu0 0.0
    %2683 = vmatpush.msra.mxu0 0.0
    %2684 = vmatpush.msra.mxu0 0.0
    %2685 = vmatpush.msra.mxu0 0.0
    %2686 = vmatpush.msra.mxu0 0.0
    %2687 = vmatpush.msra.mxu0 0.0
    %2688 = vmatpush.msra.mxu0 0.0
    %2689 = vmatpush.msra.mxu0 0.0
    %2690 = vmatpush.msra.mxu0 0.0
    %2691 = vmatpush.msra.mxu0 0.0
    %2692 = vmatpush.msra.mxu0 0.0
    %2693 = vmatpush.msra.mxu0 0.0
    %2694 = vmatpush.msra.mxu0 0.0
    %2695 = vmatpush.msra.mxu0 0.0
    %2696 = vmatpush.msra.mxu0 0.0
    %2697 = vmatpush.msra.mxu0 %v2678
    %2698 = vmatmul.f32.gmra.mxu0 %v2680
    %v2699 = vpop.f32.mrf.mxu0
    %v2700 = vadd.f32 0.0, %v2699
    %2701 = vdwg.mxu0
    %v2702 = vld [vmem:[#allocation7 + $0x170] sm:$0xff]
    %v2703 = vmul.f32 %v2700, %v2702
    %v2704 = vld [vmem:[#allocation3] sm:$0xff]
    %v2705 = vld [vmem:[#allocation3 + $0x8] sm:$0xff]
    %v2706 = vld [vmem:[#allocation3 + $0x10] sm:$0xff]
    %v2707 = vld [vmem:[#allocation3 + $0x18] sm:$0xff]
    %v2708 = vld [vmem:[#allocation3 + $0x20] sm:$0xff]
    %v2709 = vld [vmem:[#allocation3 + $0x28] sm:$0xff]
    %v2710 = vld [vmem:[#allocation3 + $0x30] sm:$0xff]
    %v2711 = vld [vmem:[#allocation3 + $0x38] sm:$0xff]
    %v2713 = vsel %vm1136, %v2703, 0
    %2715 = vmatpush.msra.mxu0 0.0
    %2716 = vmatpush.msra.mxu0 0.0
    %2717 = vmatpush.msra.mxu0 0.0
    %2718 = vmatpush.msra.mxu0 0.0
    %2719 = vmatpush.msra.mxu0 0.0
    %2720 = vmatpush.msra.mxu0 0.0
    %2721 = vmatpush.msra.mxu0 0.0
    %2722 = vmatpush.msra.mxu0 0.0
    %2723 = vmatpush.msra.mxu0 %v2711
    %2724 = vmatpush.msra.mxu0 %v2710
    %2725 = vmatpush.msra.mxu0 %v2709
    %2726 = vmatpush.msra.mxu0 %v2708
    %2727 = vmatpush.msra.mxu0 %v2707
    %2728 = vmatpush.msra.mxu0 %v2706
    %2729 = vmatpush.msra.mxu0 %v2705
    %2730 = vmatpush.msra.mxu0 %v2704
    %2731 = vmatmul.f32.gmra.mxu0 %v2713
    %v2732 = vpop.f32.mrf.mxu0
    %v2733 = vadd.f32 0.0, %v2732
    %2734 = vdwg.mxu0
    %v2735 = vld [vmem:[#allocation7 + $0xe8] sm:$0xff]
    %v2736 = vld [vmem:[#allocation7 + $0xf0] sm:$0xff]
    %v2737 = vld [vmem:[#allocation7 + $0xf8] sm:$0xff]
    %v2738 = vld [vmem:[#allocation7 + $0x100] sm:$0xff]
    %v2740 = vsel %vm92, %v2733, 0
    %2742 = vmatpush.msra.mxu0 0.0
    %2743 = vmatpush.msra.mxu0 0.0
    %2744 = vmatpush.msra.mxu0 0.0
    %2745 = vmatpush.msra.mxu0 0.0
    %2746 = vmatpush.msra.mxu0 0.0
    %2747 = vmatpush.msra.mxu0 0.0
    %2748 = vmatpush.msra.mxu0 0.0
    %2749 = vmatpush.msra.mxu0 0.0
    %2750 = vmatpush.msra.mxu0 0.0
    %2751 = vmatpush.msra.mxu0 0.0
    %2752 = vmatpush.msra.mxu0 0.0
    %2753 = vmatpush.msra.mxu0 0.0
    %2754 = vmatpush.msra.mxu0 %v2738
    %2755 = vmatpush.msra.mxu0 %v2737
    %2756 = vmatpush.msra.mxu0 %v2736
    %2757 = vmatpush.msra.mxu0 %v2735
    %2758 = vmatmul.f32.gmra.mxu0 %v2740
    %v2759 = vpop.f32.mrf.mxu0
    %v2760 = vadd.f32 0.0, %v2759
    %2761 = vdwg.mxu0
    %v2762 = vadd.f32 %v2639, %v2760
    %v2763 = vmax.f32 %v2762, 0.0
    %v2764 = vld [vmem:[#allocation7 + $0x40] sm:$0xff]
    %v2765 = vld [vmem:[#allocation7 + $0x48] sm:$0xff]
    %v2766 = vld [vmem:[#allocation7 + $0x50] sm:$0xff]
    %v2767 = vld [vmem:[#allocation7 + $0x58] sm:$0xff]
    %v2768 = vld [vmem:[#allocation7 + $0x81] sm:$0x1]
    %v2769 = vperm.slane %v2768, 0
    %v2771 = vsel %vm92, %v2763, 0
    %2773 = vmatpush.msra.mxu0 0.0
    %2774 = vmatpush.msra.mxu0 0.0
    %2775 = vmatpush.msra.mxu0 0.0
    %2776 = vmatpush.msra.mxu0 0.0
    %2777 = vmatpush.msra.mxu0 0.0
    %2778 = vmatpush.msra.mxu0 0.0
    %2779 = vmatpush.msra.mxu0 0.0
    %2780 = vmatpush.msra.mxu0 0.0
    %2781 = vmatpush.msra.mxu0 0.0
    %2782 = vmatpush.msra.mxu0 0.0
    %2783 = vmatpush.msra.mxu0 0.0
    %2784 = vmatpush.msra.mxu0 0.0
    %2785 = vmatpush.msra.mxu0 %v2767
    %2786 = vmatpush.msra.mxu0 %v2766
    %2787 = vmatpush.msra.mxu0 %v2765
    %2788 = vmatpush.msra.mxu0 %v2764
    %2789 = vmatmul.f32.gmra.mxu0 %v2771
    %v2790 = vpop.f32.mrf.mxu0
    %v2791 = vadd.f32 %v2769, %v2790
    %2792 = vdwg.mxu0
    %v2793 = vld [vmem:[#allocation7 + $0x60] sm:$0xff]
    %v2794 = vld [vmem:[#allocation7 + $0x68] sm:$0xff]
    %v2795 = vld [vmem:[#allocation7 + $0x70] sm:$0xff]
    %v2796 = vld [vmem:[#allocation7 + $0x78] sm:$0xff]
    %v2797 = vld [vmem:[#allocation7 + $0x82] sm:$0x1]
    %v2798 = vperm.slane %v2797, 0
    %2799 = vmatpush.msra.mxu0 0.0
    %2800 = vmatpush.msra.mxu0 0.0
    %2801 = vmatpush.msra.mxu0 0.0
    %2802 = vmatpush.msra.mxu0 0.0
    %2803 = vmatpush.msra.mxu0 0.0
    %2804 = vmatpush.msra.mxu0 0.0
    %2805 = vmatpush.msra.mxu0 0.0
    %2806 = vmatpush.msra.mxu0 0.0
    %2807 = vmatpush.msra.mxu0 0.0
    %2808 = vmatpush.msra.mxu0 0.0
    %2809 = vmatpush.msra.mxu0 0.0
    %2810 = vmatpush.msra.mxu0 0.0
    %2811 = vmatpush.msra.mxu0 %v2796
    %2812 = vmatpush.msra.mxu0 %v2795
    %2813 = vmatpush.msra.mxu0 %v2794
    %2814 = vmatpush.msra.mxu0 %v2793
    %2815 = vmatmul.f32.gmra.mxu0 %v2644
    %v2816 = vpop.f32.mrf.mxu0
    %v2817 = vadd.f32 %v2798, %v2816
    %2818 = vdwg.mxu0
    %v2819 = vadd.f32 %v2791, %v2817
    %v2820 = vxor.u32 %v2819, 2147483648
    %v2821 = vmul.f32 %v2820, 1.442695
    %v2822 = vpow.pop %v2821
    %v2823 = vadd.f32 %v2822, 1.0
    %v2824 = vrcp.pop %v2823
    %v2825 = vmul.f32 %v2823, %v2824
    %v2826 = vsub.f32 1.0, %v2825
    %v2827 = vmul.f32 %v2824, %v2826
    %v2828 = vadd.f32 %v2824, %v2827
    %vm2829 = vweird.f32 %v2823
    %vm2830 = vweird.f32 %v2824
    %vm2831 = vmor %vm2829, %vm2830
    %v2832 = vsel %vm2831, %v2824, %v2828
    %v2833 = vand.u32 2147483647, %v2823
    %vm2834 = vcmp.eq.f32.partialorder %v2833, 8.507059e+37
    %v2835 = vand.u32 %v2823, 2147483648
    %v2836 = vor.u32 1.1754944e-38, %v2835
    %v2837 = vsel %vm2834, %v2836, %v2832
    %v2838 = vmul.f32 1.0, %v2837
    %2840 = vrot.lane.b32.xlu0 %v2817, 64
    %v2841 = vpop.permute.xlu0 %2840
    %v2843 = vmul.f32 %v2838, %v2841
    %2845 = vrot.lane.b32.xlu0 %v2843, 64
    %v2846 = vpop.permute.xlu0 %2845
    %v2848 = vadd.f32 %v2791, %v2846
    %v2849 = vtanh.pop %v2848
    %v2850 = vsub.f32 1.0, %v2838
    %2852 = vrot.lane.b32.xlu0 %v2849, 96
    %v2853 = vpop.permute.xlu0 %2852
    %v2855 = vmul.f32 %v2850, %v2853
    %v2856 = vmul.f32 %v2838, %v2632
    %v2857 = vadd.f32 %v2855, %v2856
    %2859 = vrot.lane.b32.xlu0 %v2857, 96
    %v2860 = vpop.permute.xlu0 %2859
    %2862 = vst.msk [vmem:[#allocation6 + $0x38] sm:$0xff] %vm92, %v2860
    %v2863 = vld [vmem:[#allocation6] sm:$0xff]
    %v2864 = vld [vmem:[#allocation6 + $0x8] sm:$0xff]
    %v2865 = vld [vmem:[#allocation6 + $0x10] sm:$0xff]
    %v2866 = vld [vmem:[#allocation6 + $0x18] sm:$0xff]
    %v2867 = vld [vmem:[#allocation6 + $0x20] sm:$0xff]
    %v2868 = vld [vmem:[#allocation6 + $0x28] sm:$0xff]
    %v2869 = vld [vmem:[#allocation6 + $0x30] sm:$0xff]
    %v2870 = vld [vmem:[#allocation6 + $0x38] sm:$0xff]
    %v2871 = vld [vmem:[#allocation7 + $0x108] sm:$0xff]
    %v2872 = vld [vmem:[#allocation7 + $0x110] sm:$0xff]
    %v2873 = vld [vmem:[#allocation7 + $0x118] sm:$0xff]
    %v2874 = vld [vmem:[#allocation7 + $0x120] sm:$0xff]
    %v2875 = vld [vmem:[#allocation7 + $0x83] sm:$0x1]
    %v2876 = vperm.slane %v2875, 0
    %v2878 = vsel %vm92, %v2863, 0
    %v2881 = vsel %vm92, %v2864, 0
    %v2884 = vsel %vm92, %v2865, 0
    %v2887 = vsel %vm92, %v2866, 0
    %v2890 = vsel %vm92, %v2867, 0
    %v2893 = vsel %vm92, %v2868, 0
    %v2896 = vsel %vm92, %v2869, 0
    %v2899 = vsel %vm92, %v2870, 0
    %2901 = vmatpush.msra.mxu0 0.0
    %2902 = vmatpush.msra.mxu0 0.0
    %2903 = vmatpush.msra.mxu0 0.0
    %2904 = vmatpush.msra.mxu0 0.0
    %2905 = vmatpush.msra.mxu0 0.0
    %2906 = vmatpush.msra.mxu0 0.0
    %2907 = vmatpush.msra.mxu0 0.0
    %2908 = vmatpush.msra.mxu0 0.0
    %2909 = vmatpush.msra.mxu0 0.0
    %2910 = vmatpush.msra.mxu0 0.0
    %2911 = vmatpush.msra.mxu0 0.0
    %2912 = vmatpush.msra.mxu0 0.0
    %2913 = vmatpush.msra.mxu0 %v2874
    %2914 = vmatpush.msra.mxu0 %v2873
    %2915 = vmatpush.msra.mxu0 %v2872
    %2916 = vmatpush.msra.mxu0 %v2871
    %2917 = vmatmul.f32.gmra.mxu0 %v2878
    %v2918 = vpop.f32.mrf.mxu0
    %v2919 = vadd.f32 %v2876, %v2918
    %2920 = vmatmul.f32.gmra.mxu0 %v2881
    %v2921 = vpop.f32.mrf.mxu0
    %v2922 = vadd.f32 %v2876, %v2921
    %2923 = vmatmul.f32.gmra.mxu0 %v2884
    %v2924 = vpop.f32.mrf.mxu0
    %v2925 = vadd.f32 %v2876, %v2924
    %2926 = vmatmul.f32.gmra.mxu0 %v2887
    %v2927 = vpop.f32.mrf.mxu0
    %v2928 = vadd.f32 %v2876, %v2927
    %2929 = vmatmul.f32.gmra.mxu0 %v2890
    %v2930 = vpop.f32.mrf.mxu0
    %v2931 = vadd.f32 %v2876, %v2930
    %2932 = vmatmul.f32.gmra.mxu0 %v2893
    %v2933 = vpop.f32.mrf.mxu0
    %v2934 = vadd.f32 %v2876, %v2933
    %2935 = vmatmul.f32.gmra.mxu0 %v2896
    %v2936 = vpop.f32.mrf.mxu0
    %v2937 = vadd.f32 %v2876, %v2936
    %2938 = vmatmul.f32.gmra.mxu0 %v2899
    %v2939 = vpop.f32.mrf.mxu0
    %v2940 = vadd.f32 %v2876, %v2939
    %2941 = vdwg.mxu0
    %v2942 = vsel %vm92, %v2919, -inf
    %2943 = vmax.xlane.f32.xlu0 %v2942
    %v2944 = vpop.xlane.xlu0 %2943
    %v2945 = vsel %vm92, %v2922, -inf
    %2946 = vmax.xlane.f32.xlu0 %v2945
    %v2947 = vpop.xlane.xlu0 %2946
    %v2948 = vsel %vm92, %v2925, -inf
    %2949 = vmax.xlane.f32.xlu0 %v2948
    %v2950 = vpop.xlane.xlu0 %2949
    %v2951 = vsel %vm92, %v2928, -inf
    %2952 = vmax.xlane.f32.xlu0 %v2951
    %v2953 = vpop.xlane.xlu0 %2952
    %v2954 = vsel %vm92, %v2931, -inf
    %2955 = vmax.xlane.f32.xlu0 %v2954
    %v2956 = vpop.xlane.xlu0 %2955
    %v2957 = vsel %vm92, %v2934, -inf
    %2958 = vmax.xlane.f32.xlu0 %v2957
    %v2959 = vpop.xlane.xlu0 %2958
    %v2960 = vsel %vm92, %v2937, -inf
    %2961 = vmax.xlane.f32.xlu0 %v2960
    %v2962 = vpop.xlane.xlu0 %2961
    %v2963 = vsel %vm92, %v2940, -inf
    %2964 = vmax.xlane.f32.xlu0 %v2963
    %v2965 = vpop.xlane.xlu0 %2964
    %v2966 = vsub.f32 %v2919, %v2944
    %v2967 = vsub.f32 %v2922, %v2947
    %v2968 = vsub.f32 %v2925, %v2950
    %v2969 = vsub.f32 %v2928, %v2953
    %v2970 = vsub.f32 %v2931, %v2956
    %v2971 = vsub.f32 %v2934, %v2959
    %v2972 = vsub.f32 %v2937, %v2962
    %v2973 = vsub.f32 %v2940, %v2965
    %v2974 = vmul.f32 %v2966, 1.442695
    %v2975 = vpow.pop %v2974
    %v2976 = vmul.f32 %v2967, 1.442695
    %v2977 = vpow.pop %v2976
    %v2978 = vmul.f32 %v2968, 1.442695
    %v2979 = vpow.pop %v2978
    %v2980 = vmul.f32 %v2969, 1.442695
    %v2981 = vpow.pop %v2980
    %v2982 = vmul.f32 %v2970, 1.442695
    %v2983 = vpow.pop %v2982
    %v2984 = vmul.f32 %v2971, 1.442695
    %v2985 = vpow.pop %v2984
    %v2986 = vmul.f32 %v2972, 1.442695
    %v2987 = vpow.pop %v2986
    %v2988 = vmul.f32 %v2973, 1.442695
    %v2989 = vpow.pop %v2988
    %v2990 = vsel %vm92, %v2975, 0.0
    %2991 = vadd.xlane.f32.xlu0 %v2990
    %v2992 = vpop.xlane.xlu0 %2991
    %v2993 = vsel %vm92, %v2977, 0.0
    %2994 = vadd.xlane.f32.xlu0 %v2993
    %v2995 = vpop.xlane.xlu0 %2994
    %v2996 = vsel %vm92, %v2979, 0.0
    %2997 = vadd.xlane.f32.xlu0 %v2996
    %v2998 = vpop.xlane.xlu0 %2997
    %v2999 = vsel %vm92, %v2981, 0.0
    %3000 = vadd.xlane.f32.xlu0 %v2999
    %v3001 = vpop.xlane.xlu0 %3000
    %v3002 = vsel %vm92, %v2983, 0.0
    %3003 = vadd.xlane.f32.xlu0 %v3002
    %v3004 = vpop.xlane.xlu0 %3003
    %v3005 = vsel %vm92, %v2985, 0.0
    %3006 = vadd.xlane.f32.xlu0 %v3005
    %v3007 = vpop.xlane.xlu0 %3006
    %v3008 = vsel %vm92, %v2987, 0.0
    %3009 = vadd.xlane.f32.xlu0 %v3008
    %v3010 = vpop.xlane.xlu0 %3009
    %v3011 = vsel %vm92, %v2989, 0.0
    %3012 = vadd.xlane.f32.xlu0 %v3011
    %v3013 = vpop.xlane.xlu0 %3012
    %v3014 = vlog2.pop %v2992
    %v3015 = vmul.f32 %v3014, 0.6931472
    %v3016 = vlog2.pop %v2995
    %v3017 = vmul.f32 %v3016, 0.6931472
    %v3018 = vlog2.pop %v2998
    %v3019 = vmul.f32 %v3018, 0.6931472
    %v3020 = vlog2.pop %v3001
    %v3021 = vmul.f32 %v3020, 0.6931472
    %v3022 = vlog2.pop %v3004
    %v3023 = vmul.f32 %v3022, 0.6931472
    %v3024 = vlog2.pop %v3007
    %v3025 = vmul.f32 %v3024, 0.6931472
    %v3026 = vlog2.pop %v3010
    %v3027 = vmul.f32 %v3026, 0.6931472
    %v3028 = vlog2.pop %v3013
    %v3029 = vmul.f32 %v3028, 0.6931472
    %v3030 = vadd.f32 %v3015, %v2944
    %v3031 = vadd.f32 %v3017, %v2947
    %v3032 = vadd.f32 %v3019, %v2950
    %v3033 = vadd.f32 %v3021, %v2953
    %v3034 = vadd.f32 %v3023, %v2956
    %v3035 = vadd.f32 %v3025, %v2959
    %v3036 = vadd.f32 %v3027, %v2962
    %v3037 = vadd.f32 %v3029, %v2965
    %v3038 = vsub.f32 %v2919, %v3030
    %v3039 = vsub.f32 %v2922, %v3031
    %v3040 = vsub.f32 %v2925, %v3032
    %v3041 = vsub.f32 %v2928, %v3033
    %v3042 = vsub.f32 %v2931, %v3034
    %v3043 = vsub.f32 %v2934, %v3035
    %v3044 = vsub.f32 %v2937, %v3036
    %v3045 = vsub.f32 %v2940, %v3037
    %3046 = vset.pattern.permute.xlu0 2
    %3047 = vperm.xlu0 %3046, %v30
    %v3048 = vpop.permute.xlu0 %3047
    %3049 = vset.pattern.permute.xlu0 2
    %3050 = vperm.xlu0 %3049, %v31
    %v3051 = vpop.permute.xlu0 %3050
    %3052 = vset.pattern.permute.xlu0 2
    %3053 = vperm.xlu0 %3052, %v32
    %v3054 = vpop.permute.xlu0 %3053
    %3055 = vset.pattern.permute.xlu0 2
    %3056 = vperm.xlu0 %3055, %v33
    %v3057 = vpop.permute.xlu0 %3056
    %3058 = vset.pattern.permute.xlu0 2
    %3059 = vperm.xlu0 %3058, %v34
    %v3060 = vpop.permute.xlu0 %3059
    %3061 = vset.pattern.permute.xlu0 2
    %3062 = vperm.xlu0 %3061, %v35
    %v3063 = vpop.permute.xlu0 %3062
    %3064 = vset.pattern.permute.xlu0 2
    %3065 = vperm.xlu0 %3064, %v36
    %v3066 = vpop.permute.xlu0 %3065
    %3067 = vset.pattern.permute.xlu0 2
    %3068 = vperm.xlu0 %3067, %v37
    %v3069 = vpop.permute.xlu0 %3068
    %vm3070 = vcmp.eq.s32.totalorder %v39, %v3048
    %vm3071 = vcmp.eq.s32.totalorder %v39, %v3051
    %vm3072 = vcmp.eq.s32.totalorder %v39, %v3054
    %vm3073 = vcmp.eq.s32.totalorder %v39, %v3057
    %vm3074 = vcmp.eq.s32.totalorder %v39, %v3060
    %vm3075 = vcmp.eq.s32.totalorder %v39, %v3063
    %vm3076 = vcmp.eq.s32.totalorder %v39, %v3066
    %vm3077 = vcmp.eq.s32.totalorder %v39, %v3069
    %v3078 = vsel %vm3070, 1, 0
    %v3079 = vsel %vm3071, 1, 0
    %v3080 = vsel %vm3072, 1, 0
    %v3081 = vsel %vm3073, 1, 0
    %v3082 = vsel %vm3074, 1, 0
    %v3083 = vsel %vm3075, 1, 0
    %v3084 = vsel %vm3076, 1, 0
    %v3085 = vsel %vm3077, 1, 0
    %v3086 = vcvt.s32.f32 %v3078
    %v3087 = vcvt.s32.f32 %v3079
    %v3088 = vcvt.s32.f32 %v3080
    %v3089 = vcvt.s32.f32 %v3081
    %v3090 = vcvt.s32.f32 %v3082
    %v3091 = vcvt.s32.f32 %v3083
    %v3092 = vcvt.s32.f32 %v3084
    %v3093 = vcvt.s32.f32 %v3085
    %v3094 = vmul.f32 %v3038, %v3086
    %v3095 = vmul.f32 %v3039, %v3087
    %v3096 = vmul.f32 %v3040, %v3088
    %v3097 = vmul.f32 %v3041, %v3089
    %v3098 = vmul.f32 %v3042, %v3090
    %v3099 = vmul.f32 %v3043, %v3091
    %v3100 = vmul.f32 %v3044, %v3092
    %v3101 = vmul.f32 %v3045, %v3093
    %v3102 = vsel %vm92, %v3094, 0.0
    %v3103 = vsel %vm92, %v3095, 0.0
    %v3104 = vadd.f32 %v3102, %v3103
    %v3105 = vsel %vm92, %v3096, 0.0
    %v3106 = vadd.f32 %v3104, %v3105
    %v3107 = vsel %vm92, %v3097, 0.0
    %v3108 = vadd.f32 %v3106, %v3107
    %v3109 = vsel %vm92, %v3098, 0.0
    %v3110 = vadd.f32 %v3108, %v3109
    %v3111 = vsel %vm92, %v3099, 0.0
    %v3112 = vadd.f32 %v3110, %v3111
    %v3113 = vsel %vm92, %v3100, 0.0
    %v3114 = vadd.f32 %v3112, %v3113
    %v3115 = vsel %vm92, %v3101, 0.0
    %v3116 = vadd.f32 %v3114, %v3115
    %3117 = vadd.xlane.f32.xlu0 %v3116
    %v3118 = vpop.xlane.xlu0 %3117
    %v3119 = vrot.slane %v3118, 4
    %v3120 = vadd.f32 %v3118, %v3119
    %v3121 = vrot.slane %v3120, 2
    %v3122 = vadd.f32 %v3120, %v3121
    %v3123 = vrot.slane %v3122, 1
    %v3124 = vadd.f32 %v3122, %v3123
    %s3125 = vtos %v3124
    %v3126 = vstv %s3125
    %v3127 = vmul.f32 %v3126, -0.5
    %3128 = vst [vmem:[%s3] sm:$0xff] %v3127
    // Predicated region
    $region18: #{seq2seq_forward.1} parent=1 // pred_check
      _
    $region19: #{seq2seq_forward.1} parent=1 // pred_check_branch
      %3130 = sbr.rel (0) target = $region21
    $region20: #{seq2seq_forward.1} parent=1 // pred_region
      _
    $region21: #{seq2seq_forward.1} parent=1 // pred_fallthru
      _
    // Predicated region
    $region22: #{seq2seq_forward.1} parent=1 // pred_check
      _
    $region23: #{seq2seq_forward.1} parent=1 // pred_check_branch
      %3132 = sbr.rel (0) target = $region25
    $region24: #{seq2seq_forward.1} parent=1 // pred_region
      _
    $region25: #{seq2seq_forward.1} parent=1 // pred_fallthru
      _
    %3133 = vsyncpa [#allocation8], 1

</llo_original>
